<compile_context>
chip_gen: v7x
topology: tpu7x:2x2x1
jax: 0.10.0
libtpu: 0.0.40
codegen_flags: <defaults>
</compile_context>

<pallas_src>
import jax
import jax.numpy as jnp
from jax.experimental import pallas as pl
from jax.experimental.pallas import tpu as pltpu

LANE = 128


# --------------------------------------------------------------------------
# feat_extractor: synthetic stand-in.
# TODO(synk): feat_extractor is an injected black-box module (e.g. BERT);
# synthesized here as embedding lookups (XLA gather) + a Pallas linear + tanh,
# masked by attention_mask.
# --------------------------------------------------------------------------
def _proj_kernel(x_ref, mask_ref, w_ref, b_ref, o_ref):
    # x: (TM, E) bf16, w: (E, D) bf16, b: (1, D) f32, mask: (TM, 1) f32
    y = jnp.dot(x_ref[...], w_ref[...], preferred_element_type=jnp.float32) + b_ref[...]
    o_ref[...] = (jnp.tanh(y) * mask_ref[...]).astype(o_ref.dtype)


def feat_extractor(input_ids, token_type_ids, attention_mask, params):
    B, S = input_ids.shape
    emb = (params["word_emb"][input_ids]
           + params["type_emb"][token_type_ids]
           + params["pos_emb"][None, :S, :])                    # (B, S, E) -- gather glue
    E = emb.shape[-1]
    D = params["proj_w"].shape[-1]
    N = B * S

    x2d = emb.reshape(N, E).astype(jnp.bfloat16)                # bf16 MXU inputs
    mask2d = attention_mask.reshape(N, 1).astype(jnp.float32)
    w = params["proj_w"].astype(jnp.bfloat16)
    b = params["proj_b"]

    # Row-tiled so real BERT-scale B*S stays within scoped VMEM; at demo size
    # this is a single grid step. TODO(synk): add a K-reduction axis if E is large.
    TM = N if N <= 512 else 512
    out = pl.pallas_call(
        _proj_kernel,
        out_shape=jax.ShapeDtypeStruct((N, D), jnp.float32),
        grid_spec=pltpu.PrefetchScalarGridSpec(
            num_scalar_prefetch=0,
            grid=(pl.cdiv(N, TM),),
            in_specs=[pl.BlockSpec((TM, E), lambda i: (i, 0)),
                      pl.BlockSpec((TM, 1), lambda i: (i, 0)),
                      pl.BlockSpec((E, D), lambda i: (0, 0)),
                      pl.BlockSpec((1, D), lambda i: (0, 0))],
            out_specs=pl.BlockSpec((TM, D), lambda i: (i, 0)),
        ),
        compiler_params=pltpu.CompilerParams(
            dimension_semantics=("parallel",)),
    )(x2d, mask2d, w, b)
    return out.reshape(B, S, D)                                 # (B, S, D) f32


# --------------------------------------------------------------------------
# sentence_head (bi-LSTM, 1 layer) fused with the classifier Linear.
# Single pallas_call, no grid: the whole sequence lives in VMEM, X@W_ih is
# hoisted, the S-step recurrence is fully unrolled (S small & static), and
# logits are produced in the epilogue (no HBM round trip for last_hidden).
#
# NOTE: the recurrence runs over the full padded length S (matches nn.LSTM on a
# padded tensor; NOT pack_padded_sequence semantics).
# --------------------------------------------------------------------------
def _bilstm_classifier_kernel(x_ref, wih_ref, whh_ref, b_ref,
                              clsw_ref, clsb_ref, o_ref):
    B, S, D = x_ref.shape
    H = whh_ref.shape[1]

    # Hoist input->hidden matmul out of the recurrence (one big MXU call per
    # direction instead of S tiny ones).
    x2d = x_ref[...].reshape(B * S, D).astype(jnp.bfloat16)     # row = b*S + t

    h_last = []
    for d in range(2):                                          # 0 = fwd, 1 = bwd
        gx = (jnp.dot(x2d, wih_ref[d], preferred_element_type=jnp.float32)
              + b_ref[d]).reshape(B, S, 4 * H)                  # f32 gate pre-acts
        w_hh = whh_ref[d]                                       # (H, 4H) bf16
        h = jnp.zeros((B, H), jnp.float32)
        c = jnp.zeros((B, H), jnp.float32)
        for t in range(S):                                      # static, fully unrolled
            tt = t if d == 0 else S - 1 - t
            gates = gx[:, tt, :] + jnp.dot(h.astype(jnp.bfloat16), w_hh,
                                           preferred_element_type=jnp.float32)
            # PyTorch gate order i, f, g, o; H is a multiple of 128 so each
            # slice is a lane-aligned free view.
            i = jax.nn.sigmoid(gates[:, 0 * H:1 * H])
            f = jax.nn.sigmoid(gates[:, 1 * H:2 * H])
            g = jnp.tanh(gates[:, 2 * H:3 * H])
            o = jax.nn.sigmoid(gates[:, 3 * H:4 * H])
            c = f * c + i * g
            h = o * jnp.tanh(c)
        h_last.append(h)

    # last_hidden.permute(1,0,2).contiguous().view(B, 2H) == concat([h_fwd, h_bwd])
    flat = jnp.concatenate(h_last, axis=-1)                     # (B, 2H) f32
    # classifier Linear fused here; single lane-dense store of the logits slab.
    o_ref[...] = (jnp.dot(flat.astype(jnp.bfloat16), clsw_ref[...],
                          preferred_element_type=jnp.float32)
                  + clsb_ref[...])


def bilstm_classifier(feats, params):
    B, S, D = feats.shape
    H = params["w_hh_t"].shape[1]
    L = params["cls_w"].shape[1]
    Lp = ((L + LANE - 1) // LANE) * LANE                        # lane-dense logits slab

    w_ih = params["w_ih_t"].astype(jnp.bfloat16)                # (2, D, 4H)
    w_hh = params["w_hh_t"].astype(jnp.bfloat16)                # (2, H, 4H)
    bias = params["lstm_b"]                                     # (2, 1, 4H) f32
    cls_w = jnp.zeros((2 * H, Lp), jnp.bfloat16).at[:, :L].set(
        params["cls_w"].astype(jnp.bfloat16))
    cls_b = jnp.zeros((1, Lp), jnp.float32).at[:, :L].set(params["cls_b"])

    logits_p = pl.pallas_call(
        _bilstm_classifier_kernel,
        out_shape=jax.ShapeDtypeStruct((B, Lp), jnp.float32),
        in_specs=[pl.BlockSpec((B, S, D), lambda: (0, 0, 0)),
                  pl.BlockSpec((2, D, 4 * H), lambda: (0, 0, 0)),
                  pl.BlockSpec((2, H, 4 * H), lambda: (0, 0, 0)),
                  pl.BlockSpec((2, 1, 4 * H), lambda: (0, 0, 0)),
                  pl.BlockSpec((2 * H, Lp), lambda: (0, 0)),
                  pl.BlockSpec((1, Lp), lambda: (0, 0))],
        out_specs=pl.BlockSpec((B, Lp), lambda: (0, 0)),
    )(feats, w_ih, w_hh, bias, cls_w, cls_b)
    return logits_p[:, :L]                                      # (B, num_labels)


# --------------------------------------------------------------------------
def wrapper_classifier_forward(params, input_ids, token_type_ids, attention_mask):
    # input_x = feat_extractor(input_ids, token_type_ids, attention_mask)
    feats = feat_extractor(input_ids, token_type_ids, attention_mask, params)
    # dropout: identity at inference (nn.Dropout eval mode).
    # output, (last_hidden, _) = sentence_head(input_x); logits = classifier(...)
    # -> fused into one kernel (bi-LSTM last hidden + Linear).
    return bilstm_classifier(feats, params)


def init_params(key, *, vocab=100, type_vocab=2, max_pos=16, E=128, D=128, H=128, L=4):
    ks = jax.random.split(key, 10)
    s = 0.1
    return {
        # synthetic feat_extractor
        "word_emb": s * jax.random.normal(ks[0], (vocab, E), jnp.float32),
        "type_emb": s * jax.random.normal(ks[1], (type_vocab, E), jnp.float32),
        "pos_emb": s * jax.random.normal(ks[2], (max_pos, E), jnp.float32),
        "proj_w": s * jax.random.normal(ks[3], (E, D), jnp.float32),
        "proj_b": s * jax.random.normal(ks[4], (1, D), jnp.float32),
        # bidirectional LSTM (PyTorch gate order i,f,g,o), weights pre-transposed
        "w_ih_t": s * jax.random.normal(ks[5], (2, D, 4 * H), jnp.float32),
        "w_hh_t": s * jax.random.normal(ks[6], (2, H, 4 * H), jnp.float32),
        "lstm_b": s * jax.random.normal(ks[7], (2, 1, 4 * H), jnp.float32),  # b_ih + b_hh
        # classifier Linear(2H, L): stored as (2H, L) for x @ W
        "cls_w": s * jax.random.normal(ks[8], (2 * H, L), jnp.float32),
        "cls_b": s * jax.random.normal(ks[9], (1, L), jnp.float32),
    }


if __name__ == "__main__":
    B, S = 2, 8
    key = jax.random.PRNGKey(0)
    k_ids, k_typ, k_par = jax.random.split(key, 3)

    input_ids = jax.random.randint(k_ids, (B, S), 0, 100, dtype=jnp.int32)
    token_type_ids = jax.random.randint(k_typ, (B, S), 0, 2, dtype=jnp.int32)
    attention_mask = jnp.ones((B, S), dtype=jnp.int32)

    params = init_params(k_par)

    logits = jax.jit(wrapper_classifier_forward)(
        params, input_ids, token_type_ids, attention_mask)
    jax.block_until_ready(logits)
    assert logits.shape == (B, 4), logits.shape
    print("KERNEL_OK")
</pallas_src>

<mosaic_0001>
module attributes {stable_mosaic.version = 11 : i64} {
  func.func @_proj_kernel(%arg0: i32, %arg1: memref<16x128xbf16, #tpu.memory_space<vmem>>, %arg2: memref<16x1xf32, #tpu.memory_space<vmem>>, %arg3: memref<128x128xbf16, #tpu.memory_space<vmem>>, %arg4: memref<1x128xf32, #tpu.memory_space<vmem>>, %arg5: memref<16x128xf32, #tpu.memory_space<vmem>>) attributes {dimension_semantics = [#tpu.dimension_semantics<parallel>], iteration_bounds = array<i64: 1>, scalar_prefetch = 0 : i64, scratch_operands = 0 : i64, tpu.core_type = #tpu.core_type<tc>, window_params = [{transform_indices = @transform_0, window_bounds = array<i64: 16, 128>}, {transform_indices = @transform_1, window_bounds = array<i64: 16, 1>}, {pipeline_mode = #tpu.pipeline_mode<synchronous>, transform_indices = @transform_2, window_bounds = array<i64: 128, 128>}, {pipeline_mode = #tpu.pipeline_mode<synchronous>, transform_indices = @transform_3, window_bounds = array<i64: 1, 128>}, {transform_indices = @transform_4, window_bounds = array<i64: 16, 128>}]} {
    %c0 = arith.constant 0 : index
    %c0_0 = arith.constant 0 : index
    %0 = vector.load %arg1[%c0, %c0_0] : memref<16x128xbf16, #tpu.memory_space<vmem>>, vector<16x128xbf16>
    %c0_1 = arith.constant 0 : index
    %c0_2 = arith.constant 0 : index
    %1 = vector.load %arg3[%c0_1, %c0_2] : memref<128x128xbf16, #tpu.memory_space<vmem>>, vector<128x128xbf16>
    %cst = arith.constant dense<0.000000e+00> : vector<16x128xf32>
    %2 = tpu.matmul %0, %1, %cst {dimension_numbers = #tpu.dot_dimension_numbers<[1], [0], [0], [1], [0, 0, 1, 1], [], []>} : vector<16x128xbf16>, vector<128x128xbf16>, vector<16x128xf32> -> vector<16x128xf32>
    %c0_3 = arith.constant 0 : index
    %c0_4 = arith.constant 0 : index
    %3 = vector.load %arg4[%c0_3, %c0_4] : memref<1x128xf32, #tpu.memory_space<vmem>>, vector<1x128xf32>
    %4 = vector.broadcast %3 : vector<1x128xf32> to vector<16x128xf32>
    %5 = arith.addf %2, %4 : vector<16x128xf32>
    %6 = math.tanh %5 : vector<16x128xf32>
    %c0_5 = arith.constant 0 : index
    %c0_6 = arith.constant 0 : index
    %7 = vector.load %arg2[%c0_5, %c0_6] : memref<16x1xf32, #tpu.memory_space<vmem>>, vector<16x1xf32>
    %8 = vector.broadcast %7 : vector<16x1xf32> to vector<16x128xf32>
    %9 = arith.mulf %6, %8 : vector<16x128xf32>
    %c0_7 = arith.constant 0 : index
    %c0_8 = arith.constant 0 : index
    %10 = vector.load %arg5[%c0_7, %c0_8] : memref<16x128xf32, #tpu.memory_space<vmem>>, vector<16x128xf32>
    tpu.vector_store %arg5[%c0_7, %c0_8], %9 {strides = array<i32>} : memref<16x128xf32, #tpu.memory_space<vmem>>, vector<16x128xf32>,
    return
  }
  func.func @transform_0(%arg0: i32) -> (i32, i32) {
    %c0_i32 = arith.constant 0 : i32
    %c0_i32_0 = arith.constant 0 : i32
    return %arg0, %c0_i32 : i32, i32
  }
  func.func @transform_1(%arg0: i32) -> (i32, i32) {
    %c0_i32 = arith.constant 0 : i32
    %c0_i32_0 = arith.constant 0 : i32
    return %arg0, %c0_i32 : i32, i32
  }
  func.func @transform_2(%arg0: i32) -> (i32, i32) {
    %c0_i32 = arith.constant 0 : i32
    %c0_i32_0 = arith.constant 0 : i32
    %c0_i32_1 = arith.constant 0 : i32
    return %c0_i32, %c0_i32_0 : i32, i32
  }
  func.func @transform_3(%arg0: i32) -> (i32, i32) {
    %c0_i32 = arith.constant 0 : i32
    %c0_i32_0 = arith.constant 0 : i32
    %c0_i32_1 = arith.constant 0 : i32
    return %c0_i32, %c0_i32_0 : i32, i32
  }
  func.func @transform_4(%arg0: i32) -> (i32, i32) {
    %c0_i32 = arith.constant 0 : i32
    %c0_i32_0 = arith.constant 0 : i32
    return %arg0, %c0_i32 : i32, i32
  }
}

module attributes {stable_mosaic.version = 11 : i64} {
  func.func @_bilstm_classifier_kernel(%arg0: memref<2x8x128xf32, #tpu.memory_space<vmem>>, %arg1: memref<2x128x512xbf16, #tpu.memory_space<vmem>>, %arg2: memref<2x128x512xbf16, #tpu.memory_space<vmem>>, %arg3: memref<2x1x512xf32, #tpu.memory_space<vmem>>, %arg4: memref<256x128xbf16, #tpu.memory_space<vmem>>, %arg5: memref<1x128xf32, #tpu.memory_space<vmem>>, %arg6: memref<2x128xf32, #tpu.memory_space<vmem>>) attributes {dimension_semantics = [], scalar_prefetch = 0 : i64, scratch_operands = 0 : i64, tpu.core_type = #tpu.core_type<tc>} {
    %c0 = arith.constant 0 : index
    %c0_0 = arith.constant 0 : index
    %c0_1 = arith.constant 0 : index
    %0 = vector.load %arg0[%c0, %c0_0, %c0_1] : memref<2x8x128xf32, #tpu.memory_space<vmem>>, vector<2x8x128xf32>
    %1 = vector.shape_cast %0 : vector<2x8x128xf32> to vector<16x128xf32>
    %2 = arith.truncf %1 : vector<16x128xf32> to vector<16x128xbf16>
    %c0_2 = arith.constant 0 : index
    %c0_3 = arith.constant 0 : index
    %c0_4 = arith.constant 0 : index
    %3 = vector.load %arg1[%c0_2, %c0_3, %c0_4] : memref<2x128x512xbf16, #tpu.memory_space<vmem>>, vector<1x128x512xbf16>
    %4 = vector.shape_cast %3 : vector<1x128x512xbf16> to vector<128x512xbf16>
    %cst = arith.constant dense<0.000000e+00> : vector<16x512xf32>
    %5 = tpu.matmul %2, %4, %cst {dimension_numbers = #tpu.dot_dimension_numbers<[1], [0], [0], [1], [0, 0, 1, 1], [], []>} : vector<16x128xbf16>, vector<128x512xbf16>, vector<16x512xf32> -> vector<16x512xf32>
    %c0_5 = arith.constant 0 : index
    %c0_6 = arith.constant 0 : index
    %c0_7 = arith.constant 0 : index
    %6 = vector.load %arg3[%c0_5, %c0_6, %c0_7] : memref<2x1x512xf32, #tpu.memory_space<vmem>>, vector<1x1x512xf32>
    %7 = vector.shape_cast %6 : vector<1x1x512xf32> to vector<1x512xf32>
    %8 = vector.broadcast %7 : vector<1x512xf32> to vector<16x512xf32>
    %9 = arith.addf %5, %8 : vector<16x512xf32>
    %10 = vector.shape_cast %9 : vector<16x512xf32> to vector<2x8x512xf32>
    %c0_8 = arith.constant 0 : index
    %c0_9 = arith.constant 0 : index
    %c0_10 = arith.constant 0 : index
    %11 = vector.load %arg2[%c0_8, %c0_9, %c0_10] : memref<2x128x512xbf16, #tpu.memory_space<vmem>>, vector<1x128x512xbf16>
    %12 = vector.shape_cast %11 : vector<1x128x512xbf16> to vector<128x512xbf16>
    %cst_11 = arith.constant 0.000000e+00 : f32
    %13 = vector.broadcast %cst_11 : f32 to vector<2x128xf32>
    %cst_12 = arith.constant 0.000000e+00 : f32
    %14 = vector.broadcast %cst_12 : f32 to vector<2x128xf32>
    %15 = vector.extract_strided_slice %10 {offsets = [0, 0, 0], sizes = [2, 1, 512], strides = [1, 1, 1]} : vector<2x8x512xf32> to vector<2x1x512xf32>
    %16 = vector.shape_cast %15 : vector<2x1x512xf32> to vector<2x512xf32>
    %17 = arith.truncf %13 : vector<2x128xf32> to vector<2x128xbf16>
    %cst_13 = arith.constant dense<0.000000e+00> : vector<2x512xf32>
    %18 = tpu.matmul %17, %12, %cst_13 {dimension_numbers = #tpu.dot_dimension_numbers<[1], [0], [0], [1], [0, 0, 1, 1], [], []>} : vector<2x128xbf16>, vector<128x512xbf16>, vector<2x512xf32> -> vector<2x512xf32>
    %19 = arith.addf %16, %18 : vector<2x512xf32>
    %20 = vector.extract_strided_slice %19 {offsets = [0, 0], sizes = [2, 128], strides = [1, 1]} : vector<2x512xf32> to vector<2x128xf32>
    %21 = arith.negf %20 : vector<2x128xf32>
    %22 = math.exp %21 : vector<2x128xf32>
    %cst_14 = arith.constant 1.000000e+00 : f32
    %23 = vector.broadcast %cst_14 : f32 to vector<2x128xf32>
    %24 = arith.addf %23, %22 : vector<2x128xf32>
    %25 = arith.divf %23, %24 : vector<2x128xf32>
    %26 = vector.extract_strided_slice %19 {offsets = [0, 128], sizes = [2, 128], strides = [1, 1]} : vector<2x512xf32> to vector<2x128xf32>
    %27 = arith.negf %26 : vector<2x128xf32>
    %28 = math.exp %27 : vector<2x128xf32>
    %cst_15 = arith.constant 1.000000e+00 : f32
    %29 = vector.broadcast %cst_15 : f32 to vector<2x128xf32>
    %30 = arith.addf %29, %28 : vector<2x128xf32>
    %31 = arith.divf %29, %30 : vector<2x128xf32>
    %32 = vector.extract_strided_slice %19 {offsets = [0, 256], sizes = [2, 128], strides = [1, 1]} : vector<2x512xf32> to vector<2x128xf32>
    %33 = math.tanh %32 : vector<2x128xf32>
    %34 = vector.extract_strided_slice %19 {offsets = [0, 384], sizes = [2, 128], strides = [1, 1]} : vector<2x512xf32> to vector<2x128xf32>
    %35 = arith.negf %34 : vector<2x128xf32>
    %36 = math.exp %35 : vector<2x128xf32>
    %cst_16 = arith.constant 1.000000e+00 : f32
    %37 = vector.broadcast %cst_16 : f32 to vector<2x128xf32>
    %38 = arith.addf %37, %36 : vector<2x128xf32>
    %39 = arith.divf %37, %38 : vector<2x128xf32>
    %40 = arith.mulf %31, %14 : vector<2x128xf32>
    %41 = arith.mulf %25, %33 : vector<2x128xf32>
    %42 = arith.addf %40, %41 : vector<2x128xf32>
    %43 = math.tanh %42 : vector<2x128xf32>
    %44 = arith.mulf %39, %43 : vector<2x128xf32>
    %45 = vector.extract_strided_slice %10 {offsets = [0, 1, 0], sizes = [2, 1, 512], strides = [1, 1, 1]} : vector<2x8x512xf32> to vector<2x1x512xf32>
    %46 = vector.shape_cast %45 : vector<2x1x512xf32> to vector<2x512xf32>
    %47 = arith.truncf %44 : vector<2x128xf32> to vector<2x128xbf16>
    %cst_17 = arith.constant dense<0.000000e+00> : vector<2x512xf32>
    %48 = tpu.matmul %47, %12, %cst_17 {dimension_numbers = #tpu.dot_dimension_numbers<[1], [0], [0], [1], [0, 0, 1, 1], [], []>} : vector<2x128xbf16>, vector<128x512xbf16>, vector<2x512xf32> -> vector<2x512xf32>
    %49 = arith.addf %46, %48 : vector<2x512xf32>
    %50 = vector.extract_strided_slice %49 {offsets = [0, 0], sizes = [2, 128], strides = [1, 1]} : vector<2x512xf32> to vector<2x128xf32>
    %51 = arith.negf %50 : vector<2x128xf32>
    %52 = math.exp %51 : vector<2x128xf32>
    %cst_18 = arith.constant 1.000000e+00 : f32
    %53 = vector.broadcast %cst_18 : f32 to vector<2x128xf32>
    %54 = arith.addf %53, %52 : vector<2x128xf32>
    %55 = arith.divf %53, %54 : vector<2x128xf32>
    %56 = vector.extract_strided_slice %49 {offsets = [0, 128], sizes = [2, 128], strides = [1, 1]} : vector<2x512xf32> to vector<2x128xf32>
    %57 = arith.negf %56 : vector<2x128xf32>
    %58 = math.exp %57 : vector<2x128xf32>
    %cst_19 = arith.constant 1.000000e+00 : f32
    %59 = vector.broadcast %cst_19 : f32 to vector<2x128xf32>
    %60 = arith.addf %59, %58 : vector<2x128xf32>
    %61 = arith.divf %59, %60 : vector<2x128xf32>
    %62 = vector.extract_strided_slice %49 {offsets = [0, 256], sizes = [2, 128], strides = [1, 1]} : vector<2x512xf32> to vector<2x128xf32>
    %63 = math.tanh %62 : vector<2x128xf32>
    %64 = vector.extract_strided_slice %49 {offsets = [0, 384], sizes = [2, 128], strides = [1, 1]} : vector<2x512xf32> to vector<2x128xf32>
    %65 = arith.negf %64 : vector<2x128xf32>
    %66 = math.exp %65 : vector<2x128xf32>
    %cst_20 = arith.constant 1.000000e+00 : f32
    %67 = vector.broadcast %cst_20 : f32 to vector<2x128xf32>
    %68 = arith.addf %67, %66 : vector<2x128xf32>
    %69 = arith.divf %67, %68 : vector<2x128xf32>
    %70 = arith.mulf %61, %42 : vector<2x128xf32>
    %71 = arith.mulf %55, %63 : vector<2x128xf32>
    %72 = arith.addf %70, %71 : vector<2x128xf32>
    %73 = math.tanh %72 : vector<2x128xf32>
    %74 = arith.mulf %69, %73 : vector<2x128xf32>
    %75 = vector.extract_strided_slice %10 {offsets = [0, 2, 0], sizes = [2, 1, 512], strides = [1, 1, 1]} : vector<2x8x512xf32> to vector<2x1x512xf32>
    %76 = vector.shape_cast %75 : vector<2x1x512xf32> to vector<2x512xf32>
    %77 = arith.truncf %74 : vector<2x128xf32> to vector<2x128xbf16>
    %cst_21 = arith.constant dense<0.000000e+00> : vector<2x512xf32>
    %78 = tpu.matmul %77, %12, %cst_21 {dimension_numbers = #tpu.dot_dimension_numbers<[1], [0], [0], [1], [0, 0, 1, 1], [], []>} : vector<2x128xbf16>, vector<128x512xbf16>, vector<2x512xf32> -> vector<2x512xf32>
    %79 = arith.addf %76, %78 : vector<2x512xf32>
    %80 = vector.extract_strided_slice %79 {offsets = [0, 0], sizes = [2, 128], strides = [1, 1]} : vector<2x512xf32> to vector<2x128xf32>
    %81 = arith.negf %80 : vector<2x128xf32>
    %82 = math.exp %81 : vector<2x128xf32>
    %cst_22 = arith.constant 1.000000e+00 : f32
    %83 = vector.broadcast %cst_22 : f32 to vector<2x128xf32>
    %84 = arith.addf %83, %82 : vector<2x128xf32>
    %85 = arith.divf %83, %84 : vector<2x128xf32>
    %86 = vector.extract_strided_slice %79 {offsets = [0, 128], sizes = [2, 128], strides = [1, 1]} : vector<2x512xf32> to vector<2x128xf32>
    %87 = arith.negf %86 : vector<2x128xf32>
    %88 = math.exp %87 : vector<2x128xf32>
    %cst_23 = arith.constant 1.000000e+00 : f32
    %89 = vector.broadcast %cst_23 : f32 to vector<2x128xf32>
    %90 = arith.addf %89, %88 : vector<2x128xf32>
    %91 = arith.divf %89, %90 : vector<2x128xf32>
    %92 = vector.extract_strided_slice %79 {offsets = [0, 256], sizes = [2, 128], strides = [1, 1]} : vector<2x512xf32> to vector<2x128xf32>
    %93 = math.tanh %92 : vector<2x128xf32>
    %94 = vector.extract_strided_slice %79 {offsets = [0, 384], sizes = [2, 128], strides = [1, 1]} : vector<2x512xf32> to vector<2x128xf32>
    %95 = arith.negf %94 : vector<2x128xf32>
    %96 = math.exp %95 : vector<2x128xf32>
    %cst_24 = arith.constant 1.000000e+00 : f32
    %97 = vector.broadcast %cst_24 : f32 to vector<2x128xf32>
    %98 = arith.addf %97, %96 : vector<2x128xf32>
    %99 = arith.divf %97, %98 : vector<2x128xf32>
    %100 = arith.mulf %91, %72 : vector<2x128xf32>
    %101 = arith.mulf %85, %93 : vector<2x128xf32>
    %102 = arith.addf %100, %101 : vector<2x128xf32>
    %103 = math.tanh %102 : vector<2x128xf32>
    %104 = arith.mulf %99, %103 : vector<2x128xf32>
    %105 = vector.extract_strided_slice %10 {offsets = [0, 3, 0], sizes = [2, 1, 512], strides = [1, 1, 1]} : vector<2x8x512xf32> to vector<2x1x512xf32>
    %106 = vector.shape_cast %105 : vector<2x1x512xf32> to vector<2x512xf32>
    %107 = arith.truncf %104 : vector<2x128xf32> to vector<2x128xbf16>
    %cst_25 = arith.constant dense<0.000000e+00> : vector<2x512xf32>
    %108 = tpu.matmul %107, %12, %cst_25 {dimension_numbers = #tpu.dot_dimension_numbers<[1], [0], [0], [1], [0, 0, 1, 1], [], []>} : vector<2x128xbf16>, vector<128x512xbf16>, vector<2x512xf32> -> vector<2x512xf32>
    %109 = arith.addf %106, %108 : vector<2x512xf32>
    %110 = vector.extract_strided_slice %109 {offsets = [0, 0], sizes = [2, 128], strides = [1, 1]} : vector<2x512xf32> to vector<2x128xf32>
    %111 = arith.negf %110 : vector<2x128xf32>
    %112 = math.exp %111 : vector<2x128xf32>
    %cst_26 = arith.constant 1.000000e+00 : f32
    %113 = vector.broadcast %cst_26 : f32 to vector<2x128xf32>
    %114 = arith.addf %113, %112 : vector<2x128xf32>
    %115 = arith.divf %113, %114 : vector<2x128xf32>
    %116 = vector.extract_strided_slice %109 {offsets = [0, 128], sizes = [2, 128], strides = [1, 1]} : vector<2x512xf32> to vector<2x128xf32>
    %117 = arith.negf %116 : vector<2x128xf32>
    %118 = math.exp %117 : vector<2x128xf32>
    %cst_27 = arith.constant 1.000000e+00 : f32
    %119 = vector.broadcast %cst_27 : f32 to vector<2x128xf32>
    %120 = arith.addf %119, %118 : vector<2x128xf32>
    %121 = arith.divf %119, %120 : vector<2x128xf32>
    %122 = vector.extract_strided_slice %109 {offsets = [0, 256], sizes = [2, 128], strides = [1, 1]} : vector<2x512xf32> to vector<2x128xf32>
    %123 = math.tanh %122 : vector<2x128xf32>
    %124 = vector.extract_strided_slice %109 {offsets = [0, 384], sizes = [2, 128], strides = [1, 1]} : vector<2x512xf32> to vector<2x128xf32>
    %125 = arith.negf %124 : vector<2x128xf32>
    %126 = math.exp %125 : vector<2x128xf32>
    %cst_28 = arith.constant 1.000000e+00 : f32
    %127 = vector.broadcast %cst_28 : f32 to vector<2x128xf32>
    %128 = arith.addf %127, %126 : vector<2x128xf32>
    %129 = arith.divf %127, %128 : vector<2x128xf32>
    %130 = arith.mulf %121, %102 : vector<2x128xf32>
    %131 = arith.mulf %115, %123 : vector<2x128xf32>
    %132 = arith.addf %130, %131 : vector<2x128xf32>
    %133 = math.tanh %132 : vector<2x128xf32>
    %134 = arith.mulf %129, %133 : vector<2x128xf32>
    %135 = vector.extract_strided_slice %10 {offsets = [0, 4, 0], sizes = [2, 1, 512], strides = [1, 1, 1]} : vector<2x8x512xf32> to vector<2x1x512xf32>
    %136 = vector.shape_cast %135 : vector<2x1x512xf32> to vector<2x512xf32>
    %137 = arith.truncf %134 : vector<2x128xf32> to vector<2x128xbf16>
    %cst_29 = arith.constant dense<0.000000e+00> : vector<2x512xf32>
    %138 = tpu.matmul %137, %12, %cst_29 {dimension_numbers = #tpu.dot_dimension_numbers<[1], [0], [0], [1], [0, 0, 1, 1], [], []>} : vector<2x128xbf16>, vector<128x512xbf16>, vector<2x512xf32> -> vector<2x512xf32>
    %139 = arith.addf %136, %138 : vector<2x512xf32>
    %140 = vector.extract_strided_slice %139 {offsets = [0, 0], sizes = [2, 128], strides = [1, 1]} : vector<2x512xf32> to vector<2x128xf32>
    %141 = arith.negf %140 : vector<2x128xf32>
    %142 = math.exp %141 : vector<2x128xf32>
    %cst_30 = arith.constant 1.000000e+00 : f32
    %143 = vector.broadcast %cst_30 : f32 to vector<2x128xf32>
    %144 = arith.addf %143, %142 : vector<2x128xf32>
    %145 = arith.divf %143, %144 : vector<2x128xf32>
    %146 = vector.extract_strided_slice %139 {offsets = [0, 128], sizes = [2, 128], strides = [1, 1]} : vector<2x512xf32> to vector<2x128xf32>
    %147 = arith.negf %146 : vector<2x128xf32>
    %148 = math.exp %147 : vector<2x128xf32>
    %cst_31 = arith.constant 1.000000e+00 : f32
    %149 = vector.broadcast %cst_31 : f32 to vector<2x128xf32>
    %150 = arith.addf %149, %148 : vector<2x128xf32>
    %151 = arith.divf %149, %150 : vector<2x128xf32>
    %152 = vector.extract_strided_slice %139 {offsets = [0, 256], sizes = [2, 128], strides = [1, 1]} : vector<2x512xf32> to vector<2x128xf32>
    %153 = math.tanh %152 : vector<2x128xf32>
    %154 = vector.extract_strided_slice %139 {offsets = [0, 384], sizes = [2, 128], strides = [1, 1]} : vector<2x512xf32> to vector<2x128xf32>
    %155 = arith.negf %154 : vector<2x128xf32>
    %156 = math.exp %155 : vector<2x128xf32>
    %cst_32 = arith.constant 1.000000e+00 : f32
    %157 = vector.broadcast %cst_32 : f32 to vector<2x128xf32>
    %158 = arith.addf %157, %156 : vector<2x128xf32>
    %159 = arith.divf %157, %158 : vector<2x128xf32>
    %160 = arith.mulf %151, %132 : vector<2x128xf32>
    %161 = arith.mulf %145, %153 : vector<2x128xf32>
    %162 = arith.addf %160, %161 : vector<2x128xf32>
    %163 = math.tanh %162 : vector<2x128xf32>
    %164 = arith.mulf %159, %163 : vector<2x128xf32>
    %165 = vector.extract_strided_slice %10 {offsets = [0, 5, 0], sizes = [2, 1, 512], strides = [1, 1, 1]} : vector<2x8x512xf32> to vector<2x1x512xf32>
    %166 = vector.shape_cast %165 : vector<2x1x512xf32> to vector<2x512xf32>
    %167 = arith.truncf %164 : vector<2x128xf32> to vector<2x128xbf16>
    %cst_33 = arith.constant dense<0.000000e+00> : vector<2x512xf32>
    %168 = tpu.matmul %167, %12, %cst_33 {dimension_numbers = #tpu.dot_dimension_numbers<[1], [0], [0], [1], [0, 0, 1, 1], [], []>} : vector<2x128xbf16>, vector<128x512xbf16>, vector<2x512xf32> -> vector<2x512xf32>
    %169 = arith.addf %166, %168 : vector<2x512xf32>
    %170 = vector.extract_strided_slice %169 {offsets = [0, 0], sizes = [2, 128], strides = [1, 1]} : vector<2x512xf32> to vector<2x128xf32>
    %171 = arith.negf %170 : vector<2x128xf32>
    %172 = math.exp %171 : vector<2x128xf32>
    %cst_34 = arith.constant 1.000000e+00 : f32
    %173 = vector.broadcast %cst_34 : f32 to vector<2x128xf32>
    %174 = arith.addf %173, %172 : vector<2x128xf32>
    %175 = arith.divf %173, %174 : vector<2x128xf32>
    %176 = vector.extract_strided_slice %169 {offsets = [0, 128], sizes = [2, 128], strides = [1, 1]} : vector<2x512xf32> to vector<2x128xf32>
    %177 = arith.negf %176 : vector<2x128xf32>
    %178 = math.exp %177 : vector<2x128xf32>
    %cst_35 = arith.constant 1.000000e+00 : f32
    %179 = vector.broadcast %cst_35 : f32 to vector<2x128xf32>
    %180 = arith.addf %179, %178 : vector<2x128xf32>
    %181 = arith.divf %179, %180 : vector<2x128xf32>
    %182 = vector.extract_strided_slice %169 {offsets = [0, 256], sizes = [2, 128], strides = [1, 1]} : vector<2x512xf32> to vector<2x128xf32>
    %183 = math.tanh %182 : vector<2x128xf32>
    %184 = vector.extract_strided_slice %169 {offsets = [0, 384], sizes = [2, 128], strides = [1, 1]} : vector<2x512xf32> to vector<2x128xf32>
    %185 = arith.negf %184 : vector<2x128xf32>
    %186 = math.exp %185 : vector<2x128xf32>
    %cst_36 = arith.constant 1.000000e+00 : f32
    %187 = vector.broadcast %cst_36 : f32 to vector<2x128xf32>
    %188 = arith.addf %187, %186 : vector<2x128xf32>
    %189 = arith.divf %187, %188 : vector<2x128xf32>
    %190 = arith.mulf %181, %162 : vector<2x128xf32>
    %191 = arith.mulf %175, %183 : vector<2x128xf32>
    %192 = arith.addf %190, %191 : vector<2x128xf32>
    %193 = math.tanh %192 : vector<2x128xf32>
    %194 = arith.mulf %189, %193 : vector<2x128xf32>
    %195 = vector.extract_strided_slice %10 {offsets = [0, 6, 0], sizes = [2, 1, 512], strides = [1, 1, 1]} : vector<2x8x512xf32> to vector<2x1x512xf32>
    %196 = vector.shape_cast %195 : vector<2x1x512xf32> to vector<2x512xf32>
    %197 = arith.truncf %194 : vector<2x128xf32> to vector<2x128xbf16>
    %cst_37 = arith.constant dense<0.000000e+00> : vector<2x512xf32>
    %198 = tpu.matmul %197, %12, %cst_37 {dimension_numbers = #tpu.dot_dimension_numbers<[1], [0], [0], [1], [0, 0, 1, 1], [], []>} : vector<2x128xbf16>, vector<128x512xbf16>, vector<2x512xf32> -> vector<2x512xf32>
    %199 = arith.addf %196, %198 : vector<2x512xf32>
    %200 = vector.extract_strided_slice %199 {offsets = [0, 0], sizes = [2, 128], strides = [1, 1]} : vector<2x512xf32> to vector<2x128xf32>
    %201 = arith.negf %200 : vector<2x128xf32>
    %202 = math.exp %201 : vector<2x128xf32>
    %cst_38 = arith.constant 1.000000e+00 : f32
    %203 = vector.broadcast %cst_38 : f32 to vector<2x128xf32>
    %204 = arith.addf %203, %202 : vector<2x128xf32>
    %205 = arith.divf %203, %204 : vector<2x128xf32>
    %206 = vector.extract_strided_slice %199 {offsets = [0, 128], sizes = [2, 128], strides = [1, 1]} : vector<2x512xf32> to vector<2x128xf32>
    %207 = arith.negf %206 : vector<2x128xf32>
    %208 = math.exp %207 : vector<2x128xf32>
    %cst_39 = arith.constant 1.000000e+00 : f32
    %209 = vector.broadcast %cst_39 : f32 to vector<2x128xf32>
    %210 = arith.addf %209, %208 : vector<2x128xf32>
    %211 = arith.divf %209, %210 : vector<2x128xf32>
    %212 = vector.extract_strided_slice %199 {offsets = [0, 256], sizes = [2, 128], strides = [1, 1]} : vector<2x512xf32> to vector<2x128xf32>
    %213 = math.tanh %212 : vector<2x128xf32>
    %214 = vector.extract_strided_slice %199 {offsets = [0, 384], sizes = [2, 128], strides = [1, 1]} : vector<2x512xf32> to vector<2x128xf32>
    %215 = arith.negf %214 : vector<2x128xf32>
    %216 = math.exp %215 : vector<2x128xf32>
    %cst_40 = arith.constant 1.000000e+00 : f32
    %217 = vector.broadcast %cst_40 : f32 to vector<2x128xf32>
    %218 = arith.addf %217, %216 : vector<2x128xf32>
    %219 = arith.divf %217, %218 : vector<2x128xf32>
    %220 = arith.mulf %211, %192 : vector<2x128xf32>
    %221 = arith.mulf %205, %213 : vector<2x128xf32>
    %222 = arith.addf %220, %221 : vector<2x128xf32>
    %223 = math.tanh %222 : vector<2x128xf32>
    %224 = arith.mulf %219, %223 : vector<2x128xf32>
    %225 = vector.extract_strided_slice %10 {offsets = [0, 7, 0], sizes = [2, 1, 512], strides = [1, 1, 1]} : vector<2x8x512xf32> to vector<2x1x512xf32>
    %226 = vector.shape_cast %225 : vector<2x1x512xf32> to vector<2x512xf32>
    %227 = arith.truncf %224 : vector<2x128xf32> to vector<2x128xbf16>
    %cst_41 = arith.constant dense<0.000000e+00> : vector<2x512xf32>
    %228 = tpu.matmul %227, %12, %cst_41 {dimension_numbers = #tpu.dot_dimension_numbers<[1], [0], [0], [1], [0, 0, 1, 1], [], []>} : vector<2x128xbf16>, vector<128x512xbf16>, vector<2x512xf32> -> vector<2x512xf32>
    %229 = arith.addf %226, %228 : vector<2x512xf32>
    %230 = vector.extract_strided_slice %229 {offsets = [0, 0], sizes = [2, 128], strides = [1, 1]} : vector<2x512xf32> to vector<2x128xf32>
    %231 = arith.negf %230 : vector<2x128xf32>
    %232 = math.exp %231 : vector<2x128xf32>
    %cst_42 = arith.constant 1.000000e+00 : f32
    %233 = vector.broadcast %cst_42 : f32 to vector<2x128xf32>
    %234 = arith.addf %233, %232 : vector<2x128xf32>
    %235 = arith.divf %233, %234 : vector<2x128xf32>
    %236 = vector.extract_strided_slice %229 {offsets = [0, 128], sizes = [2, 128], strides = [1, 1]} : vector<2x512xf32> to vector<2x128xf32>
    %237 = arith.negf %236 : vector<2x128xf32>
    %238 = math.exp %237 : vector<2x128xf32>
    %cst_43 = arith.constant 1.000000e+00 : f32
    %239 = vector.broadcast %cst_43 : f32 to vector<2x128xf32>
    %240 = arith.addf %239, %238 : vector<2x128xf32>
    %241 = arith.divf %239, %240 : vector<2x128xf32>
    %242 = vector.extract_strided_slice %229 {offsets = [0, 256], sizes = [2, 128], strides = [1, 1]} : vector<2x512xf32> to vector<2x128xf32>
    %243 = math.tanh %242 : vector<2x128xf32>
    %244 = vector.extract_strided_slice %229 {offsets = [0, 384], sizes = [2, 128], strides = [1, 1]} : vector<2x512xf32> to vector<2x128xf32>
    %245 = arith.negf %244 : vector<2x128xf32>
    %246 = math.exp %245 : vector<2x128xf32>
    %cst_44 = arith.constant 1.000000e+00 : f32
    %247 = vector.broadcast %cst_44 : f32 to vector<2x128xf32>
    %248 = arith.addf %247, %246 : vector<2x128xf32>
    %249 = arith.divf %247, %248 : vector<2x128xf32>
    %250 = arith.mulf %241, %222 : vector<2x128xf32>
    %251 = arith.mulf %235, %243 : vector<2x128xf32>
    %252 = arith.addf %250, %251 : vector<2x128xf32>
    %253 = math.tanh %252 : vector<2x128xf32>
    %254 = arith.mulf %249, %253 : vector<2x128xf32>
    %c1 = arith.constant 1 : index
    %c0_45 = arith.constant 0 : index
    %c0_46 = arith.constant 0 : index
    %255 = vector.load %arg1[%c1, %c0_45, %c0_46] : memref<2x128x512xbf16, #tpu.memory_space<vmem>>, vector<1x128x512xbf16>
    %256 = vector.shape_cast %255 : vector<1x128x512xbf16> to vector<128x512xbf16>
    %cst_47 = arith.constant dense<0.000000e+00> : vector<16x512xf32>
    %257 = tpu.matmul %2, %256, %cst_47 {dimension_numbers = #tpu.dot_dimension_numbers<[1], [0], [0], [1], [0, 0, 1, 1], [], []>} : vector<16x128xbf16>, vector<128x512xbf16>, vector<16x512xf32> -> vector<16x512xf32>
    %c1_48 = arith.constant 1 : index
    %c0_49 = arith.constant 0 : index
    %c0_50 = arith.constant 0 : index
    %258 = vector.load %arg3[%c1_48, %c0_49, %c0_50] : memref<2x1x512xf32, #tpu.memory_space<vmem>>, vector<1x1x512xf32>
    %259 = vector.shape_cast %258 : vector<1x1x512xf32> to vector<1x512xf32>
    %260 = vector.broadcast %259 : vector<1x512xf32> to vector<16x512xf32>
    %261 = arith.addf %257, %260 : vector<16x512xf32>
    %262 = vector.shape_cast %261 : vector<16x512xf32> to vector<2x8x512xf32>
    %c1_51 = arith.constant 1 : index
    %c0_52 = arith.constant 0 : index
    %c0_53 = arith.constant 0 : index
    %263 = vector.load %arg2[%c1_51, %c0_52, %c0_53] : memref<2x128x512xbf16, #tpu.memory_space<vmem>>, vector<1x128x512xbf16>
    %264 = vector.shape_cast %263 : vector<1x128x512xbf16> to vector<128x512xbf16>
    %cst_54 = arith.constant 0.000000e+00 : f32
    %265 = vector.broadcast %cst_54 : f32 to vector<2x128xf32>
    %cst_55 = arith.constant 0.000000e+00 : f32
    %266 = vector.broadcast %cst_55 : f32 to vector<2x128xf32>
    %267 = vector.extract_strided_slice %262 {offsets = [0, 7, 0], sizes = [2, 1, 512], strides = [1, 1, 1]} : vector<2x8x512xf32> to vector<2x1x512xf32>
    %268 = vector.shape_cast %267 : vector<2x1x512xf32> to vector<2x512xf32>
    %269 = arith.truncf %265 : vector<2x128xf32> to vector<2x128xbf16>
    %cst_56 = arith.constant dense<0.000000e+00> : vector<2x512xf32>
    %270 = tpu.matmul %269, %264, %cst_56 {dimension_numbers = #tpu.dot_dimension_numbers<[1], [0], [0], [1], [0, 0, 1, 1], [], []>} : vector<2x128xbf16>, vector<128x512xbf16>, vector<2x512xf32> -> vector<2x512xf32>
    %271 = arith.addf %268, %270 : vector<2x512xf32>
    %272 = vector.extract_strided_slice %271 {offsets = [0, 0], sizes = [2, 128], strides = [1, 1]} : vector<2x512xf32> to vector<2x128xf32>
    %273 = arith.negf %272 : vector<2x128xf32>
    %274 = math.exp %273 : vector<2x128xf32>
    %cst_57 = arith.constant 1.000000e+00 : f32
    %275 = vector.broadcast %cst_57 : f32 to vector<2x128xf32>
    %276 = arith.addf %275, %274 : vector<2x128xf32>
    %277 = arith.divf %275, %276 : vector<2x128xf32>
    %278 = vector.extract_strided_slice %271 {offsets = [0, 128], sizes = [2, 128], strides = [1, 1]} : vector<2x512xf32> to vector<2x128xf32>
    %279 = arith.negf %278 : vector<2x128xf32>
    %280 = math.exp %279 : vector<2x128xf32>
    %cst_58 = arith.constant 1.000000e+00 : f32
    %281 = vector.broadcast %cst_58 : f32 to vector<2x128xf32>
    %282 = arith.addf %281, %280 : vector<2x128xf32>
    %283 = arith.divf %281, %282 : vector<2x128xf32>
    %284 = vector.extract_strided_slice %271 {offsets = [0, 256], sizes = [2, 128], strides = [1, 1]} : vector<2x512xf32> to vector<2x128xf32>
    %285 = math.tanh %284 : vector<2x128xf32>
    %286 = vector.extract_strided_slice %271 {offsets = [0, 384], sizes = [2, 128], strides = [1, 1]} : vector<2x512xf32> to vector<2x128xf32>
    %287 = arith.negf %286 : vector<2x128xf32>
    %288 = math.exp %287 : vector<2x128xf32>
    %cst_59 = arith.constant 1.000000e+00 : f32
    %289 = vector.broadcast %cst_59 : f32 to vector<2x128xf32>
    %290 = arith.addf %289, %288 : vector<2x128xf32>
    %291 = arith.divf %289, %290 : vector<2x128xf32>
    %292 = arith.mulf %283, %266 : vector<2x128xf32>
    %293 = arith.mulf %277, %285 : vector<2x128xf32>
    %294 = arith.addf %292, %293 : vector<2x128xf32>
    %295 = math.tanh %294 : vector<2x128xf32>
    %296 = arith.mulf %291, %295 : vector<2x128xf32>
    %297 = vector.extract_strided_slice %262 {offsets = [0, 6, 0], sizes = [2, 1, 512], strides = [1, 1, 1]} : vector<2x8x512xf32> to vector<2x1x512xf32>
    %298 = vector.shape_cast %297 : vector<2x1x512xf32> to vector<2x512xf32>
    %299 = arith.truncf %296 : vector<2x128xf32> to vector<2x128xbf16>
    %cst_60 = arith.constant dense<0.000000e+00> : vector<2x512xf32>
    %300 = tpu.matmul %299, %264, %cst_60 {dimension_numbers = #tpu.dot_dimension_numbers<[1], [0], [0], [1], [0, 0, 1, 1], [], []>} : vector<2x128xbf16>, vector<128x512xbf16>, vector<2x512xf32> -> vector<2x512xf32>
    %301 = arith.addf %298, %300 : vector<2x512xf32>
    %302 = vector.extract_strided_slice %301 {offsets = [0, 0], sizes = [2, 128], strides = [1, 1]} : vector<2x512xf32> to vector<2x128xf32>
    %303 = arith.negf %302 : vector<2x128xf32>
    %304 = math.exp %303 : vector<2x128xf32>
    %cst_61 = arith.constant 1.000000e+00 : f32
    %305 = vector.broadcast %cst_61 : f32 to vector<2x128xf32>
    %306 = arith.addf %305, %304 : vector<2x128xf32>
    %307 = arith.divf %305, %306 : vector<2x128xf32>
    %308 = vector.extract_strided_slice %301 {offsets = [0, 128], sizes = [2, 128], strides = [1, 1]} : vector<2x512xf32> to vector<2x128xf32>
    %309 = arith.negf %308 : vector<2x128xf32>
    %310 = math.exp %309 : vector<2x128xf32>
    %cst_62 = arith.constant 1.000000e+00 : f32
    %311 = vector.broadcast %cst_62 : f32 to vector<2x128xf32>
    %312 = arith.addf %311, %310 : vector<2x128xf32>
    %313 = arith.divf %311, %312 : vector<2x128xf32>
    %314 = vector.extract_strided_slice %301 {offsets = [0, 256], sizes = [2, 128], strides = [1, 1]} : vector<2x512xf32> to vector<2x128xf32>
    %315 = math.tanh %314 : vector<2x128xf32>
    %316 = vector.extract_strided_slice %301 {offsets = [0, 384], sizes = [2, 128], strides = [1, 1]} : vector<2x512xf32> to vector<2x128xf32>
    %317 = arith.negf %316 : vector<2x128xf32>
    %318 = math.exp %317 : vector<2x128xf32>
    %cst_63 = arith.constant 1.000000e+00 : f32
    %319 = vector.broadcast %cst_63 : f32 to vector<2x128xf32>
    %320 = arith.addf %319, %318 : vector<2x128xf32>
    %321 = arith.divf %319, %320 : vector<2x128xf32>
    %322 = arith.mulf %313, %294 : vector<2x128xf32>
    %323 = arith.mulf %307, %315 : vector<2x128xf32>
    %324 = arith.addf %322, %323 : vector<2x128xf32>
    %325 = math.tanh %324 : vector<2x128xf32>
    %326 = arith.mulf %321, %325 : vector<2x128xf32>
    %327 = vector.extract_strided_slice %262 {offsets = [0, 5, 0], sizes = [2, 1, 512], strides = [1, 1, 1]} : vector<2x8x512xf32> to vector<2x1x512xf32>
    %328 = vector.shape_cast %327 : vector<2x1x512xf32> to vector<2x512xf32>
    %329 = arith.truncf %326 : vector<2x128xf32> to vector<2x128xbf16>
    %cst_64 = arith.constant dense<0.000000e+00> : vector<2x512xf32>
    %330 = tpu.matmul %329, %264, %cst_64 {dimension_numbers = #tpu.dot_dimension_numbers<[1], [0], [0], [1], [0, 0, 1, 1], [], []>} : vector<2x128xbf16>, vector<128x512xbf16>, vector<2x512xf32> -> vector<2x512xf32>
    %331 = arith.addf %328, %330 : vector<2x512xf32>
    %332 = vector.extract_strided_slice %331 {offsets = [0, 0], sizes = [2, 128], strides = [1, 1]} : vector<2x512xf32> to vector<2x128xf32>
    %333 = arith.negf %332 : vector<2x128xf32>
    %334 = math.exp %333 : vector<2x128xf32>
    %cst_65 = arith.constant 1.000000e+00 : f32
    %335 = vector.broadcast %cst_65 : f32 to vector<2x128xf32>
    %336 = arith.addf %335, %334 : vector<2x128xf32>
    %337 = arith.divf %335, %336 : vector<2x128xf32>
    %338 = vector.extract_strided_slice %331 {offsets = [0, 128], sizes = [2, 128], strides = [1, 1]} : vector<2x512xf32> to vector<2x128xf32>
    %339 = arith.negf %338 : vector<2x128xf32>
    %340 = math.exp %339 : vector<2x128xf32>
    %cst_66 = arith.constant 1.000000e+00 : f32
    %341 = vector.broadcast %cst_66 : f32 to vector<2x128xf32>
    %342 = arith.addf %341, %340 : vector<2x128xf32>
    %343 = arith.divf %341, %342 : vector<2x128xf32>
    %344 = vector.extract_strided_slice %331 {offsets = [0, 256], sizes = [2, 128], strides = [1, 1]} : vector<2x512xf32> to vector<2x128xf32>
    %345 = math.tanh %344 : vector<2x128xf32>
    %346 = vector.extract_strided_slice %331 {offsets = [0, 384], sizes = [2, 128], strides = [1, 1]} : vector<2x512xf32> to vector<2x128xf32>
    %347 = arith.negf %346 : vector<2x128xf32>
    %348 = math.exp %347 : vector<2x128xf32>
    %cst_67 = arith.constant 1.000000e+00 : f32
    %349 = vector.broadcast %cst_67 : f32 to vector<2x128xf32>
    %350 = arith.addf %349, %348 : vector<2x128xf32>
    %351 = arith.divf %349, %350 : vector<2x128xf32>
    %352 = arith.mulf %343, %324 : vector<2x128xf32>
    %353 = arith.mulf %337, %345 : vector<2x128xf32>
    %354 = arith.addf %352, %353 : vector<2x128xf32>
    %355 = math.tanh %354 : vector<2x128xf32>
    %356 = arith.mulf %351, %355 : vector<2x128xf32>
    %357 = vector.extract_strided_slice %262 {offsets = [0, 4, 0], sizes = [2, 1, 512], strides = [1, 1, 1]} : vector<2x8x512xf32> to vector<2x1x512xf32>
    %358 = vector.shape_cast %357 : vector<2x1x512xf32> to vector<2x512xf32>
    %359 = arith.truncf %356 : vector<2x128xf32> to vector<2x128xbf16>
    %cst_68 = arith.constant dense<0.000000e+00> : vector<2x512xf32>
    %360 = tpu.matmul %359, %264, %cst_68 {dimension_numbers = #tpu.dot_dimension_numbers<[1], [0], [0], [1], [0, 0, 1, 1], [], []>} : vector<2x128xbf16>, vector<128x512xbf16>, vector<2x512xf32> -> vector<2x512xf32>
    %361 = arith.addf %358, %360 : vector<2x512xf32>
    %362 = vector.extract_strided_slice %361 {offsets = [0, 0], sizes = [2, 128], strides = [1, 1]} : vector<2x512xf32> to vector<2x128xf32>
    %363 = arith.negf %362 : vector<2x128xf32>
    %364 = math.exp %363 : vector<2x128xf32>
    %cst_69 = arith.constant 1.000000e+00 : f32
    %365 = vector.broadcast %cst_69 : f32 to vector<2x128xf32>
    %366 = arith.addf %365, %364 : vector<2x128xf32>
    %367 = arith.divf %365, %366 : vector<2x128xf32>
    %368 = vector.extract_strided_slice %361 {offsets = [0, 128], sizes = [2, 128], strides = [1, 1]} : vector<2x512xf32> to vector<2x128xf32>
    %369 = arith.negf %368 : vector<2x128xf32>
    %370 = math.exp %369 : vector<2x128xf32>
    %cst_70 = arith.constant 1.000000e+00 : f32
    %371 = vector.broadcast %cst_70 : f32 to vector<2x128xf32>
    %372 = arith.addf %371, %370 : vector<2x128xf32>
    %373 = arith.divf %371, %372 : vector<2x128xf32>
    %374 = vector.extract_strided_slice %361 {offsets = [0, 256], sizes = [2, 128], strides = [1, 1]} : vector<2x512xf32> to vector<2x128xf32>
    %375 = math.tanh %374 : vector<2x128xf32>
    %376 = vector.extract_strided_slice %361 {offsets = [0, 384], sizes = [2, 128], strides = [1, 1]} : vector<2x512xf32> to vector<2x128xf32>
    %377 = arith.negf %376 : vector<2x128xf32>
    %378 = math.exp %377 : vector<2x128xf32>
    %cst_71 = arith.constant 1.000000e+00 : f32
    %379 = vector.broadcast %cst_71 : f32 to vector<2x128xf32>
    %380 = arith.addf %379, %378 : vector<2x128xf32>
    %381 = arith.divf %379, %380 : vector<2x128xf32>
    %382 = arith.mulf %373, %354 : vector<2x128xf32>
    %383 = arith.mulf %367, %375 : vector<2x128xf32>
    %384 = arith.addf %382, %383 : vector<2x128xf32>
    %385 = math.tanh %384 : vector<2x128xf32>
    %386 = arith.mulf %381, %385 : vector<2x128xf32>
    %387 = vector.extract_strided_slice %262 {offsets = [0, 3, 0], sizes = [2, 1, 512], strides = [1, 1, 1]} : vector<2x8x512xf32> to vector<2x1x512xf32>
    %388 = vector.shape_cast %387 : vector<2x1x512xf32> to vector<2x512xf32>
    %389 = arith.truncf %386 : vector<2x128xf32> to vector<2x128xbf16>
    %cst_72 = arith.constant dense<0.000000e+00> : vector<2x512xf32>
    %390 = tpu.matmul %389, %264, %cst_72 {dimension_numbers = #tpu.dot_dimension_numbers<[1], [0], [0], [1], [0, 0, 1, 1], [], []>} : vector<2x128xbf16>, vector<128x512xbf16>, vector<2x512xf32> -> vector<2x512xf32>
    %391 = arith.addf %388, %390 : vector<2x512xf32>
    %392 = vector.extract_strided_slice %391 {offsets = [0, 0], sizes = [2, 128], strides = [1, 1]} : vector<2x512xf32> to vector<2x128xf32>
    %393 = arith.negf %392 : vector<2x128xf32>
    %394 = math.exp %393 : vector<2x128xf32>
    %cst_73 = arith.constant 1.000000e+00 : f32
    %395 = vector.broadcast %cst_73 : f32 to vector<2x128xf32>
    %396 = arith.addf %395, %394 : vector<2x128xf32>
    %397 = arith.divf %395, %396 : vector<2x128xf32>
    %398 = vector.extract_strided_slice %391 {offsets = [0, 128], sizes = [2, 128], strides = [1, 1]} : vector<2x512xf32> to vector<2x128xf32>
    %399 = arith.negf %398 : vector<2x128xf32>
    %400 = math.exp %399 : vector<2x128xf32>
    %cst_74 = arith.constant 1.000000e+00 : f32
    %401 = vector.broadcast %cst_74 : f32 to vector<2x128xf32>
    %402 = arith.addf %401, %400 : vector<2x128xf32>
    %403 = arith.divf %401, %402 : vector<2x128xf32>
    %404 = vector.extract_strided_slice %391 {offsets = [0, 256], sizes = [2, 128], strides = [1, 1]} : vector<2x512xf32> to vector<2x128xf32>
    %405 = math.tanh %404 : vector<2x128xf32>
    %406 = vector.extract_strided_slice %391 {offsets = [0, 384], sizes = [2, 128], strides = [1, 1]} : vector<2x512xf32> to vector<2x128xf32>
    %407 = arith.negf %406 : vector<2x128xf32>
    %408 = math.exp %407 : vector<2x128xf32>
    %cst_75 = arith.constant 1.000000e+00 : f32
    %409 = vector.broadcast %cst_75 : f32 to vector<2x128xf32>
    %410 = arith.addf %409, %408 : vector<2x128xf32>
    %411 = arith.divf %409, %410 : vector<2x128xf32>
    %412 = arith.mulf %403, %384 : vector<2x128xf32>
    %413 = arith.mulf %397, %405 : vector<2x128xf32>
    %414 = arith.addf %412, %413 : vector<2x128xf32>
    %415 = math.tanh %414 : vector<2x128xf32>
    %416 = arith.mulf %411, %415 : vector<2x128xf32>
    %417 = vector.extract_strided_slice %262 {offsets = [0, 2, 0], sizes = [2, 1, 512], strides = [1, 1, 1]} : vector<2x8x512xf32> to vector<2x1x512xf32>
    %418 = vector.shape_cast %417 : vector<2x1x512xf32> to vector<2x512xf32>
    %419 = arith.truncf %416 : vector<2x128xf32> to vector<2x128xbf16>
    %cst_76 = arith.constant dense<0.000000e+00> : vector<2x512xf32>
    %420 = tpu.matmul %419, %264, %cst_76 {dimension_numbers = #tpu.dot_dimension_numbers<[1], [0], [0], [1], [0, 0, 1, 1], [], []>} : vector<2x128xbf16>, vector<128x512xbf16>, vector<2x512xf32> -> vector<2x512xf32>
    %421 = arith.addf %418, %420 : vector<2x512xf32>
    %422 = vector.extract_strided_slice %421 {offsets = [0, 0], sizes = [2, 128], strides = [1, 1]} : vector<2x512xf32> to vector<2x128xf32>
    %423 = arith.negf %422 : vector<2x128xf32>
    %424 = math.exp %423 : vector<2x128xf32>
    %cst_77 = arith.constant 1.000000e+00 : f32
    %425 = vector.broadcast %cst_77 : f32 to vector<2x128xf32>
    %426 = arith.addf %425, %424 : vector<2x128xf32>
    %427 = arith.divf %425, %426 : vector<2x128xf32>
    %428 = vector.extract_strided_slice %421 {offsets = [0, 128], sizes = [2, 128], strides = [1, 1]} : vector<2x512xf32> to vector<2x128xf32>
    %429 = arith.negf %428 : vector<2x128xf32>
    %430 = math.exp %429 : vector<2x128xf32>
    %cst_78 = arith.constant 1.000000e+00 : f32
    %431 = vector.broadcast %cst_78 : f32 to vector<2x128xf32>
    %432 = arith.addf %431, %430 : vector<2x128xf32>
    %433 = arith.divf %431, %432 : vector<2x128xf32>
    %434 = vector.extract_strided_slice %421 {offsets = [0, 256], sizes = [2, 128], strides = [1, 1]} : vector<2x512xf32> to vector<2x128xf32>
    %435 = math.tanh %434 : vector<2x128xf32>
    %436 = vector.extract_strided_slice %421 {offsets = [0, 384], sizes = [2, 128], strides = [1, 1]} : vector<2x512xf32> to vector<2x128xf32>
    %437 = arith.negf %436 : vector<2x128xf32>
    %438 = math.exp %437 : vector<2x128xf32>
    %cst_79 = arith.constant 1.000000e+00 : f32
    %439 = vector.broadcast %cst_79 : f32 to vector<2x128xf32>
    %440 = arith.addf %439, %438 : vector<2x128xf32>
    %441 = arith.divf %439, %440 : vector<2x128xf32>
    %442 = arith.mulf %433, %414 : vector<2x128xf32>
    %443 = arith.mulf %427, %435 : vector<2x128xf32>
    %444 = arith.addf %442, %443 : vector<2x128xf32>
    %445 = math.tanh %444 : vector<2x128xf32>
    %446 = arith.mulf %441, %445 : vector<2x128xf32>
    %447 = vector.extract_strided_slice %262 {offsets = [0, 1, 0], sizes = [2, 1, 512], strides = [1, 1, 1]} : vector<2x8x512xf32> to vector<2x1x512xf32>
    %448 = vector.shape_cast %447 : vector<2x1x512xf32> to vector<2x512xf32>
    %449 = arith.truncf %446 : vector<2x128xf32> to vector<2x128xbf16>
    %cst_80 = arith.constant dense<0.000000e+00> : vector<2x512xf32>
    %450 = tpu.matmul %449, %264, %cst_80 {dimension_numbers = #tpu.dot_dimension_numbers<[1], [0], [0], [1], [0, 0, 1, 1], [], []>} : vector<2x128xbf16>, vector<128x512xbf16>, vector<2x512xf32> -> vector<2x512xf32>
    %451 = arith.addf %448, %450 : vector<2x512xf32>
    %452 = vector.extract_strided_slice %451 {offsets = [0, 0], sizes = [2, 128], strides = [1, 1]} : vector<2x512xf32> to vector<2x128xf32>
    %453 = arith.negf %452 : vector<2x128xf32>
    %454 = math.exp %453 : vector<2x128xf32>
    %cst_81 = arith.constant 1.000000e+00 : f32
    %455 = vector.broadcast %cst_81 : f32 to vector<2x128xf32>
    %456 = arith.addf %455, %454 : vector<2x128xf32>
    %457 = arith.divf %455, %456 : vector<2x128xf32>
    %458 = vector.extract_strided_slice %451 {offsets = [0, 128], sizes = [2, 128], strides = [1, 1]} : vector<2x512xf32> to vector<2x128xf32>
    %459 = arith.negf %458 : vector<2x128xf32>
    %460 = math.exp %459 : vector<2x128xf32>
    %cst_82 = arith.constant 1.000000e+00 : f32
    %461 = vector.broadcast %cst_82 : f32 to vector<2x128xf32>
    %462 = arith.addf %461, %460 : vector<2x128xf32>
    %463 = arith.divf %461, %462 : vector<2x128xf32>
    %464 = vector.extract_strided_slice %451 {offsets = [0, 256], sizes = [2, 128], strides = [1, 1]} : vector<2x512xf32> to vector<2x128xf32>
    %465 = math.tanh %464 : vector<2x128xf32>
    %466 = vector.extract_strided_slice %451 {offsets = [0, 384], sizes = [2, 128], strides = [1, 1]} : vector<2x512xf32> to vector<2x128xf32>
    %467 = arith.negf %466 : vector<2x128xf32>
    %468 = math.exp %467 : vector<2x128xf32>
    %cst_83 = arith.constant 1.000000e+00 : f32
    %469 = vector.broadcast %cst_83 : f32 to vector<2x128xf32>
    %470 = arith.addf %469, %468 : vector<2x128xf32>
    %471 = arith.divf %469, %470 : vector<2x128xf32>
    %472 = arith.mulf %463, %444 : vector<2x128xf32>
    %473 = arith.mulf %457, %465 : vector<2x128xf32>
    %474 = arith.addf %472, %473 : vector<2x128xf32>
    %475 = math.tanh %474 : vector<2x128xf32>
    %476 = arith.mulf %471, %475 : vector<2x128xf32>
    %477 = vector.extract_strided_slice %262 {offsets = [0, 0, 0], sizes = [2, 1, 512], strides = [1, 1, 1]} : vector<2x8x512xf32> to vector<2x1x512xf32>
    %478 = vector.shape_cast %477 : vector<2x1x512xf32> to vector<2x512xf32>
    %479 = arith.truncf %476 : vector<2x128xf32> to vector<2x128xbf16>
    %cst_84 = arith.constant dense<0.000000e+00> : vector<2x512xf32>
    %480 = tpu.matmul %479, %264, %cst_84 {dimension_numbers = #tpu.dot_dimension_numbers<[1], [0], [0], [1], [0, 0, 1, 1], [], []>} : vector<2x128xbf16>, vector<128x512xbf16>, vector<2x512xf32> -> vector<2x512xf32>
    %481 = arith.addf %478, %480 : vector<2x512xf32>
    %482 = vector.extract_strided_slice %481 {offsets = [0, 0], sizes = [2, 128], strides = [1, 1]} : vector<2x512xf32> to vector<2x128xf32>
    %483 = arith.negf %482 : vector<2x128xf32>
    %484 = math.exp %483 : vector<2x128xf32>
    %cst_85 = arith.constant 1.000000e+00 : f32
    %485 = vector.broadcast %cst_85 : f32 to vector<2x128xf32>
    %486 = arith.addf %485, %484 : vector<2x128xf32>
    %487 = arith.divf %485, %486 : vector<2x128xf32>
    %488 = vector.extract_strided_slice %481 {offsets = [0, 128], sizes = [2, 128], strides = [1, 1]} : vector<2x512xf32> to vector<2x128xf32>
    %489 = arith.negf %488 : vector<2x128xf32>
    %490 = math.exp %489 : vector<2x128xf32>
    %cst_86 = arith.constant 1.000000e+00 : f32
    %491 = vector.broadcast %cst_86 : f32 to vector<2x128xf32>
    %492 = arith.addf %491, %490 : vector<2x128xf32>
    %493 = arith.divf %491, %492 : vector<2x128xf32>
    %494 = vector.extract_strided_slice %481 {offsets = [0, 256], sizes = [2, 128], strides = [1, 1]} : vector<2x512xf32> to vector<2x128xf32>
    %495 = math.tanh %494 : vector<2x128xf32>
    %496 = vector.extract_strided_slice %481 {offsets = [0, 384], sizes = [2, 128], strides = [1, 1]} : vector<2x512xf32> to vector<2x128xf32>
    %497 = arith.negf %496 : vector<2x128xf32>
    %498 = math.exp %497 : vector<2x128xf32>
    %cst_87 = arith.constant 1.000000e+00 : f32
    %499 = vector.broadcast %cst_87 : f32 to vector<2x128xf32>
    %500 = arith.addf %499, %498 : vector<2x128xf32>
    %501 = arith.divf %499, %500 : vector<2x128xf32>
    %502 = arith.mulf %493, %474 : vector<2x128xf32>
    %503 = arith.mulf %487, %495 : vector<2x128xf32>
    %504 = arith.addf %502, %503 : vector<2x128xf32>
    %505 = math.tanh %504 : vector<2x128xf32>
    %506 = arith.mulf %501, %505 : vector<2x128xf32>
    %507 = tpu.concatenate %254, %506 in 1 : vector<2x128xf32>, vector<2x128xf32> -> vector<2x256xf32>
    %508 = arith.truncf %507 : vector<2x256xf32> to vector<2x256xbf16>
    %c0_88 = arith.constant 0 : index
    %c0_89 = arith.constant 0 : index
    %509 = vector.load %arg4[%c0_88, %c0_89] : memref<256x128xbf16, #tpu.memory_space<vmem>>, vector<256x128xbf16>
    %cst_90 = arith.constant dense<0.000000e+00> : vector<2x128xf32>
    %510 = tpu.matmul %508, %509, %cst_90 {dimension_numbers = #tpu.dot_dimension_numbers<[1], [0], [0], [1], [0, 0, 1, 1], [], []>} : vector<2x256xbf16>, vector<256x128xbf16>, vector<2x128xf32> -> vector<2x128xf32>
    %c0_91 = arith.constant 0 : index
    %c0_92 = arith.constant 0 : index
    %511 = vector.load %arg5[%c0_91, %c0_92] : memref<1x128xf32, #tpu.memory_space<vmem>>, vector<1x128xf32>
    %512 = vector.broadcast %511 : vector<1x128xf32> to vector<2x128xf32>
    %513 = arith.addf %510, %512 : vector<2x128xf32>
    %c0_93 = arith.constant 0 : index
    %c0_94 = arith.constant 0 : index
    %514 = vector.load %arg6[%c0_93, %c0_94] : memref<2x128xf32, #tpu.memory_space<vmem>>, vector<2x128xf32>
    tpu.vector_store %arg6[%c0_93, %c0_94], %513 {strides = array<i32>} : memref<2x128xf32, #tpu.memory_space<vmem>>, vector<2x128xf32>,
    return
  }
}

</mosaic_0001>

<llo_original>
// kernel: wrapper_classifier_forward.2
$region0: #{wrapper_classifier_forward.2}
  #allocation0 [shape = 'u32[]', space=smem, size = 0x4, offset = 0x4, fixed_abs, tag = 'smem constant byte address 0x4 - core index']
  #allocation1 [shape = 'u32[144,128]{1,0:T(1,128)}', space=vmem, size = 0x12000, scoped, tag = 'internal scratch']
  %s0 = inlined_call_operand.vmem [shape: bf16[16,128], index: 0, kind: input, shape index: {}]
  %s1 = inlined_call_operand.vmem [shape: f32[16,1], index: 1, kind: input, shape index: {}]
  %s2 = inlined_call_operand.vmem [shape: bf16[128,128], index: 2, kind: input, shape index: {}]
  %s3 = inlined_call_operand.vmem [shape: f32[1,128], index: 3, kind: input, shape index: {}]
  %s4 = inlined_call_operand.vmem [shape: f32[16,128], index: 4, kind: output, shape index: {}]
  %s5 = sld [smem:[#allocation0]]
  $region26: #{wrapper_classifier_forward.2} parent=0
    _
  %s7 = ssub.s32 1, %s5
  %s8 = scalar_select 0, %s7, %s5
  // Predicated region
  $region2: #{wrapper_classifier_forward.2} parent=0 // pred_check
    _
  $region3: #{wrapper_classifier_forward.2} parent=0 // pred_check_branch
    %10 = sbr.rel (0) target = $region5
  $region4: #{wrapper_classifier_forward.2} parent=0 // pred_region
    _
  $region5: #{wrapper_classifier_forward.2} parent=0 // pred_fallthru
    _
  // Predicated region
  $region6: #{wrapper_classifier_forward.2} parent=0 // pred_check
    _
  $region7: #{wrapper_classifier_forward.2} parent=0 // pred_check_branch
    %12 = sbr.rel (0) target = $region9
  $region8: #{wrapper_classifier_forward.2} parent=0 // pred_region
    _
  $region9: #{wrapper_classifier_forward.2} parent=0 // pred_fallthru
    _
  // Predicated region
  $region10: #{wrapper_classifier_forward.2} parent=0 // pred_check
    _
  $region11: #{wrapper_classifier_forward.2} parent=0 // pred_check_branch
    %14 = sbr.rel (0) target = $region13
  $region12: #{wrapper_classifier_forward.2} parent=0 // pred_region
    _
  $region13: #{wrapper_classifier_forward.2} parent=0 // pred_fallthru
    _
  // Predicated region
  $region14: #{wrapper_classifier_forward.2} parent=0 // pred_check
    _
  $region15: #{wrapper_classifier_forward.2} parent=0 // pred_check_branch
    %16 = sbr.rel (0) target = $region17
  $region16: #{wrapper_classifier_forward.2} parent=0 // pred_region
    _
  $region17: #{wrapper_classifier_forward.2} parent=0 // pred_fallthru
    _
  %v18 = vld [vmem:[%s0] sm:$0xf]
  %v19 = vld [vmem:[%s0 + $0x4] sm:$0xf]
  %v20 = vld [vmem:[%s2] sm:$0xf]
  %v21 = vld [vmem:[%s2 + $0x4] sm:$0xf]
  %v22 = vld [vmem:[%s2 + $0x8] sm:$0xf]
  %v23 = vld [vmem:[%s2 + $0xc] sm:$0xf]
  %v24 = vld [vmem:[%s2 + $0x10] sm:$0xf]
  %v25 = vld [vmem:[%s2 + $0x14] sm:$0xf]
  %v26 = vld [vmem:[%s2 + $0x18] sm:$0xf]
  %v27 = vld [vmem:[%s2 + $0x1c] sm:$0xf]
  %v28 = vld [vmem:[%s2 + $0x20] sm:$0xf]
  %v29 = vld [vmem:[%s2 + $0x24] sm:$0xf]
  %v30 = vld [vmem:[%s2 + $0x28] sm:$0xf]
  %v31 = vld [vmem:[%s2 + $0x2c] sm:$0xf]
  %v32 = vld [vmem:[%s2 + $0x30] sm:$0xf]
  %v33 = vld [vmem:[%s2 + $0x34] sm:$0xf]
  %v34 = vld [vmem:[%s2 + $0x38] sm:$0xf]
  %v35 = vld [vmem:[%s2 + $0x3c] sm:$0xf]
  %v36 = vld [vmem:[%s3] sm:$0x1]
  %v38 = vlaneseq
  %v39 = vshrl.u32 %v38, 7
  %v40 = vsub.s32 0, %v39
  %v41 = vrot.slane %v36, %v40
  %v45 = vunpack.c.l.b16 %v18
  %v46 = vunpack.c.l.b16 %v19
  %v47 = vpack.c.b16 %v46, %v45
  %v65 = vunpack.c.l.b16 %v20
  %v66 = vunpack.c.l.b16 %v21
  %v67 = vunpack.c.l.b16 %v22
  %v68 = vunpack.c.l.b16 %v23
  %v69 = vunpack.c.l.b16 %v24
  %v70 = vunpack.c.l.b16 %v25
  %v71 = vunpack.c.l.b16 %v26
  %v72 = vunpack.c.l.b16 %v27
  %v73 = vunpack.c.l.b16 %v28
  %v74 = vunpack.c.l.b16 %v29
  %v75 = vunpack.c.l.b16 %v30
  %v76 = vunpack.c.l.b16 %v31
  %v77 = vunpack.c.l.b16 %v32
  %v78 = vunpack.c.l.b16 %v33
  %v79 = vunpack.c.l.b16 %v34
  %v80 = vunpack.c.l.b16 %v35
  %v81 = vpack.c.b16 %v66, %v65
  %v82 = vpack.c.b16 %v68, %v67
  %v83 = vpack.c.b16 %v70, %v69
  %v84 = vpack.c.b16 %v72, %v71
  %v85 = vpack.c.b16 %v74, %v73
  %v86 = vpack.c.b16 %v76, %v75
  %v87 = vpack.c.b16 %v78, %v77
  %v88 = vpack.c.b16 %v80, %v79
  %97 = vmatprep.subr.bf16.mxu0 0
  %98 = vmatpush1.bf16.msra.mxu0 %v81
  %99 = vmatprep.subr.bf16.mxu0 0
  %100 = vmatpush1.bf16.msra.mxu0 %v82
  %101 = vmatprep.subr.bf16.mxu0 0
  %102 = vmatpush1.bf16.msra.mxu0 %v83
  %103 = vmatprep.subr.bf16.mxu0 0
  %104 = vmatpush1.bf16.msra.mxu0 %v84
  %105 = vmatprep.subr.bf16.mxu0 0
  %106 = vmatpush1.bf16.msra.mxu0 %v85
  %107 = vmatprep.subr.bf16.mxu0 0
  %108 = vmatpush1.bf16.msra.mxu0 %v86
  %109 = vmatprep.subr.bf16.mxu0 0
  %110 = vmatpush1.bf16.msra.mxu0 %v87
  %111 = vmatprep.subr.bf16.mxu0 0
  %112 = vmatpush1.bf16.msra.mxu0 %v88
  %113 = vmatprep.subr.bf16.mxu0 0
  %114 = vmatpush1.bf16.msra.mxu0 0
  %115 = vmatprep.subr.bf16.mxu0 0
  %116 = vmatpush1.bf16.msra.mxu0 0
  %117 = vmatprep.subr.bf16.mxu0 0
  %118 = vmatpush1.bf16.msra.mxu0 0
  %119 = vmatprep.subr.bf16.mxu0 0
  %120 = vmatpush1.bf16.msra.mxu0 0
  %121 = vmatprep.subr.bf16.mxu0 0
  %122 = vmatpush1.bf16.msra.mxu0 0
  %123 = vmatprep.subr.bf16.mxu0 0
  %124 = vmatpush1.bf16.msra.mxu0 0
  %125 = vmatprep.subr.bf16.mxu0 0
  %126 = vmatpush1.bf16.msra.mxu0 0
  %127 = vmatprep.subr.bf16.mxu0 0
  %128 = vmatpush1.bf16.msra.mxu0 0
  %129 = vmatprep.mubr.bf16.mxu0 0
  %130 = vmatmul.mubr.bf16.gmra.mrb[0].mxu0 %v47
  %v131 = vpop.f32.mrb[0].mxu0
  %v132 = vadd.f32 %v41, %v131
  %v133 = vpop.f32.mrb[0].mxu0
  %v134 = vpop.f32.mrb[0].mxu0
  %v135 = vadd.f32 %v41, %v134
  %v136 = vpop.f32.mrb[0].mxu0
  %137 = vdwg.mxu0
  %v138 = vtanh.pop %v132
  %v139 = vtanh.pop %v135
  %v140 = vld [vmem:[%s1] sm:$0xff]
  %v141 = vld [vmem:[%s1 + $0x8] sm:$0xff]
  %143 = vset.pattern.permute.xlu0 0
  %144 = vperm.xlu0 %143, %v140
  %v145 = vpop.permute.xlu0 %144
  %148 = vset.pattern.permute.xlu0 0
  %149 = vperm.xlu0 %148, %v141
  %v150 = vpop.permute.xlu0 %149
  %v152 = vmul.f32 %v138, %v145
  %v153 = vmul.f32 %v139, %v150
  %154 = vst [vmem:[%s4] sm:$0xff] %v152
  %155 = vst [vmem:[%s4 + $0x8] sm:$0xff] %v153
  // Predicated region
  $region18: #{wrapper_classifier_forward.2} parent=0 // pred_check
    _
  $region19: #{wrapper_classifier_forward.2} parent=0 // pred_check_branch
    %157 = sbr.rel (0) target = $region21
  $region20: #{wrapper_classifier_forward.2} parent=0 // pred_region
    _
  $region21: #{wrapper_classifier_forward.2} parent=0 // pred_fallthru
    _
  // Predicated region
  $region22: #{wrapper_classifier_forward.2} parent=0 // pred_check
    _
  $region23: #{wrapper_classifier_forward.2} parent=0 // pred_check_branch
    %159 = sbr.rel (0) target = $region25
  $region24: #{wrapper_classifier_forward.2} parent=0 // pred_region
    _
  $region25: #{wrapper_classifier_forward.2} parent=0 // pred_fallthru
    _

// kernel: wrapper_classifier_forward.3
$region0: #{wrapper_classifier_forward.3}
  #allocation0 [shape = 'u32[]', space=smem, size = 0x4, offset = 0x4, fixed_abs, tag = 'smem constant byte address 0x4 - core index']
  #allocation1 [shape = 'u32[144,128]{1,0:T(1,128)}', space=vmem, size = 0x12000, scoped, tag = 'internal scratch']
  %s0 = inlined_call_operand.vmem [shape: f32[2,8,128], index: 0, kind: input, shape index: {}]
  %s1 = inlined_call_operand.vmem [shape: bf16[2,128,512], index: 1, kind: input, shape index: {}]
  %s2 = inlined_call_operand.vmem [shape: bf16[2,128,512], index: 2, kind: input, shape index: {}]
  %s3 = inlined_call_operand.vmem [shape: f32[2,1,512], index: 3, kind: input, shape index: {}]
  %s4 = inlined_call_operand.vmem [shape: bf16[256,128], index: 4, kind: input, shape index: {}]
  %s5 = inlined_call_operand.vmem [shape: f32[1,128], index: 5, kind: input, shape index: {}]
  %s6 = inlined_call_operand.hbm [shape: f32[2,128], index: 6, kind: output, shape index: {}]
  %s7 = sld [smem:[#allocation0]]
  $region34: #{wrapper_classifier_forward.3} parent=0
    _
  %s9 = ssub.s32 1, %s7
  %s10 = scalar_select 0, %s9, %s7
  $region1: #{wrapper_classifier_forward.3} parent=0
    #allocation2 [shape = 'u8[1024]{0}', space=vmem, size = 0x400, scoped, tag = 'output window, operand 0, single buffered']
    #allocation3 [shape = 's32[1]{0}', space=sflag, size = 0x4, scoped, tag = 'scoped memory for wrapper_classifier_forward.3']
    %11 = vsyncpa [#allocation3], 0
    // Predicated region
    $region2: #{wrapper_classifier_forward.3} parent=1 // pred_check
      _
    $region3: #{wrapper_classifier_forward.3} parent=1 // pred_check_branch
      %13 = sbr.rel (0) target = $region5
    $region4: #{wrapper_classifier_forward.3} parent=1 // pred_region
      _
    $region5: #{wrapper_classifier_forward.3} parent=1 // pred_fallthru
      _
    // Predicated region
    $region6: #{wrapper_classifier_forward.3} parent=1 // pred_check
      _
    $region7: #{wrapper_classifier_forward.3} parent=1 // pred_check_branch
      %15 = sbr.rel (0) target = $region9
    $region8: #{wrapper_classifier_forward.3} parent=1 // pred_region
      _
    $region9: #{wrapper_classifier_forward.3} parent=1 // pred_fallthru
      _
    // Predicated region
    $region10: #{wrapper_classifier_forward.3} parent=1 // pred_check
      _
    $region11: #{wrapper_classifier_forward.3} parent=1 // pred_check_branch
      %17 = sbr.rel (0) target = $region13
    $region12: #{wrapper_classifier_forward.3} parent=1 // pred_region
      _
    $region13: #{wrapper_classifier_forward.3} parent=1 // pred_fallthru
      _
    // Predicated region
    $region14: #{wrapper_classifier_forward.3} parent=1 // pred_check
      _
    $region15: #{wrapper_classifier_forward.3} parent=1 // pred_check_branch
      %19 = sbr.rel (0) target = $region17
    $region16: #{wrapper_classifier_forward.3} parent=1 // pred_region
      _
    $region17: #{wrapper_classifier_forward.3} parent=1 // pred_fallthru
      _
    // Predicated region
    $region18: #{wrapper_classifier_forward.3} parent=1 // pred_check
      _
    $region19: #{wrapper_classifier_forward.3} parent=1 // pred_check_branch
      %21 = sbr.rel (0) target = $region21
    $region20: #{wrapper_classifier_forward.3} parent=1 // pred_region
      _
    $region21: #{wrapper_classifier_forward.3} parent=1 // pred_fallthru
      _
    // Predicated region
    $region22: #{wrapper_classifier_forward.3} parent=1 // pred_check
      _
    $region23: #{wrapper_classifier_forward.3} parent=1 // pred_check_branch
      %23 = sbr.rel (0) target = $region25
    $region24: #{wrapper_classifier_forward.3} parent=1 // pred_region
      _
    $region25: #{wrapper_classifier_forward.3} parent=1 // pred_fallthru
      _
    %v25 = vld [vmem:[%s0] sm:$0xff]
    %v26 = vld [vmem:[%s0 + $0x8] sm:$0xff]
    %v27 = vpack.c.bf16 %v26, %v25
    %v28 = vld [vmem:[%s1] sm:$0xff]
    %v29 = vld [vmem:[%s1 + $0x8] sm:$0xff]
    %v30 = vld [vmem:[%s1 + $0x10] sm:$0xff]
    %v31 = vld [vmem:[%s1 + $0x18] sm:$0xff]
    %v32 = vld [vmem:[%s1 + $0x20] sm:$0xff]
    %v33 = vld [vmem:[%s1 + $0x28] sm:$0xff]
    %v34 = vld [vmem:[%s1 + $0x30] sm:$0xff]
    %v35 = vld [vmem:[%s1 + $0x38] sm:$0xff]
    %v36 = vld [vmem:[%s1 + $0x40] sm:$0xff]
    %v37 = vld [vmem:[%s1 + $0x48] sm:$0xff]
    %v38 = vld [vmem:[%s1 + $0x50] sm:$0xff]
    %v39 = vld [vmem:[%s1 + $0x58] sm:$0xff]
    %v40 = vld [vmem:[%s1 + $0x60] sm:$0xff]
    %v41 = vld [vmem:[%s1 + $0x68] sm:$0xff]
    %v42 = vld [vmem:[%s1 + $0x70] sm:$0xff]
    %v43 = vld [vmem:[%s1 + $0x78] sm:$0xff]
    %v44 = vld [vmem:[%s1 + $0x80] sm:$0xff]
    %v45 = vld [vmem:[%s1 + $0x88] sm:$0xff]
    %v46 = vld [vmem:[%s1 + $0x90] sm:$0xff]
    %v47 = vld [vmem:[%s1 + $0x98] sm:$0xff]
    %v48 = vld [vmem:[%s1 + $0xa0] sm:$0xff]
    %v49 = vld [vmem:[%s1 + $0xa8] sm:$0xff]
    %v50 = vld [vmem:[%s1 + $0xb0] sm:$0xff]
    %v51 = vld [vmem:[%s1 + $0xb8] sm:$0xff]
    %v52 = vld [vmem:[%s1 + $0xc0] sm:$0xff]
    %v53 = vld [vmem:[%s1 + $0xc8] sm:$0xff]
    %v54 = vld [vmem:[%s1 + $0xd0] sm:$0xff]
    %v55 = vld [vmem:[%s1 + $0xd8] sm:$0xff]
    %v56 = vld [vmem:[%s1 + $0xe0] sm:$0xff]
    %v57 = vld [vmem:[%s1 + $0xe8] sm:$0xff]
    %v58 = vld [vmem:[%s1 + $0xf0] sm:$0xff]
    %v59 = vld [vmem:[%s1 + $0xf8] sm:$0xff]
    %v60 = vld [vmem:[%s3] sm:$0xf]
    %v62 = vlaneseq
    %v63 = vshrl.u32 %v62, 7
    %v64 = vsub.s32 0, %v63
    %v65 = vrot.slane %v60, %v64
    %v66 = vlaneseq
    %v67 = vshrl.u32 %v66, 7
    %v68 = vsub.s32 1, %v67
    %v69 = vrot.slane %v60, %v68
    %v70 = vlaneseq
    %v71 = vshrl.u32 %v70, 7
    %v72 = vsub.s32 2, %v71
    %v73 = vrot.slane %v60, %v72
    %v74 = vlaneseq
    %v75 = vshrl.u32 %v74, 7
    %v76 = vsub.s32 3, %v75
    %v77 = vrot.slane %v60, %v76
    %v114 = vunpack.c.l.b16 %v28
    %v115 = vunpack.c.h.b16 %v28
    %v116 = vunpack.c.l.b16 %v29
    %v117 = vunpack.c.h.b16 %v29
    %v118 = vunpack.c.l.b16 %v30
    %v119 = vunpack.c.h.b16 %v30
    %v120 = vunpack.c.l.b16 %v31
    %v121 = vunpack.c.h.b16 %v31
    %v122 = vunpack.c.l.b16 %v32
    %v123 = vunpack.c.h.b16 %v32
    %v124 = vunpack.c.l.b16 %v33
    %v125 = vunpack.c.h.b16 %v33
    %v126 = vunpack.c.l.b16 %v34
    %v127 = vunpack.c.h.b16 %v34
    %v128 = vunpack.c.l.b16 %v35
    %v129 = vunpack.c.h.b16 %v35
    %v130 = vunpack.c.l.b16 %v36
    %v131 = vunpack.c.h.b16 %v36
    %v132 = vunpack.c.l.b16 %v37
    %v133 = vunpack.c.h.b16 %v37
    %v134 = vunpack.c.l.b16 %v38
    %v135 = vunpack.c.h.b16 %v38
    %v136 = vunpack.c.l.b16 %v39
    %v137 = vunpack.c.h.b16 %v39
    %v138 = vunpack.c.l.b16 %v40
    %v139 = vunpack.c.h.b16 %v40
    %v140 = vunpack.c.l.b16 %v41
    %v141 = vunpack.c.h.b16 %v41
    %v142 = vunpack.c.l.b16 %v42
    %v143 = vunpack.c.h.b16 %v42
    %v144 = vunpack.c.l.b16 %v43
    %v145 = vunpack.c.h.b16 %v43
    %v146 = vunpack.c.l.b16 %v44
    %v147 = vunpack.c.h.b16 %v44
    %v148 = vunpack.c.l.b16 %v45
    %v149 = vunpack.c.h.b16 %v45
    %v150 = vunpack.c.l.b16 %v46
    %v151 = vunpack.c.h.b16 %v46
    %v152 = vunpack.c.l.b16 %v47
    %v153 = vunpack.c.h.b16 %v47
    %v154 = vunpack.c.l.b16 %v48
    %v155 = vunpack.c.h.b16 %v48
    %v156 = vunpack.c.l.b16 %v49
    %v157 = vunpack.c.h.b16 %v49
    %v158 = vunpack.c.l.b16 %v50
    %v159 = vunpack.c.h.b16 %v50
    %v160 = vunpack.c.l.b16 %v51
    %v161 = vunpack.c.h.b16 %v51
    %v162 = vunpack.c.l.b16 %v52
    %v163 = vunpack.c.h.b16 %v52
    %v164 = vunpack.c.l.b16 %v53
    %v165 = vunpack.c.h.b16 %v53
    %v166 = vunpack.c.l.b16 %v54
    %v167 = vunpack.c.h.b16 %v54
    %v168 = vunpack.c.l.b16 %v55
    %v169 = vunpack.c.h.b16 %v55
    %v170 = vunpack.c.l.b16 %v56
    %v171 = vunpack.c.h.b16 %v56
    %v172 = vunpack.c.l.b16 %v57
    %v173 = vunpack.c.h.b16 %v57
    %v174 = vunpack.c.l.b16 %v58
    %v175 = vunpack.c.h.b16 %v58
    %v176 = vunpack.c.l.b16 %v59
    %v177 = vunpack.c.h.b16 %v59
    %v178 = vpack.c.b16 %v118, %v114
    %v179 = vpack.c.b16 %v119, %v115
    %v180 = vpack.c.b16 %v120, %v116
    %v181 = vpack.c.b16 %v121, %v117
    %v182 = vpack.c.b16 %v126, %v122
    %v183 = vpack.c.b16 %v127, %v123
    %v184 = vpack.c.b16 %v128, %v124
    %v185 = vpack.c.b16 %v129, %v125
    %v186 = vpack.c.b16 %v134, %v130
    %v187 = vpack.c.b16 %v135, %v131
    %v188 = vpack.c.b16 %v136, %v132
    %v189 = vpack.c.b16 %v137, %v133
    %v190 = vpack.c.b16 %v142, %v138
    %v191 = vpack.c.b16 %v143, %v139
    %v192 = vpack.c.b16 %v144, %v140
    %v193 = vpack.c.b16 %v145, %v141
    %v194 = vpack.c.b16 %v150, %v146
    %v195 = vpack.c.b16 %v151, %v147
    %v196 = vpack.c.b16 %v152, %v148
    %v197 = vpack.c.b16 %v153, %v149
    %v198 = vpack.c.b16 %v158, %v154
    %v199 = vpack.c.b16 %v159, %v155
    %v200 = vpack.c.b16 %v160, %v156
    %v201 = vpack.c.b16 %v161, %v157
    %v202 = vpack.c.b16 %v166, %v162
    %v203 = vpack.c.b16 %v167, %v163
    %v204 = vpack.c.b16 %v168, %v164
    %v205 = vpack.c.b16 %v169, %v165
    %v206 = vpack.c.b16 %v174, %v170
    %v207 = vpack.c.b16 %v175, %v171
    %v208 = vpack.c.b16 %v176, %v172
    %v209 = vpack.c.b16 %v177, %v173
    %242 = vmatprep.subr.bf16.mxu0 %v179
    %243 = vmatpush1.bf16.msra.mxu0 %v178
    %244 = vmatprep.subr.bf16.mxu0 %v183
    %245 = vmatpush1.bf16.msra.mxu0 %v182
    %246 = vmatprep.subr.bf16.mxu0 %v187
    %247 = vmatpush1.bf16.msra.mxu0 %v186
    %248 = vmatprep.subr.bf16.mxu0 %v191
    %249 = vmatpush1.bf16.msra.mxu0 %v190
    %250 = vmatprep.subr.bf16.mxu0 %v195
    %251 = vmatpush1.bf16.msra.mxu0 %v194
    %252 = vmatprep.subr.bf16.mxu0 %v199
    %253 = vmatpush1.bf16.msra.mxu0 %v198
    %254 = vmatprep.subr.bf16.mxu0 %v203
    %255 = vmatpush1.bf16.msra.mxu0 %v202
    %256 = vmatprep.subr.bf16.mxu0 %v207
    %257 = vmatpush1.bf16.msra.mxu0 %v206
    %258 = vmatprep.subr.bf16.mxu0 0
    %259 = vmatpush1.bf16.msra.mxu0 0
    %260 = vmatprep.subr.bf16.mxu0 0
    %261 = vmatpush1.bf16.msra.mxu0 0
    %262 = vmatprep.subr.bf16.mxu0 0
    %263 = vmatpush1.bf16.msra.mxu0 0
    %264 = vmatprep.subr.bf16.mxu0 0
    %265 = vmatpush1.bf16.msra.mxu0 0
    %266 = vmatprep.subr.bf16.mxu0 0
    %267 = vmatpush1.bf16.msra.mxu0 0
    %268 = vmatprep.subr.bf16.mxu0 0
    %269 = vmatpush1.bf16.msra.mxu0 0
    %270 = vmatprep.subr.bf16.mxu0 0
    %271 = vmatpush1.bf16.msra.mxu0 0
    %272 = vmatprep.subr.bf16.mxu0 0
    %273 = vmatpush1.bf16.msra.mxu0 0
    %274 = vmatprep.mubr.bf16.mxu0 0
    %275 = vmatmul.mubr.bf16.gmra.mrb[0].mxu0 %v27
    %v276 = vpop.f32.mrb[0].mxu0
    %v277 = vadd.f32 %v65, %v276
    %v278 = vpop.f32.mrb[0].mxu0
    %v279 = vadd.f32 %v69, %v278
    %v280 = vpop.f32.mrb[0].mxu0
    %v281 = vadd.f32 %v65, %v280
    %v282 = vpop.f32.mrb[0].mxu0
    %v283 = vadd.f32 %v69, %v282
    %284 = vdwg.mxu0
    %285 = vmatprep.subr.bf16.mxu0 %v181
    %286 = vmatpush1.bf16.msra.mxu0 %v180
    %287 = vmatprep.subr.bf16.mxu0 %v185
    %288 = vmatpush1.bf16.msra.mxu0 %v184
    %289 = vmatprep.subr.bf16.mxu0 %v189
    %290 = vmatpush1.bf16.msra.mxu0 %v188
    %291 = vmatprep.subr.bf16.mxu0 %v193
    %292 = vmatpush1.bf16.msra.mxu0 %v192
    %293 = vmatprep.subr.bf16.mxu0 %v197
    %294 = vmatpush1.bf16.msra.mxu0 %v196
    %295 = vmatprep.subr.bf16.mxu0 %v201
    %296 = vmatpush1.bf16.msra.mxu0 %v200
    %297 = vmatprep.subr.bf16.mxu0 %v205
    %298 = vmatpush1.bf16.msra.mxu0 %v204
    %299 = vmatprep.subr.bf16.mxu0 %v209
    %300 = vmatpush1.bf16.msra.mxu0 %v208
    %301 = vmatprep.subr.bf16.mxu0 0
    %302 = vmatpush1.bf16.msra.mxu0 0
    %303 = vmatprep.subr.bf16.mxu0 0
    %304 = vmatpush1.bf16.msra.mxu0 0
    %305 = vmatprep.subr.bf16.mxu0 0
    %306 = vmatpush1.bf16.msra.mxu0 0
    %307 = vmatprep.subr.bf16.mxu0 0
    %308 = vmatpush1.bf16.msra.mxu0 0
    %309 = vmatprep.subr.bf16.mxu0 0
    %310 = vmatpush1.bf16.msra.mxu0 0
    %311 = vmatprep.subr.bf16.mxu0 0
    %312 = vmatpush1.bf16.msra.mxu0 0
    %313 = vmatprep.subr.bf16.mxu0 0
    %314 = vmatpush1.bf16.msra.mxu0 0
    %315 = vmatprep.subr.bf16.mxu0 0
    %316 = vmatpush1.bf16.msra.mxu0 0
    %317 = vmatprep.mubr.bf16.mxu0 0
    %318 = vmatmul.mubr.bf16.gmra.mrb[0].mxu0 %v27
    %v319 = vpop.f32.mrb[0].mxu0
    %v320 = vadd.f32 %v73, %v319
    %v321 = vpop.f32.mrb[0].mxu0
    %v322 = vadd.f32 %v77, %v321
    %v323 = vpop.f32.mrb[0].mxu0
    %v324 = vadd.f32 %v73, %v323
    %v325 = vpop.f32.mrb[0].mxu0
    %v326 = vadd.f32 %v77, %v325
    %327 = vdwg.mxu0
    %v328 = vld [vmem:[%s2] sm:$0xff]
    %v329 = vld [vmem:[%s2 + $0x8] sm:$0xff]
    %v330 = vld [vmem:[%s2 + $0x10] sm:$0xff]
    %v331 = vld [vmem:[%s2 + $0x18] sm:$0xff]
    %v332 = vld [vmem:[%s2 + $0x20] sm:$0xff]
    %v333 = vld [vmem:[%s2 + $0x28] sm:$0xff]
    %v334 = vld [vmem:[%s2 + $0x30] sm:$0xff]
    %v335 = vld [vmem:[%s2 + $0x38] sm:$0xff]
    %v336 = vld [vmem:[%s2 + $0x40] sm:$0xff]
    %v337 = vld [vmem:[%s2 + $0x48] sm:$0xff]
    %v338 = vld [vmem:[%s2 + $0x50] sm:$0xff]
    %v339 = vld [vmem:[%s2 + $0x58] sm:$0xff]
    %v340 = vld [vmem:[%s2 + $0x60] sm:$0xff]
    %v341 = vld [vmem:[%s2 + $0x68] sm:$0xff]
    %v342 = vld [vmem:[%s2 + $0x70] sm:$0xff]
    %v343 = vld [vmem:[%s2 + $0x78] sm:$0xff]
    %v344 = vld [vmem:[%s2 + $0x80] sm:$0xff]
    %v345 = vld [vmem:[%s2 + $0x88] sm:$0xff]
    %v346 = vld [vmem:[%s2 + $0x90] sm:$0xff]
    %v347 = vld [vmem:[%s2 + $0x98] sm:$0xff]
    %v348 = vld [vmem:[%s2 + $0xa0] sm:$0xff]
    %v349 = vld [vmem:[%s2 + $0xa8] sm:$0xff]
    %v350 = vld [vmem:[%s2 + $0xb0] sm:$0xff]
    %v351 = vld [vmem:[%s2 + $0xb8] sm:$0xff]
    %v352 = vld [vmem:[%s2 + $0xc0] sm:$0xff]
    %v353 = vld [vmem:[%s2 + $0xc8] sm:$0xff]
    %v354 = vld [vmem:[%s2 + $0xd0] sm:$0xff]
    %v355 = vld [vmem:[%s2 + $0xd8] sm:$0xff]
    %v356 = vld [vmem:[%s2 + $0xe0] sm:$0xff]
    %v357 = vld [vmem:[%s2 + $0xe8] sm:$0xff]
    %v358 = vld [vmem:[%s2 + $0xf0] sm:$0xff]
    %v359 = vld [vmem:[%s2 + $0xf8] sm:$0xff]
    %v392 = vunpack.c.l.b16 %v328
    %v393 = vunpack.c.h.b16 %v328
    %v394 = vunpack.c.l.b16 %v329
    %v395 = vunpack.c.h.b16 %v329
    %v396 = vunpack.c.l.b16 %v330
    %v397 = vunpack.c.h.b16 %v330
    %v398 = vunpack.c.l.b16 %v331
    %v399 = vunpack.c.h.b16 %v331
    %v400 = vunpack.c.l.b16 %v332
    %v401 = vunpack.c.h.b16 %v332
    %v402 = vunpack.c.l.b16 %v333
    %v403 = vunpack.c.h.b16 %v333
    %v404 = vunpack.c.l.b16 %v334
    %v405 = vunpack.c.h.b16 %v334
    %v406 = vunpack.c.l.b16 %v335
    %v407 = vunpack.c.h.b16 %v335
    %v408 = vunpack.c.l.b16 %v336
    %v409 = vunpack.c.h.b16 %v336
    %v410 = vunpack.c.l.b16 %v337
    %v411 = vunpack.c.h.b16 %v337
    %v412 = vunpack.c.l.b16 %v338
    %v413 = vunpack.c.h.b16 %v338
    %v414 = vunpack.c.l.b16 %v339
    %v415 = vunpack.c.h.b16 %v339
    %v416 = vunpack.c.l.b16 %v340
    %v417 = vunpack.c.h.b16 %v340
    %v418 = vunpack.c.l.b16 %v341
    %v419 = vunpack.c.h.b16 %v341
    %v420 = vunpack.c.l.b16 %v342
    %v421 = vunpack.c.h.b16 %v342
    %v422 = vunpack.c.l.b16 %v343
    %v423 = vunpack.c.h.b16 %v343
    %v424 = vunpack.c.l.b16 %v344
    %v425 = vunpack.c.h.b16 %v344
    %v426 = vunpack.c.l.b16 %v345
    %v427 = vunpack.c.h.b16 %v345
    %v428 = vunpack.c.l.b16 %v346
    %v429 = vunpack.c.h.b16 %v346
    %v430 = vunpack.c.l.b16 %v347
    %v431 = vunpack.c.h.b16 %v347
    %v432 = vunpack.c.l.b16 %v348
    %v433 = vunpack.c.h.b16 %v348
    %v434 = vunpack.c.l.b16 %v349
    %v435 = vunpack.c.h.b16 %v349
    %v436 = vunpack.c.l.b16 %v350
    %v437 = vunpack.c.h.b16 %v350
    %v438 = vunpack.c.l.b16 %v351
    %v439 = vunpack.c.h.b16 %v351
    %v440 = vunpack.c.l.b16 %v352
    %v441 = vunpack.c.h.b16 %v352
    %v442 = vunpack.c.l.b16 %v353
    %v443 = vunpack.c.h.b16 %v353
    %v444 = vunpack.c.l.b16 %v354
    %v445 = vunpack.c.h.b16 %v354
    %v446 = vunpack.c.l.b16 %v355
    %v447 = vunpack.c.h.b16 %v355
    %v448 = vunpack.c.l.b16 %v356
    %v449 = vunpack.c.h.b16 %v356
    %v450 = vunpack.c.l.b16 %v357
    %v451 = vunpack.c.h.b16 %v357
    %v452 = vunpack.c.l.b16 %v358
    %v453 = vunpack.c.h.b16 %v358
    %v454 = vunpack.c.l.b16 %v359
    %v455 = vunpack.c.h.b16 %v359
    %v456 = vpack.c.b16 %v396, %v392
    %v457 = vpack.c.b16 %v397, %v393
    %v458 = vpack.c.b16 %v398, %v394
    %v459 = vpack.c.b16 %v399, %v395
    %v460 = vpack.c.b16 %v404, %v400
    %v461 = vpack.c.b16 %v405, %v401
    %v462 = vpack.c.b16 %v406, %v402
    %v463 = vpack.c.b16 %v407, %v403
    %v464 = vpack.c.b16 %v412, %v408
    %v465 = vpack.c.b16 %v413, %v409
    %v466 = vpack.c.b16 %v414, %v410
    %v467 = vpack.c.b16 %v415, %v411
    %v468 = vpack.c.b16 %v420, %v416
    %v469 = vpack.c.b16 %v421, %v417
    %v470 = vpack.c.b16 %v422, %v418
    %v471 = vpack.c.b16 %v423, %v419
    %v472 = vpack.c.b16 %v428, %v424
    %v473 = vpack.c.b16 %v429, %v425
    %v474 = vpack.c.b16 %v430, %v426
    %v475 = vpack.c.b16 %v431, %v427
    %v476 = vpack.c.b16 %v436, %v432
    %v477 = vpack.c.b16 %v437, %v433
    %v478 = vpack.c.b16 %v438, %v434
    %v479 = vpack.c.b16 %v439, %v435
    %v480 = vpack.c.b16 %v444, %v440
    %v481 = vpack.c.b16 %v445, %v441
    %v482 = vpack.c.b16 %v446, %v442
    %v483 = vpack.c.b16 %v447, %v443
    %v484 = vpack.c.b16 %v452, %v448
    %v485 = vpack.c.b16 %v453, %v449
    %v486 = vpack.c.b16 %v454, %v450
    %v487 = vpack.c.b16 %v455, %v451
    %520 = vmatprep.subr.bf16.mxu0 %v457
    %521 = vmatpush1.bf16.msra.mxu0 %v456
    %522 = vmatprep.subr.bf16.mxu0 %v461
    %523 = vmatpush1.bf16.msra.mxu0 %v460
    %524 = vmatprep.subr.bf16.mxu0 %v465
    %525 = vmatpush1.bf16.msra.mxu0 %v464
    %526 = vmatprep.subr.bf16.mxu0 %v469
    %527 = vmatpush1.bf16.msra.mxu0 %v468
    %528 = vmatprep.subr.bf16.mxu0 %v473
    %529 = vmatpush1.bf16.msra.mxu0 %v472
    %530 = vmatprep.subr.bf16.mxu0 %v477
    %531 = vmatpush1.bf16.msra.mxu0 %v476
    %532 = vmatprep.subr.bf16.mxu0 %v481
    %533 = vmatpush1.bf16.msra.mxu0 %v480
    %534 = vmatprep.subr.bf16.mxu0 %v485
    %535 = vmatpush1.bf16.msra.mxu0 %v484
    %536 = vmatprep.subr.bf16.mxu0 0
    %537 = vmatpush1.bf16.msra.mxu0 0
    %538 = vmatprep.subr.bf16.mxu0 0
    %539 = vmatpush1.bf16.msra.mxu0 0
    %540 = vmatprep.subr.bf16.mxu0 0
    %541 = vmatpush1.bf16.msra.mxu0 0
    %542 = vmatprep.subr.bf16.mxu0 0
    %543 = vmatpush1.bf16.msra.mxu0 0
    %544 = vmatprep.subr.bf16.mxu0 0
    %545 = vmatpush1.bf16.msra.mxu0 0
    %546 = vmatprep.subr.bf16.mxu0 0
    %547 = vmatpush1.bf16.msra.mxu0 0
    %548 = vmatprep.subr.bf16.mxu0 0
    %549 = vmatpush1.bf16.msra.mxu0 0
    %550 = vmatprep.subr.bf16.mxu0 0
    %551 = vmatpush1.bf16.msra.mxu0 0
    %552 = vmatprep.mubr.bf16.mxu0 0
    %553 = vmatmul.mubr.bf16.gmra.mrb[0].mxu0 0
    %v554 = vpop.f32.mrb[0].mxu0
    %v555 = vadd.f32 0.0, %v554
    %v556 = vpop.f32.mrb[0].mxu0
    %v557 = vadd.f32 0.0, %v556
    %v558 = vpop.f32.mrb[0].mxu0
    %v559 = vpop.f32.mrb[0].mxu0
    %560 = vdwg.mxu0
    %561 = vmatprep.subr.bf16.mxu0 %v459
    %562 = vmatpush1.bf16.msra.mxu0 %v458
    %563 = vmatprep.subr.bf16.mxu0 %v463
    %564 = vmatpush1.bf16.msra.mxu0 %v462
    %565 = vmatprep.subr.bf16.mxu0 %v467
    %566 = vmatpush1.bf16.msra.mxu0 %v466
    %567 = vmatprep.subr.bf16.mxu0 %v471
    %568 = vmatpush1.bf16.msra.mxu0 %v470
    %569 = vmatprep.subr.bf16.mxu0 %v475
    %570 = vmatpush1.bf16.msra.mxu0 %v474
    %571 = vmatprep.subr.bf16.mxu0 %v479
    %572 = vmatpush1.bf16.msra.mxu0 %v478
    %573 = vmatprep.subr.bf16.mxu0 %v483
    %574 = vmatpush1.bf16.msra.mxu0 %v482
    %575 = vmatprep.subr.bf16.mxu0 %v487
    %576 = vmatpush1.bf16.msra.mxu0 %v486
    %577 = vmatprep.subr.bf16.mxu0 0
    %578 = vmatpush1.bf16.msra.mxu0 0
    %579 = vmatprep.subr.bf16.mxu0 0
    %580 = vmatpush1.bf16.msra.mxu0 0
    %581 = vmatprep.subr.bf16.mxu0 0
    %582 = vmatpush1.bf16.msra.mxu0 0
    %583 = vmatprep.subr.bf16.mxu0 0
    %584 = vmatpush1.bf16.msra.mxu0 0
    %585 = vmatprep.subr.bf16.mxu0 0
    %586 = vmatpush1.bf16.msra.mxu0 0
    %587 = vmatprep.subr.bf16.mxu0 0
    %588 = vmatpush1.bf16.msra.mxu0 0
    %589 = vmatprep.subr.bf16.mxu0 0
    %590 = vmatpush1.bf16.msra.mxu0 0
    %591 = vmatprep.subr.bf16.mxu0 0
    %592 = vmatpush1.bf16.msra.mxu0 0
    %593 = vmatprep.mubr.bf16.mxu0 0
    %594 = vmatmul.mubr.bf16.gmra.mrb[0].mxu0 0
    %v595 = vpop.f32.mrb[0].mxu0
    %v596 = vadd.f32 0.0, %v595
    %v597 = vpop.f32.mrb[0].mxu0
    %v598 = vadd.f32 0.0, %v597
    %v599 = vpop.f32.mrb[0].mxu0
    %v600 = vpop.f32.mrb[0].mxu0
    %601 = vdwg.mxu0
    %v606 = vrot.slane %v555, 1
    %v607 = vrot.slane %v557, 1
    %v608 = vrot.slane %v596, 1
    %v609 = vrot.slane %v598, 1
    %v618 = vadd.f32 %v277, %v555
    %v619 = vadd.f32 %v279, %v557
    %v620 = vadd.f32 %v320, %v596
    %v621 = vadd.f32 %v322, %v598
    %v622 = vadd.f32 %v281, %v606
    %v623 = vadd.f32 %v283, %v607
    %v624 = vadd.f32 %v324, %v608
    %v625 = vadd.f32 %v326, %v609
    %v626 = vxor.u32 %v618, 2147483648
    %v627 = vxor.u32 %v622, 2147483648
    %v628 = vmul.f32 %v626, 1.442695
    %v629 = vpow.pop %v628
    %v630 = vmul.f32 %v627, 1.442695
    %v631 = vpow.pop %v630
    %v632 = vadd.f32 %v629, 1.0
    %v633 = vadd.f32 %v631, 1.0
    %v634 = vrcp.pop %v632
    %v635 = vmul.f32 1.0, %v634
    %v636 = vrcp.pop %v633
    %v637 = vmul.f32 1.0, %v636
    %v638 = vxor.u32 %v619, 2147483648
    %v639 = vxor.u32 %v623, 2147483648
    %v640 = vmul.f32 %v638, 1.442695
    %v641 = vpow.pop %v640
    %v642 = vmul.f32 %v639, 1.442695
    %v643 = vpow.pop %v642
    %v644 = vadd.f32 %v641, 1.0
    %v645 = vadd.f32 %v643, 1.0
    %v646 = vrcp.pop %v644
    %v647 = vmul.f32 1.0, %v646
    %v648 = vrcp.pop %v645
    %v649 = vmul.f32 1.0, %v648
    %v650 = vtanh.pop %v620
    %v651 = vtanh.pop %v624
    %v652 = vxor.u32 %v621, 2147483648
    %v653 = vxor.u32 %v625, 2147483648
    %v654 = vmul.f32 %v652, 1.442695
    %v655 = vpow.pop %v654
    %v656 = vmul.f32 %v653, 1.442695
    %v657 = vpow.pop %v656
    %v658 = vadd.f32 %v655, 1.0
    %v659 = vadd.f32 %v657, 1.0
    %v660 = vrcp.pop %v658
    %v661 = vmul.f32 1.0, %v660
    %v662 = vrcp.pop %v659
    %v663 = vmul.f32 1.0, %v662
    %v664 = vmul.f32 %v647, 0.0
    %v665 = vmul.f32 %v649, 0.0
    %v666 = vmul.f32 %v635, %v650
    %v667 = vmul.f32 %v637, %v651
    %v668 = vadd.f32 %v664, %v666
    %v669 = vadd.f32 %v665, %v667
    %v670 = vtanh.pop %v668
    %v671 = vtanh.pop %v669
    %v672 = vmul.f32 %v661, %v670
    %v673 = vmul.f32 %v663, %v671
    %v674 = vpack.c.bf16 %v672, %v672
    %v675 = vpack.c.bf16 %v673, %v673
    %v678 = vunpack.c.l.b16 %v674
    %v679 = vunpack.c.l.b16 %v675
    %v680 = vrot.slane %v679, 7
    %vm681 = vcmask 1041409
    %v682 = vsel %vm681, %v680, %v678
    %v683 = vpack.c.b16 %v682, %v682
    %685 = vmatprep.subr.bf16.mxu0 %v457
    %686 = vmatpush1.bf16.msra.mxu0 %v456
    %687 = vmatprep.subr.bf16.mxu0 %v461
    %688 = vmatpush1.bf16.msra.mxu0 %v460
    %689 = vmatprep.subr.bf16.mxu0 %v465
    %690 = vmatpush1.bf16.msra.mxu0 %v464
    %691 = vmatprep.subr.bf16.mxu0 %v469
    %692 = vmatpush1.bf16.msra.mxu0 %v468
    %693 = vmatprep.subr.bf16.mxu0 %v473
    %694 = vmatpush1.bf16.msra.mxu0 %v472
    %695 = vmatprep.subr.bf16.mxu0 %v477
    %696 = vmatpush1.bf16.msra.mxu0 %v476
    %697 = vmatprep.subr.bf16.mxu0 %v481
    %698 = vmatpush1.bf16.msra.mxu0 %v480
    %699 = vmatprep.subr.bf16.mxu0 %v485
    %700 = vmatpush1.bf16.msra.mxu0 %v484
    %701 = vmatprep.subr.bf16.mxu0 0
    %702 = vmatpush1.bf16.msra.mxu0 0
    %703 = vmatprep.subr.bf16.mxu0 0
    %704 = vmatpush1.bf16.msra.mxu0 0
    %705 = vmatprep.subr.bf16.mxu0 0
    %706 = vmatpush1.bf16.msra.mxu0 0
    %707 = vmatprep.subr.bf16.mxu0 0
    %708 = vmatpush1.bf16.msra.mxu0 0
    %709 = vmatprep.subr.bf16.mxu0 0
    %710 = vmatpush1.bf16.msra.mxu0 0
    %711 = vmatprep.subr.bf16.mxu0 0
    %712 = vmatpush1.bf16.msra.mxu0 0
    %713 = vmatprep.subr.bf16.mxu0 0
    %714 = vmatpush1.bf16.msra.mxu0 0
    %715 = vmatprep.subr.bf16.mxu0 0
    %716 = vmatpush1.bf16.msra.mxu0 0
    %717 = vmatprep.mubr.bf16.mxu0 0
    %718 = vmatmul.mubr.bf16.gmra.mrb[0].mxu0 %v683
    %v719 = vpop.f32.mrb[0].mxu0
    %v720 = vadd.f32 0.0, %v719
    %v721 = vpop.f32.mrb[0].mxu0
    %v722 = vadd.f32 0.0, %v721
    %v723 = vpop.f32.mrb[0].mxu0
    %v724 = vpop.f32.mrb[0].mxu0
    %725 = vdwg.mxu0
    %726 = vmatprep.subr.bf16.mxu0 %v459
    %727 = vmatpush1.bf16.msra.mxu0 %v458
    %728 = vmatprep.subr.bf16.mxu0 %v463
    %729 = vmatpush1.bf16.msra.mxu0 %v462
    %730 = vmatprep.subr.bf16.mxu0 %v467
    %731 = vmatpush1.bf16.msra.mxu0 %v466
    %732 = vmatprep.subr.bf16.mxu0 %v471
    %733 = vmatpush1.bf16.msra.mxu0 %v470
    %734 = vmatprep.subr.bf16.mxu0 %v475
    %735 = vmatpush1.bf16.msra.mxu0 %v474
    %736 = vmatprep.subr.bf16.mxu0 %v479
    %737 = vmatpush1.bf16.msra.mxu0 %v478
    %738 = vmatprep.subr.bf16.mxu0 %v483
    %739 = vmatpush1.bf16.msra.mxu0 %v482
    %740 = vmatprep.subr.bf16.mxu0 %v487
    %741 = vmatpush1.bf16.msra.mxu0 %v486
    %742 = vmatprep.subr.bf16.mxu0 0
    %743 = vmatpush1.bf16.msra.mxu0 0
    %744 = vmatprep.subr.bf16.mxu0 0
    %745 = vmatpush1.bf16.msra.mxu0 0
    %746 = vmatprep.subr.bf16.mxu0 0
    %747 = vmatpush1.bf16.msra.mxu0 0
    %748 = vmatprep.subr.bf16.mxu0 0
    %749 = vmatpush1.bf16.msra.mxu0 0
    %750 = vmatprep.subr.bf16.mxu0 0
    %751 = vmatpush1.bf16.msra.mxu0 0
    %752 = vmatprep.subr.bf16.mxu0 0
    %753 = vmatpush1.bf16.msra.mxu0 0
    %754 = vmatprep.subr.bf16.mxu0 0
    %755 = vmatpush1.bf16.msra.mxu0 0
    %756 = vmatprep.subr.bf16.mxu0 0
    %757 = vmatpush1.bf16.msra.mxu0 0
    %758 = vmatprep.mubr.bf16.mxu0 0
    %759 = vmatmul.mubr.bf16.gmra.mrb[0].mxu0 %v683
    %v760 = vpop.f32.mrb[0].mxu0
    %v761 = vadd.f32 0.0, %v760
    %v762 = vpop.f32.mrb[0].mxu0
    %v763 = vadd.f32 0.0, %v762
    %v764 = vpop.f32.mrb[0].mxu0
    %v765 = vpop.f32.mrb[0].mxu0
    %766 = vdwg.mxu0
    %v771 = vrot.slane %v720, 7
    %v772 = vrot.slane %v722, 7
    %v773 = vrot.slane %v761, 7
    %v774 = vrot.slane %v763, 7
    %v783 = vadd.f32 %v277, %v771
    %v784 = vadd.f32 %v279, %v772
    %v785 = vadd.f32 %v320, %v773
    %v786 = vadd.f32 %v322, %v774
    %v787 = vadd.f32 %v281, %v720
    %v788 = vadd.f32 %v283, %v722
    %v789 = vadd.f32 %v324, %v761
    %v790 = vadd.f32 %v326, %v763
    %v791 = vxor.u32 %v783, 2147483648
    %v792 = vxor.u32 %v787, 2147483648
    %v793 = vmul.f32 %v791, 1.442695
    %v794 = vpow.pop %v793
    %v795 = vmul.f32 %v792, 1.442695
    %v796 = vpow.pop %v795
    %v797 = vadd.f32 %v794, 1.0
    %v798 = vadd.f32 %v796, 1.0
    %v799 = vrcp.pop %v797
    %v800 = vmul.f32 1.0, %v799
    %v801 = vrcp.pop %v798
    %v802 = vmul.f32 1.0, %v801
    %v803 = vxor.u32 %v784, 2147483648
    %v804 = vxor.u32 %v788, 2147483648
    %v805 = vmul.f32 %v803, 1.442695
    %v806 = vpow.pop %v805
    %v807 = vmul.f32 %v804, 1.442695
    %v808 = vpow.pop %v807
    %v809 = vadd.f32 %v806, 1.0
    %v810 = vadd.f32 %v808, 1.0
    %v811 = vrcp.pop %v809
    %v812 = vmul.f32 1.0, %v811
    %v813 = vrcp.pop %v810
    %v814 = vmul.f32 1.0, %v813
    %v815 = vtanh.pop %v785
    %v816 = vtanh.pop %v789
    %v817 = vxor.u32 %v786, 2147483648
    %v818 = vxor.u32 %v790, 2147483648
    %v819 = vmul.f32 %v817, 1.442695
    %v820 = vpow.pop %v819
    %v821 = vmul.f32 %v818, 1.442695
    %v822 = vpow.pop %v821
    %v823 = vadd.f32 %v820, 1.0
    %v824 = vadd.f32 %v822, 1.0
    %v825 = vrcp.pop %v823
    %v826 = vmul.f32 1.0, %v825
    %v827 = vrcp.pop %v824
    %v828 = vmul.f32 1.0, %v827
    %v831 = vrot.slane %v668, 7
    %v832 = vrot.slane %v669, 7
    %v835 = vmul.f32 %v812, %v831
    %v836 = vmul.f32 %v814, %v832
    %v837 = vmul.f32 %v800, %v815
    %v838 = vmul.f32 %v802, %v816
    %v839 = vadd.f32 %v835, %v837
    %v840 = vadd.f32 %v836, %v838
    %v841 = vtanh.pop %v839
    %v842 = vtanh.pop %v840
    %v843 = vmul.f32 %v826, %v841
    %v844 = vmul.f32 %v828, %v842
    %v845 = vpack.c.bf16 %v843, %v843
    %v846 = vpack.c.bf16 %v844, %v844
    %v849 = vunpack.c.l.b16 %v845
    %v850 = vunpack.c.l.b16 %v846
    %v851 = vrot.slane %v849, 1
    %v852 = vsel %vm681, %v850, %v851
    %v853 = vpack.c.b16 %v852, %v852
    %855 = vmatprep.subr.bf16.mxu0 %v457
    %856 = vmatpush1.bf16.msra.mxu0 %v456
    %857 = vmatprep.subr.bf16.mxu0 %v461
    %858 = vmatpush1.bf16.msra.mxu0 %v460
    %859 = vmatprep.subr.bf16.mxu0 %v465
    %860 = vmatpush1.bf16.msra.mxu0 %v464
    %861 = vmatprep.subr.bf16.mxu0 %v469
    %862 = vmatpush1.bf16.msra.mxu0 %v468
    %863 = vmatprep.subr.bf16.mxu0 %v473
    %864 = vmatpush1.bf16.msra.mxu0 %v472
    %865 = vmatprep.subr.bf16.mxu0 %v477
    %866 = vmatpush1.bf16.msra.mxu0 %v476
    %867 = vmatprep.subr.bf16.mxu0 %v481
    %868 = vmatpush1.bf16.msra.mxu0 %v480
    %869 = vmatprep.subr.bf16.mxu0 %v485
    %870 = vmatpush1.bf16.msra.mxu0 %v484
    %871 = vmatprep.subr.bf16.mxu0 0
    %872 = vmatpush1.bf16.msra.mxu0 0
    %873 = vmatprep.subr.bf16.mxu0 0
    %874 = vmatpush1.bf16.msra.mxu0 0
    %875 = vmatprep.subr.bf16.mxu0 0
    %876 = vmatpush1.bf16.msra.mxu0 0
    %877 = vmatprep.subr.bf16.mxu0 0
    %878 = vmatpush1.bf16.msra.mxu0 0
    %879 = vmatprep.subr.bf16.mxu0 0
    %880 = vmatpush1.bf16.msra.mxu0 0
    %881 = vmatprep.subr.bf16.mxu0 0
    %882 = vmatpush1.bf16.msra.mxu0 0
    %883 = vmatprep.subr.bf16.mxu0 0
    %884 = vmatpush1.bf16.msra.mxu0 0
    %885 = vmatprep.subr.bf16.mxu0 0
    %886 = vmatpush1.bf16.msra.mxu0 0
    %887 = vmatprep.mubr.bf16.mxu0 0
    %888 = vmatmul.mubr.bf16.gmra.mrb[0].mxu0 %v853
    %v889 = vpop.f32.mrb[0].mxu0
    %v890 = vadd.f32 0.0, %v889
    %v891 = vpop.f32.mrb[0].mxu0
    %v892 = vadd.f32 0.0, %v891
    %v893 = vpop.f32.mrb[0].mxu0
    %v894 = vpop.f32.mrb[0].mxu0
    %895 = vdwg.mxu0
    %896 = vmatprep.subr.bf16.mxu0 %v459
    %897 = vmatpush1.bf16.msra.mxu0 %v458
    %898 = vmatprep.subr.bf16.mxu0 %v463
    %899 = vmatpush1.bf16.msra.mxu0 %v462
    %900 = vmatprep.subr.bf16.mxu0 %v467
    %901 = vmatpush1.bf16.msra.mxu0 %v466
    %902 = vmatprep.subr.bf16.mxu0 %v471
    %903 = vmatpush1.bf16.msra.mxu0 %v470
    %904 = vmatprep.subr.bf16.mxu0 %v475
    %905 = vmatpush1.bf16.msra.mxu0 %v474
    %906 = vmatprep.subr.bf16.mxu0 %v479
    %907 = vmatpush1.bf16.msra.mxu0 %v478
    %908 = vmatprep.subr.bf16.mxu0 %v483
    %909 = vmatpush1.bf16.msra.mxu0 %v482
    %910 = vmatprep.subr.bf16.mxu0 %v487
    %911 = vmatpush1.bf16.msra.mxu0 %v486
    %912 = vmatprep.subr.bf16.mxu0 0
    %913 = vmatpush1.bf16.msra.mxu0 0
    %914 = vmatprep.subr.bf16.mxu0 0
    %915 = vmatpush1.bf16.msra.mxu0 0
    %916 = vmatprep.subr.bf16.mxu0 0
    %917 = vmatpush1.bf16.msra.mxu0 0
    %918 = vmatprep.subr.bf16.mxu0 0
    %919 = vmatpush1.bf16.msra.mxu0 0
    %920 = vmatprep.subr.bf16.mxu0 0
    %921 = vmatpush1.bf16.msra.mxu0 0
    %922 = vmatprep.subr.bf16.mxu0 0
    %923 = vmatpush1.bf16.msra.mxu0 0
    %924 = vmatprep.subr.bf16.mxu0 0
    %925 = vmatpush1.bf16.msra.mxu0 0
    %926 = vmatprep.subr.bf16.mxu0 0
    %927 = vmatpush1.bf16.msra.mxu0 0
    %928 = vmatprep.mubr.bf16.mxu0 0
    %929 = vmatmul.mubr.bf16.gmra.mrb[0].mxu0 %v853
    %v930 = vpop.f32.mrb[0].mxu0
    %v931 = vadd.f32 0.0, %v930
    %v932 = vpop.f32.mrb[0].mxu0
    %v933 = vadd.f32 0.0, %v932
    %v934 = vpop.f32.mrb[0].mxu0
    %v935 = vpop.f32.mrb[0].mxu0
    %936 = vdwg.mxu0
    %v941 = vrot.slane %v890, 6
    %v942 = vrot.slane %v892, 6
    %v943 = vrot.slane %v931, 6
    %v944 = vrot.slane %v933, 6
    %v945 = vrot.slane %v890, 7
    %v946 = vrot.slane %v892, 7
    %v947 = vrot.slane %v931, 7
    %v948 = vrot.slane %v933, 7
    %v957 = vadd.f32 %v277, %v941
    %v958 = vadd.f32 %v279, %v942
    %v959 = vadd.f32 %v320, %v943
    %v960 = vadd.f32 %v322, %v944
    %v961 = vadd.f32 %v281, %v945
    %v962 = vadd.f32 %v283, %v946
    %v963 = vadd.f32 %v324, %v947
    %v964 = vadd.f32 %v326, %v948
    %v965 = vxor.u32 %v957, 2147483648
    %v966 = vxor.u32 %v961, 2147483648
    %v967 = vmul.f32 %v965, 1.442695
    %v968 = vpow.pop %v967
    %v969 = vmul.f32 %v966, 1.442695
    %v970 = vpow.pop %v969
    %v971 = vadd.f32 %v968, 1.0
    %v972 = vadd.f32 %v970, 1.0
    %v973 = vrcp.pop %v971
    %v974 = vmul.f32 1.0, %v973
    %v975 = vrcp.pop %v972
    %v976 = vmul.f32 1.0, %v975
    %v977 = vxor.u32 %v958, 2147483648
    %v978 = vxor.u32 %v962, 2147483648
    %v979 = vmul.f32 %v977, 1.442695
    %v980 = vpow.pop %v979
    %v981 = vmul.f32 %v978, 1.442695
    %v982 = vpow.pop %v981
    %v983 = vadd.f32 %v980, 1.0
    %v984 = vadd.f32 %v982, 1.0
    %v985 = vrcp.pop %v983
    %v986 = vmul.f32 1.0, %v985
    %v987 = vrcp.pop %v984
    %v988 = vmul.f32 1.0, %v987
    %v989 = vtanh.pop %v959
    %v990 = vtanh.pop %v963
    %v991 = vxor.u32 %v960, 2147483648
    %v992 = vxor.u32 %v964, 2147483648
    %v993 = vmul.f32 %v991, 1.442695
    %v994 = vpow.pop %v993
    %v995 = vmul.f32 %v992, 1.442695
    %v996 = vpow.pop %v995
    %v997 = vadd.f32 %v994, 1.0
    %v998 = vadd.f32 %v996, 1.0
    %v999 = vrcp.pop %v997
    %v1000 = vmul.f32 1.0, %v999
    %v1001 = vrcp.pop %v998
    %v1002 = vmul.f32 1.0, %v1001
    %v1005 = vrot.slane %v839, 7
    %v1006 = vrot.slane %v840, 7
    %v1009 = vmul.f32 %v986, %v1005
    %v1010 = vmul.f32 %v988, %v1006
    %v1011 = vmul.f32 %v974, %v989
    %v1012 = vmul.f32 %v976, %v990
    %v1013 = vadd.f32 %v1009, %v1011
    %v1014 = vadd.f32 %v1010, %v1012
    %v1015 = vtanh.pop %v1013
    %v1016 = vtanh.pop %v1014
    %v1017 = vmul.f32 %v1000, %v1015
    %v1018 = vmul.f32 %v1002, %v1016
    %v1019 = vpack.c.bf16 %v1017, %v1017
    %v1020 = vpack.c.bf16 %v1018, %v1018
    %v1023 = vunpack.c.l.b16 %v1019
    %v1024 = vunpack.c.l.b16 %v1020
    %v1025 = vrot.slane %v1023, 2
    %v1026 = vrot.slane %v1024, 1
    %v1027 = vsel %vm681, %v1026, %v1025
    %v1028 = vpack.c.b16 %v1027, %v1027
    %1030 = vmatprep.subr.bf16.mxu0 %v457
    %1031 = vmatpush1.bf16.msra.mxu0 %v456
    %1032 = vmatprep.subr.bf16.mxu0 %v461
    %1033 = vmatpush1.bf16.msra.mxu0 %v460
    %1034 = vmatprep.subr.bf16.mxu0 %v465
    %1035 = vmatpush1.bf16.msra.mxu0 %v464
    %1036 = vmatprep.subr.bf16.mxu0 %v469
    %1037 = vmatpush1.bf16.msra.mxu0 %v468
    %1038 = vmatprep.subr.bf16.mxu0 %v473
    %1039 = vmatpush1.bf16.msra.mxu0 %v472
    %1040 = vmatprep.subr.bf16.mxu0 %v477
    %1041 = vmatpush1.bf16.msra.mxu0 %v476
    %1042 = vmatprep.subr.bf16.mxu0 %v481
    %1043 = vmatpush1.bf16.msra.mxu0 %v480
    %1044 = vmatprep.subr.bf16.mxu0 %v485
    %1045 = vmatpush1.bf16.msra.mxu0 %v484
    %1046 = vmatprep.subr.bf16.mxu0 0
    %1047 = vmatpush1.bf16.msra.mxu0 0
    %1048 = vmatprep.subr.bf16.mxu0 0
    %1049 = vmatpush1.bf16.msra.mxu0 0
    %1050 = vmatprep.subr.bf16.mxu0 0
    %1051 = vmatpush1.bf16.msra.mxu0 0
    %1052 = vmatprep.subr.bf16.mxu0 0
    %1053 = vmatpush1.bf16.msra.mxu0 0
    %1054 = vmatprep.subr.bf16.mxu0 0
    %1055 = vmatpush1.bf16.msra.mxu0 0
    %1056 = vmatprep.subr.bf16.mxu0 0
    %1057 = vmatpush1.bf16.msra.mxu0 0
    %1058 = vmatprep.subr.bf16.mxu0 0
    %1059 = vmatpush1.bf16.msra.mxu0 0
    %1060 = vmatprep.subr.bf16.mxu0 0
    %1061 = vmatpush1.bf16.msra.mxu0 0
    %1062 = vmatprep.mubr.bf16.mxu0 0
    %1063 = vmatmul.mubr.bf16.gmra.mrb[0].mxu0 %v1028
    %v1064 = vpop.f32.mrb[0].mxu0
    %v1065 = vadd.f32 0.0, %v1064
    %v1066 = vpop.f32.mrb[0].mxu0
    %v1067 = vadd.f32 0.0, %v1066
    %v1068 = vpop.f32.mrb[0].mxu0
    %v1069 = vpop.f32.mrb[0].mxu0
    %1070 = vdwg.mxu0
    %1071 = vmatprep.subr.bf16.mxu0 %v459
    %1072 = vmatpush1.bf16.msra.mxu0 %v458
    %1073 = vmatprep.subr.bf16.mxu0 %v463
    %1074 = vmatpush1.bf16.msra.mxu0 %v462
    %1075 = vmatprep.subr.bf16.mxu0 %v467
    %1076 = vmatpush1.bf16.msra.mxu0 %v466
    %1077 = vmatprep.subr.bf16.mxu0 %v471
    %1078 = vmatpush1.bf16.msra.mxu0 %v470
    %1079 = vmatprep.subr.bf16.mxu0 %v475
    %1080 = vmatpush1.bf16.msra.mxu0 %v474
    %1081 = vmatprep.subr.bf16.mxu0 %v479
    %1082 = vmatpush1.bf16.msra.mxu0 %v478
    %1083 = vmatprep.subr.bf16.mxu0 %v483
    %1084 = vmatpush1.bf16.msra.mxu0 %v482
    %1085 = vmatprep.subr.bf16.mxu0 %v487
    %1086 = vmatpush1.bf16.msra.mxu0 %v486
    %1087 = vmatprep.subr.bf16.mxu0 0
    %1088 = vmatpush1.bf16.msra.mxu0 0
    %1089 = vmatprep.subr.bf16.mxu0 0
    %1090 = vmatpush1.bf16.msra.mxu0 0
    %1091 = vmatprep.subr.bf16.mxu0 0
    %1092 = vmatpush1.bf16.msra.mxu0 0
    %1093 = vmatprep.subr.bf16.mxu0 0
    %1094 = vmatpush1.bf16.msra.mxu0 0
    %1095 = vmatprep.subr.bf16.mxu0 0
    %1096 = vmatpush1.bf16.msra.mxu0 0
    %1097 = vmatprep.subr.bf16.mxu0 0
    %1098 = vmatpush1.bf16.msra.mxu0 0
    %1099 = vmatprep.subr.bf16.mxu0 0
    %1100 = vmatpush1.bf16.msra.mxu0 0
    %1101 = vmatprep.subr.bf16.mxu0 0
    %1102 = vmatpush1.bf16.msra.mxu0 0
    %1103 = vmatprep.mubr.bf16.mxu0 0
    %1104 = vmatmul.mubr.bf16.gmra.mrb[0].mxu0 %v1028
    %v1105 = vpop.f32.mrb[0].mxu0
    %v1106 = vadd.f32 0.0, %v1105
    %v1107 = vpop.f32.mrb[0].mxu0
    %v1108 = vadd.f32 0.0, %v1107
    %v1109 = vpop.f32.mrb[0].mxu0
    %v1110 = vpop.f32.mrb[0].mxu0
    %1111 = vdwg.mxu0
    %v1116 = vrot.slane %v1065, 5
    %v1117 = vrot.slane %v1067, 5
    %v1118 = vrot.slane %v1106, 5
    %v1119 = vrot.slane %v1108, 5
    %v1120 = vrot.slane %v1065, 6
    %v1121 = vrot.slane %v1067, 6
    %v1122 = vrot.slane %v1106, 6
    %v1123 = vrot.slane %v1108, 6
    %v1132 = vadd.f32 %v277, %v1116
    %v1133 = vadd.f32 %v279, %v1117
    %v1134 = vadd.f32 %v320, %v1118
    %v1135 = vadd.f32 %v322, %v1119
    %v1136 = vadd.f32 %v281, %v1120
    %v1137 = vadd.f32 %v283, %v1121
    %v1138 = vadd.f32 %v324, %v1122
    %v1139 = vadd.f32 %v326, %v1123
    %v1140 = vxor.u32 %v1132, 2147483648
    %v1141 = vxor.u32 %v1136, 2147483648
    %v1142 = vmul.f32 %v1140, 1.442695
    %v1143 = vpow.pop %v1142
    %v1144 = vmul.f32 %v1141, 1.442695
    %v1145 = vpow.pop %v1144
    %v1146 = vadd.f32 %v1143, 1.0
    %v1147 = vadd.f32 %v1145, 1.0
    %v1148 = vrcp.pop %v1146
    %v1149 = vmul.f32 1.0, %v1148
    %v1150 = vrcp.pop %v1147
    %v1151 = vmul.f32 1.0, %v1150
    %v1152 = vxor.u32 %v1133, 2147483648
    %v1153 = vxor.u32 %v1137, 2147483648
    %v1154 = vmul.f32 %v1152, 1.442695
    %v1155 = vpow.pop %v1154
    %v1156 = vmul.f32 %v1153, 1.442695
    %v1157 = vpow.pop %v1156
    %v1158 = vadd.f32 %v1155, 1.0
    %v1159 = vadd.f32 %v1157, 1.0
    %v1160 = vrcp.pop %v1158
    %v1161 = vmul.f32 1.0, %v1160
    %v1162 = vrcp.pop %v1159
    %v1163 = vmul.f32 1.0, %v1162
    %v1164 = vtanh.pop %v1134
    %v1165 = vtanh.pop %v1138
    %v1166 = vxor.u32 %v1135, 2147483648
    %v1167 = vxor.u32 %v1139, 2147483648
    %v1168 = vmul.f32 %v1166, 1.442695
    %v1169 = vpow.pop %v1168
    %v1170 = vmul.f32 %v1167, 1.442695
    %v1171 = vpow.pop %v1170
    %v1172 = vadd.f32 %v1169, 1.0
    %v1173 = vadd.f32 %v1171, 1.0
    %v1174 = vrcp.pop %v1172
    %v1175 = vmul.f32 1.0, %v1174
    %v1176 = vrcp.pop %v1173
    %v1177 = vmul.f32 1.0, %v1176
    %v1180 = vrot.slane %v1013, 7
    %v1181 = vrot.slane %v1014, 7
    %v1184 = vmul.f32 %v1161, %v1180
    %v1185 = vmul.f32 %v1163, %v1181
    %v1186 = vmul.f32 %v1149, %v1164
    %v1187 = vmul.f32 %v1151, %v1165
    %v1188 = vadd.f32 %v1184, %v1186
    %v1189 = vadd.f32 %v1185, %v1187
    %v1190 = vtanh.pop %v1188
    %v1191 = vtanh.pop %v1189
    %v1192 = vmul.f32 %v1175, %v1190
    %v1193 = vmul.f32 %v1177, %v1191
    %v1194 = vpack.c.bf16 %v1192, %v1192
    %v1195 = vpack.c.bf16 %v1193, %v1193
    %v1198 = vunpack.c.l.b16 %v1194
    %v1199 = vunpack.c.l.b16 %v1195
    %v1200 = vrot.slane %v1198, 3
    %v1201 = vrot.slane %v1199, 2
    %v1202 = vsel %vm681, %v1201, %v1200
    %v1203 = vpack.c.b16 %v1202, %v1202
    %1205 = vmatprep.subr.bf16.mxu0 %v457
    %1206 = vmatpush1.bf16.msra.mxu0 %v456
    %1207 = vmatprep.subr.bf16.mxu0 %v461
    %1208 = vmatpush1.bf16.msra.mxu0 %v460
    %1209 = vmatprep.subr.bf16.mxu0 %v465
    %1210 = vmatpush1.bf16.msra.mxu0 %v464
    %1211 = vmatprep.subr.bf16.mxu0 %v469
    %1212 = vmatpush1.bf16.msra.mxu0 %v468
    %1213 = vmatprep.subr.bf16.mxu0 %v473
    %1214 = vmatpush1.bf16.msra.mxu0 %v472
    %1215 = vmatprep.subr.bf16.mxu0 %v477
    %1216 = vmatpush1.bf16.msra.mxu0 %v476
    %1217 = vmatprep.subr.bf16.mxu0 %v481
    %1218 = vmatpush1.bf16.msra.mxu0 %v480
    %1219 = vmatprep.subr.bf16.mxu0 %v485
    %1220 = vmatpush1.bf16.msra.mxu0 %v484
    %1221 = vmatprep.subr.bf16.mxu0 0
    %1222 = vmatpush1.bf16.msra.mxu0 0
    %1223 = vmatprep.subr.bf16.mxu0 0
    %1224 = vmatpush1.bf16.msra.mxu0 0
    %1225 = vmatprep.subr.bf16.mxu0 0
    %1226 = vmatpush1.bf16.msra.mxu0 0
    %1227 = vmatprep.subr.bf16.mxu0 0
    %1228 = vmatpush1.bf16.msra.mxu0 0
    %1229 = vmatprep.subr.bf16.mxu0 0
    %1230 = vmatpush1.bf16.msra.mxu0 0
    %1231 = vmatprep.subr.bf16.mxu0 0
    %1232 = vmatpush1.bf16.msra.mxu0 0
    %1233 = vmatprep.subr.bf16.mxu0 0
    %1234 = vmatpush1.bf16.msra.mxu0 0
    %1235 = vmatprep.subr.bf16.mxu0 0
    %1236 = vmatpush1.bf16.msra.mxu0 0
    %1237 = vmatprep.mubr.bf16.mxu0 0
    %1238 = vmatmul.mubr.bf16.gmra.mrb[0].mxu0 %v1203
    %v1239 = vpop.f32.mrb[0].mxu0
    %v1240 = vadd.f32 0.0, %v1239
    %v1241 = vpop.f32.mrb[0].mxu0
    %v1242 = vadd.f32 0.0, %v1241
    %v1243 = vpop.f32.mrb[0].mxu0
    %v1244 = vpop.f32.mrb[0].mxu0
    %1245 = vdwg.mxu0
    %1246 = vmatprep.subr.bf16.mxu0 %v459
    %1247 = vmatpush1.bf16.msra.mxu0 %v458
    %1248 = vmatprep.subr.bf16.mxu0 %v463
    %1249 = vmatpush1.bf16.msra.mxu0 %v462
    %1250 = vmatprep.subr.bf16.mxu0 %v467
    %1251 = vmatpush1.bf16.msra.mxu0 %v466
    %1252 = vmatprep.subr.bf16.mxu0 %v471
    %1253 = vmatpush1.bf16.msra.mxu0 %v470
    %1254 = vmatprep.subr.bf16.mxu0 %v475
    %1255 = vmatpush1.bf16.msra.mxu0 %v474
    %1256 = vmatprep.subr.bf16.mxu0 %v479
    %1257 = vmatpush1.bf16.msra.mxu0 %v478
    %1258 = vmatprep.subr.bf16.mxu0 %v483
    %1259 = vmatpush1.bf16.msra.mxu0 %v482
    %1260 = vmatprep.subr.bf16.mxu0 %v487
    %1261 = vmatpush1.bf16.msra.mxu0 %v486
    %1262 = vmatprep.subr.bf16.mxu0 0
    %1263 = vmatpush1.bf16.msra.mxu0 0
    %1264 = vmatprep.subr.bf16.mxu0 0
    %1265 = vmatpush1.bf16.msra.mxu0 0
    %1266 = vmatprep.subr.bf16.mxu0 0
    %1267 = vmatpush1.bf16.msra.mxu0 0
    %1268 = vmatprep.subr.bf16.mxu0 0
    %1269 = vmatpush1.bf16.msra.mxu0 0
    %1270 = vmatprep.subr.bf16.mxu0 0
    %1271 = vmatpush1.bf16.msra.mxu0 0
    %1272 = vmatprep.subr.bf16.mxu0 0
    %1273 = vmatpush1.bf16.msra.mxu0 0
    %1274 = vmatprep.subr.bf16.mxu0 0
    %1275 = vmatpush1.bf16.msra.mxu0 0
    %1276 = vmatprep.subr.bf16.mxu0 0
    %1277 = vmatpush1.bf16.msra.mxu0 0
    %1278 = vmatprep.mubr.bf16.mxu0 0
    %1279 = vmatmul.mubr.bf16.gmra.mrb[0].mxu0 %v1203
    %v1280 = vpop.f32.mrb[0].mxu0
    %v1281 = vadd.f32 0.0, %v1280
    %v1282 = vpop.f32.mrb[0].mxu0
    %v1283 = vadd.f32 0.0, %v1282
    %v1284 = vpop.f32.mrb[0].mxu0
    %v1285 = vpop.f32.mrb[0].mxu0
    %1286 = vdwg.mxu0
    %v1291 = vrot.slane %v1240, 4
    %v1292 = vrot.slane %v1242, 4
    %v1293 = vrot.slane %v1281, 4
    %v1294 = vrot.slane %v1283, 4
    %v1295 = vrot.slane %v1240, 5
    %v1296 = vrot.slane %v1242, 5
    %v1297 = vrot.slane %v1281, 5
    %v1298 = vrot.slane %v1283, 5
    %v1307 = vadd.f32 %v277, %v1291
    %v1308 = vadd.f32 %v279, %v1292
    %v1309 = vadd.f32 %v320, %v1293
    %v1310 = vadd.f32 %v322, %v1294
    %v1311 = vadd.f32 %v281, %v1295
    %v1312 = vadd.f32 %v283, %v1296
    %v1313 = vadd.f32 %v324, %v1297
    %v1314 = vadd.f32 %v326, %v1298
    %v1315 = vxor.u32 %v1307, 2147483648
    %v1316 = vxor.u32 %v1311, 2147483648
    %v1317 = vmul.f32 %v1315, 1.442695
    %v1318 = vpow.pop %v1317
    %v1319 = vmul.f32 %v1316, 1.442695
    %v1320 = vpow.pop %v1319
    %v1321 = vadd.f32 %v1318, 1.0
    %v1322 = vadd.f32 %v1320, 1.0
    %v1323 = vrcp.pop %v1321
    %v1324 = vmul.f32 1.0, %v1323
    %v1325 = vrcp.pop %v1322
    %v1326 = vmul.f32 1.0, %v1325
    %v1327 = vxor.u32 %v1308, 2147483648
    %v1328 = vxor.u32 %v1312, 2147483648
    %v1329 = vmul.f32 %v1327, 1.442695
    %v1330 = vpow.pop %v1329
    %v1331 = vmul.f32 %v1328, 1.442695
    %v1332 = vpow.pop %v1331
    %v1333 = vadd.f32 %v1330, 1.0
    %v1334 = vadd.f32 %v1332, 1.0
    %v1335 = vrcp.pop %v1333
    %v1336 = vmul.f32 1.0, %v1335
    %v1337 = vrcp.pop %v1334
    %v1338 = vmul.f32 1.0, %v1337
    %v1339 = vtanh.pop %v1309
    %v1340 = vtanh.pop %v1313
    %v1341 = vxor.u32 %v1310, 2147483648
    %v1342 = vxor.u32 %v1314, 2147483648
    %v1343 = vmul.f32 %v1341, 1.442695
    %v1344 = vpow.pop %v1343
    %v1345 = vmul.f32 %v1342, 1.442695
    %v1346 = vpow.pop %v1345
    %v1347 = vadd.f32 %v1344, 1.0
    %v1348 = vadd.f32 %v1346, 1.0
    %v1349 = vrcp.pop %v1347
    %v1350 = vmul.f32 1.0, %v1349
    %v1351 = vrcp.pop %v1348
    %v1352 = vmul.f32 1.0, %v1351
    %v1355 = vrot.slane %v1188, 7
    %v1356 = vrot.slane %v1189, 7
    %v1359 = vmul.f32 %v1336, %v1355
    %v1360 = vmul.f32 %v1338, %v1356
    %v1361 = vmul.f32 %v1324, %v1339
    %v1362 = vmul.f32 %v1326, %v1340
    %v1363 = vadd.f32 %v1359, %v1361
    %v1364 = vadd.f32 %v1360, %v1362
    %v1365 = vtanh.pop %v1363
    %v1366 = vtanh.pop %v1364
    %v1367 = vmul.f32 %v1350, %v1365
    %v1368 = vmul.f32 %v1352, %v1366
    %v1369 = vpack.c.bf16 %v1367, %v1367
    %v1370 = vpack.c.bf16 %v1368, %v1368
    %v1373 = vunpack.c.l.b16 %v1369
    %v1374 = vunpack.c.l.b16 %v1370
    %v1375 = vrot.slane %v1373, 4
    %v1376 = vrot.slane %v1374, 3
    %v1377 = vsel %vm681, %v1376, %v1375
    %v1378 = vpack.c.b16 %v1377, %v1377
    %1380 = vmatprep.subr.bf16.mxu0 %v457
    %1381 = vmatpush1.bf16.msra.mxu0 %v456
    %1382 = vmatprep.subr.bf16.mxu0 %v461
    %1383 = vmatpush1.bf16.msra.mxu0 %v460
    %1384 = vmatprep.subr.bf16.mxu0 %v465
    %1385 = vmatpush1.bf16.msra.mxu0 %v464
    %1386 = vmatprep.subr.bf16.mxu0 %v469
    %1387 = vmatpush1.bf16.msra.mxu0 %v468
    %1388 = vmatprep.subr.bf16.mxu0 %v473
    %1389 = vmatpush1.bf16.msra.mxu0 %v472
    %1390 = vmatprep.subr.bf16.mxu0 %v477
    %1391 = vmatpush1.bf16.msra.mxu0 %v476
    %1392 = vmatprep.subr.bf16.mxu0 %v481
    %1393 = vmatpush1.bf16.msra.mxu0 %v480
    %1394 = vmatprep.subr.bf16.mxu0 %v485
    %1395 = vmatpush1.bf16.msra.mxu0 %v484
    %1396 = vmatprep.subr.bf16.mxu0 0
    %1397 = vmatpush1.bf16.msra.mxu0 0
    %1398 = vmatprep.subr.bf16.mxu0 0
    %1399 = vmatpush1.bf16.msra.mxu0 0
    %1400 = vmatprep.subr.bf16.mxu0 0
    %1401 = vmatpush1.bf16.msra.mxu0 0
    %1402 = vmatprep.subr.bf16.mxu0 0
    %1403 = vmatpush1.bf16.msra.mxu0 0
    %1404 = vmatprep.subr.bf16.mxu0 0
    %1405 = vmatpush1.bf16.msra.mxu0 0
    %1406 = vmatprep.subr.bf16.mxu0 0
    %1407 = vmatpush1.bf16.msra.mxu0 0
    %1408 = vmatprep.subr.bf16.mxu0 0
    %1409 = vmatpush1.bf16.msra.mxu0 0
    %1410 = vmatprep.subr.bf16.mxu0 0
    %1411 = vmatpush1.bf16.msra.mxu0 0
    %1412 = vmatprep.mubr.bf16.mxu0 0
    %1413 = vmatmul.mubr.bf16.gmra.mrb[0].mxu0 %v1378
    %v1414 = vpop.f32.mrb[0].mxu0
    %v1415 = vadd.f32 0.0, %v1414
    %v1416 = vpop.f32.mrb[0].mxu0
    %v1417 = vadd.f32 0.0, %v1416
    %v1418 = vpop.f32.mrb[0].mxu0
    %v1419 = vpop.f32.mrb[0].mxu0
    %1420 = vdwg.mxu0
    %1421 = vmatprep.subr.bf16.mxu0 %v459
    %1422 = vmatpush1.bf16.msra.mxu0 %v458
    %1423 = vmatprep.subr.bf16.mxu0 %v463
    %1424 = vmatpush1.bf16.msra.mxu0 %v462
    %1425 = vmatprep.subr.bf16.mxu0 %v467
    %1426 = vmatpush1.bf16.msra.mxu0 %v466
    %1427 = vmatprep.subr.bf16.mxu0 %v471
    %1428 = vmatpush1.bf16.msra.mxu0 %v470
    %1429 = vmatprep.subr.bf16.mxu0 %v475
    %1430 = vmatpush1.bf16.msra.mxu0 %v474
    %1431 = vmatprep.subr.bf16.mxu0 %v479
    %1432 = vmatpush1.bf16.msra.mxu0 %v478
    %1433 = vmatprep.subr.bf16.mxu0 %v483
    %1434 = vmatpush1.bf16.msra.mxu0 %v482
    %1435 = vmatprep.subr.bf16.mxu0 %v487
    %1436 = vmatpush1.bf16.msra.mxu0 %v486
    %1437 = vmatprep.subr.bf16.mxu0 0
    %1438 = vmatpush1.bf16.msra.mxu0 0
    %1439 = vmatprep.subr.bf16.mxu0 0
    %1440 = vmatpush1.bf16.msra.mxu0 0
    %1441 = vmatprep.subr.bf16.mxu0 0
    %1442 = vmatpush1.bf16.msra.mxu0 0
    %1443 = vmatprep.subr.bf16.mxu0 0
    %1444 = vmatpush1.bf16.msra.mxu0 0
    %1445 = vmatprep.subr.bf16.mxu0 0
    %1446 = vmatpush1.bf16.msra.mxu0 0
    %1447 = vmatprep.subr.bf16.mxu0 0
    %1448 = vmatpush1.bf16.msra.mxu0 0
    %1449 = vmatprep.subr.bf16.mxu0 0
    %1450 = vmatpush1.bf16.msra.mxu0 0
    %1451 = vmatprep.subr.bf16.mxu0 0
    %1452 = vmatpush1.bf16.msra.mxu0 0
    %1453 = vmatprep.mubr.bf16.mxu0 0
    %1454 = vmatmul.mubr.bf16.gmra.mrb[0].mxu0 %v1378
    %v1455 = vpop.f32.mrb[0].mxu0
    %v1456 = vadd.f32 0.0, %v1455
    %v1457 = vpop.f32.mrb[0].mxu0
    %v1458 = vadd.f32 0.0, %v1457
    %v1459 = vpop.f32.mrb[0].mxu0
    %v1460 = vpop.f32.mrb[0].mxu0
    %1461 = vdwg.mxu0
    %v1466 = vrot.slane %v1415, 3
    %v1467 = vrot.slane %v1417, 3
    %v1468 = vrot.slane %v1456, 3
    %v1469 = vrot.slane %v1458, 3
    %v1470 = vrot.slane %v1415, 4
    %v1471 = vrot.slane %v1417, 4
    %v1472 = vrot.slane %v1456, 4
    %v1473 = vrot.slane %v1458, 4
    %v1482 = vadd.f32 %v277, %v1466
    %v1483 = vadd.f32 %v279, %v1467
    %v1484 = vadd.f32 %v320, %v1468
    %v1485 = vadd.f32 %v322, %v1469
    %v1486 = vadd.f32 %v281, %v1470
    %v1487 = vadd.f32 %v283, %v1471
    %v1488 = vadd.f32 %v324, %v1472
    %v1489 = vadd.f32 %v326, %v1473
    %v1490 = vxor.u32 %v1482, 2147483648
    %v1491 = vxor.u32 %v1486, 2147483648
    %v1492 = vmul.f32 %v1490, 1.442695
    %v1493 = vpow.pop %v1492
    %v1494 = vmul.f32 %v1491, 1.442695
    %v1495 = vpow.pop %v1494
    %v1496 = vadd.f32 %v1493, 1.0
    %v1497 = vadd.f32 %v1495, 1.0
    %v1498 = vrcp.pop %v1496
    %v1499 = vmul.f32 1.0, %v1498
    %v1500 = vrcp.pop %v1497
    %v1501 = vmul.f32 1.0, %v1500
    %v1502 = vxor.u32 %v1483, 2147483648
    %v1503 = vxor.u32 %v1487, 2147483648
    %v1504 = vmul.f32 %v1502, 1.442695
    %v1505 = vpow.pop %v1504
    %v1506 = vmul.f32 %v1503, 1.442695
    %v1507 = vpow.pop %v1506
    %v1508 = vadd.f32 %v1505, 1.0
    %v1509 = vadd.f32 %v1507, 1.0
    %v1510 = vrcp.pop %v1508
    %v1511 = vmul.f32 1.0, %v1510
    %v1512 = vrcp.pop %v1509
    %v1513 = vmul.f32 1.0, %v1512
    %v1514 = vtanh.pop %v1484
    %v1515 = vtanh.pop %v1488
    %v1516 = vxor.u32 %v1485, 2147483648
    %v1517 = vxor.u32 %v1489, 2147483648
    %v1518 = vmul.f32 %v1516, 1.442695
    %v1519 = vpow.pop %v1518
    %v1520 = vmul.f32 %v1517, 1.442695
    %v1521 = vpow.pop %v1520
    %v1522 = vadd.f32 %v1519, 1.0
    %v1523 = vadd.f32 %v1521, 1.0
    %v1524 = vrcp.pop %v1522
    %v1525 = vmul.f32 1.0, %v1524
    %v1526 = vrcp.pop %v1523
    %v1527 = vmul.f32 1.0, %v1526
    %v1530 = vrot.slane %v1363, 7
    %v1531 = vrot.slane %v1364, 7
    %v1534 = vmul.f32 %v1511, %v1530
    %v1535 = vmul.f32 %v1513, %v1531
    %v1536 = vmul.f32 %v1499, %v1514
    %v1537 = vmul.f32 %v1501, %v1515
    %v1538 = vadd.f32 %v1534, %v1536
    %v1539 = vadd.f32 %v1535, %v1537
    %v1540 = vtanh.pop %v1538
    %v1541 = vtanh.pop %v1539
    %v1542 = vmul.f32 %v1525, %v1540
    %v1543 = vmul.f32 %v1527, %v1541
    %v1544 = vpack.c.bf16 %v1542, %v1542
    %v1545 = vpack.c.bf16 %v1543, %v1543
    %v1548 = vunpack.c.l.b16 %v1544
    %v1549 = vunpack.c.l.b16 %v1545
    %v1550 = vrot.slane %v1548, 5
    %v1551 = vrot.slane %v1549, 4
    %v1552 = vsel %vm681, %v1551, %v1550
    %v1553 = vpack.c.b16 %v1552, %v1552
    %1555 = vmatprep.subr.bf16.mxu0 %v457
    %1556 = vmatpush1.bf16.msra.mxu0 %v456
    %1557 = vmatprep.subr.bf16.mxu0 %v461
    %1558 = vmatpush1.bf16.msra.mxu0 %v460
    %1559 = vmatprep.subr.bf16.mxu0 %v465
    %1560 = vmatpush1.bf16.msra.mxu0 %v464
    %1561 = vmatprep.subr.bf16.mxu0 %v469
    %1562 = vmatpush1.bf16.msra.mxu0 %v468
    %1563 = vmatprep.subr.bf16.mxu0 %v473
    %1564 = vmatpush1.bf16.msra.mxu0 %v472
    %1565 = vmatprep.subr.bf16.mxu0 %v477
    %1566 = vmatpush1.bf16.msra.mxu0 %v476
    %1567 = vmatprep.subr.bf16.mxu0 %v481
    %1568 = vmatpush1.bf16.msra.mxu0 %v480
    %1569 = vmatprep.subr.bf16.mxu0 %v485
    %1570 = vmatpush1.bf16.msra.mxu0 %v484
    %1571 = vmatprep.subr.bf16.mxu0 0
    %1572 = vmatpush1.bf16.msra.mxu0 0
    %1573 = vmatprep.subr.bf16.mxu0 0
    %1574 = vmatpush1.bf16.msra.mxu0 0
    %1575 = vmatprep.subr.bf16.mxu0 0
    %1576 = vmatpush1.bf16.msra.mxu0 0
    %1577 = vmatprep.subr.bf16.mxu0 0
    %1578 = vmatpush1.bf16.msra.mxu0 0
    %1579 = vmatprep.subr.bf16.mxu0 0
    %1580 = vmatpush1.bf16.msra.mxu0 0
    %1581 = vmatprep.subr.bf16.mxu0 0
    %1582 = vmatpush1.bf16.msra.mxu0 0
    %1583 = vmatprep.subr.bf16.mxu0 0
    %1584 = vmatpush1.bf16.msra.mxu0 0
    %1585 = vmatprep.subr.bf16.mxu0 0
    %1586 = vmatpush1.bf16.msra.mxu0 0
    %1587 = vmatprep.mubr.bf16.mxu0 0
    %1588 = vmatmul.mubr.bf16.gmra.mrb[0].mxu0 %v1553
    %v1589 = vpop.f32.mrb[0].mxu0
    %v1590 = vadd.f32 0.0, %v1589
    %v1591 = vpop.f32.mrb[0].mxu0
    %v1592 = vadd.f32 0.0, %v1591
    %v1593 = vpop.f32.mrb[0].mxu0
    %v1594 = vpop.f32.mrb[0].mxu0
    %1595 = vdwg.mxu0
    %1596 = vmatprep.subr.bf16.mxu0 %v459
    %1597 = vmatpush1.bf16.msra.mxu0 %v458
    %1598 = vmatprep.subr.bf16.mxu0 %v463
    %1599 = vmatpush1.bf16.msra.mxu0 %v462
    %1600 = vmatprep.subr.bf16.mxu0 %v467
    %1601 = vmatpush1.bf16.msra.mxu0 %v466
    %1602 = vmatprep.subr.bf16.mxu0 %v471
    %1603 = vmatpush1.bf16.msra.mxu0 %v470
    %1604 = vmatprep.subr.bf16.mxu0 %v475
    %1605 = vmatpush1.bf16.msra.mxu0 %v474
    %1606 = vmatprep.subr.bf16.mxu0 %v479
    %1607 = vmatpush1.bf16.msra.mxu0 %v478
    %1608 = vmatprep.subr.bf16.mxu0 %v483
    %1609 = vmatpush1.bf16.msra.mxu0 %v482
    %1610 = vmatprep.subr.bf16.mxu0 %v487
    %1611 = vmatpush1.bf16.msra.mxu0 %v486
    %1612 = vmatprep.subr.bf16.mxu0 0
    %1613 = vmatpush1.bf16.msra.mxu0 0
    %1614 = vmatprep.subr.bf16.mxu0 0
    %1615 = vmatpush1.bf16.msra.mxu0 0
    %1616 = vmatprep.subr.bf16.mxu0 0
    %1617 = vmatpush1.bf16.msra.mxu0 0
    %1618 = vmatprep.subr.bf16.mxu0 0
    %1619 = vmatpush1.bf16.msra.mxu0 0
    %1620 = vmatprep.subr.bf16.mxu0 0
    %1621 = vmatpush1.bf16.msra.mxu0 0
    %1622 = vmatprep.subr.bf16.mxu0 0
    %1623 = vmatpush1.bf16.msra.mxu0 0
    %1624 = vmatprep.subr.bf16.mxu0 0
    %1625 = vmatpush1.bf16.msra.mxu0 0
    %1626 = vmatprep.subr.bf16.mxu0 0
    %1627 = vmatpush1.bf16.msra.mxu0 0
    %1628 = vmatprep.mubr.bf16.mxu0 0
    %1629 = vmatmul.mubr.bf16.gmra.mrb[0].mxu0 %v1553
    %v1630 = vpop.f32.mrb[0].mxu0
    %v1631 = vadd.f32 0.0, %v1630
    %v1632 = vpop.f32.mrb[0].mxu0
    %v1633 = vadd.f32 0.0, %v1632
    %v1634 = vpop.f32.mrb[0].mxu0
    %v1635 = vpop.f32.mrb[0].mxu0
    %1636 = vdwg.mxu0
    %v1641 = vrot.slane %v1590, 2
    %v1642 = vrot.slane %v1592, 2
    %v1643 = vrot.slane %v1631, 2
    %v1644 = vrot.slane %v1633, 2
    %v1645 = vrot.slane %v1590, 3
    %v1646 = vrot.slane %v1592, 3
    %v1647 = vrot.slane %v1631, 3
    %v1648 = vrot.slane %v1633, 3
    %v1657 = vadd.f32 %v277, %v1641
    %v1658 = vadd.f32 %v279, %v1642
    %v1659 = vadd.f32 %v320, %v1643
    %v1660 = vadd.f32 %v322, %v1644
    %v1661 = vadd.f32 %v281, %v1645
    %v1662 = vadd.f32 %v283, %v1646
    %v1663 = vadd.f32 %v324, %v1647
    %v1664 = vadd.f32 %v326, %v1648
    %v1665 = vxor.u32 %v1657, 2147483648
    %v1666 = vxor.u32 %v1661, 2147483648
    %v1667 = vmul.f32 %v1665, 1.442695
    %v1668 = vpow.pop %v1667
    %v1669 = vmul.f32 %v1666, 1.442695
    %v1670 = vpow.pop %v1669
    %v1671 = vadd.f32 %v1668, 1.0
    %v1672 = vadd.f32 %v1670, 1.0
    %v1673 = vrcp.pop %v1671
    %v1674 = vmul.f32 1.0, %v1673
    %v1675 = vrcp.pop %v1672
    %v1676 = vmul.f32 1.0, %v1675
    %v1677 = vxor.u32 %v1658, 2147483648
    %v1678 = vxor.u32 %v1662, 2147483648
    %v1679 = vmul.f32 %v1677, 1.442695
    %v1680 = vpow.pop %v1679
    %v1681 = vmul.f32 %v1678, 1.442695
    %v1682 = vpow.pop %v1681
    %v1683 = vadd.f32 %v1680, 1.0
    %v1684 = vadd.f32 %v1682, 1.0
    %v1685 = vrcp.pop %v1683
    %v1686 = vmul.f32 1.0, %v1685
    %v1687 = vrcp.pop %v1684
    %v1688 = vmul.f32 1.0, %v1687
    %v1689 = vtanh.pop %v1659
    %v1690 = vtanh.pop %v1663
    %v1691 = vxor.u32 %v1660, 2147483648
    %v1692 = vxor.u32 %v1664, 2147483648
    %v1693 = vmul.f32 %v1691, 1.442695
    %v1694 = vpow.pop %v1693
    %v1695 = vmul.f32 %v1692, 1.442695
    %v1696 = vpow.pop %v1695
    %v1697 = vadd.f32 %v1694, 1.0
    %v1698 = vadd.f32 %v1696, 1.0
    %v1699 = vrcp.pop %v1697
    %v1700 = vmul.f32 1.0, %v1699
    %v1701 = vrcp.pop %v1698
    %v1702 = vmul.f32 1.0, %v1701
    %v1705 = vrot.slane %v1538, 7
    %v1706 = vrot.slane %v1539, 7
    %v1709 = vmul.f32 %v1686, %v1705
    %v1710 = vmul.f32 %v1688, %v1706
    %v1711 = vmul.f32 %v1674, %v1689
    %v1712 = vmul.f32 %v1676, %v1690
    %v1713 = vadd.f32 %v1709, %v1711
    %v1714 = vadd.f32 %v1710, %v1712
    %v1715 = vtanh.pop %v1713
    %v1716 = vtanh.pop %v1714
    %v1717 = vmul.f32 %v1700, %v1715
    %v1718 = vmul.f32 %v1702, %v1716
    %v1719 = vpack.c.bf16 %v1717, %v1717
    %v1720 = vpack.c.bf16 %v1718, %v1718
    %v1723 = vunpack.c.l.b16 %v1719
    %v1724 = vunpack.c.l.b16 %v1720
    %v1725 = vrot.slane %v1723, 6
    %v1726 = vrot.slane %v1724, 5
    %v1727 = vsel %vm681, %v1726, %v1725
    %v1728 = vpack.c.b16 %v1727, %v1727
    %1730 = vmatprep.subr.bf16.mxu0 %v457
    %1731 = vmatpush1.bf16.msra.mxu0 %v456
    %1732 = vmatprep.subr.bf16.mxu0 %v461
    %1733 = vmatpush1.bf16.msra.mxu0 %v460
    %1734 = vmatprep.subr.bf16.mxu0 %v465
    %1735 = vmatpush1.bf16.msra.mxu0 %v464
    %1736 = vmatprep.subr.bf16.mxu0 %v469
    %1737 = vmatpush1.bf16.msra.mxu0 %v468
    %1738 = vmatprep.subr.bf16.mxu0 %v473
    %1739 = vmatpush1.bf16.msra.mxu0 %v472
    %1740 = vmatprep.subr.bf16.mxu0 %v477
    %1741 = vmatpush1.bf16.msra.mxu0 %v476
    %1742 = vmatprep.subr.bf16.mxu0 %v481
    %1743 = vmatpush1.bf16.msra.mxu0 %v480
    %1744 = vmatprep.subr.bf16.mxu0 %v485
    %1745 = vmatpush1.bf16.msra.mxu0 %v484
    %1746 = vmatprep.subr.bf16.mxu0 0
    %1747 = vmatpush1.bf16.msra.mxu0 0
    %1748 = vmatprep.subr.bf16.mxu0 0
    %1749 = vmatpush1.bf16.msra.mxu0 0
    %1750 = vmatprep.subr.bf16.mxu0 0
    %1751 = vmatpush1.bf16.msra.mxu0 0
    %1752 = vmatprep.subr.bf16.mxu0 0
    %1753 = vmatpush1.bf16.msra.mxu0 0
    %1754 = vmatprep.subr.bf16.mxu0 0
    %1755 = vmatpush1.bf16.msra.mxu0 0
    %1756 = vmatprep.subr.bf16.mxu0 0
    %1757 = vmatpush1.bf16.msra.mxu0 0
    %1758 = vmatprep.subr.bf16.mxu0 0
    %1759 = vmatpush1.bf16.msra.mxu0 0
    %1760 = vmatprep.subr.bf16.mxu0 0
    %1761 = vmatpush1.bf16.msra.mxu0 0
    %1762 = vmatprep.mubr.bf16.mxu0 0
    %1763 = vmatmul.mubr.bf16.gmra.mrb[0].mxu0 %v1728
    %v1764 = vpop.f32.mrb[0].mxu0
    %v1765 = vadd.f32 0.0, %v1764
    %v1766 = vpop.f32.mrb[0].mxu0
    %v1767 = vadd.f32 0.0, %v1766
    %v1768 = vpop.f32.mrb[0].mxu0
    %v1769 = vpop.f32.mrb[0].mxu0
    %1770 = vdwg.mxu0
    %1771 = vmatprep.subr.bf16.mxu0 %v459
    %1772 = vmatpush1.bf16.msra.mxu0 %v458
    %1773 = vmatprep.subr.bf16.mxu0 %v463
    %1774 = vmatpush1.bf16.msra.mxu0 %v462
    %1775 = vmatprep.subr.bf16.mxu0 %v467
    %1776 = vmatpush1.bf16.msra.mxu0 %v466
    %1777 = vmatprep.subr.bf16.mxu0 %v471
    %1778 = vmatpush1.bf16.msra.mxu0 %v470
    %1779 = vmatprep.subr.bf16.mxu0 %v475
    %1780 = vmatpush1.bf16.msra.mxu0 %v474
    %1781 = vmatprep.subr.bf16.mxu0 %v479
    %1782 = vmatpush1.bf16.msra.mxu0 %v478
    %1783 = vmatprep.subr.bf16.mxu0 %v483
    %1784 = vmatpush1.bf16.msra.mxu0 %v482
    %1785 = vmatprep.subr.bf16.mxu0 %v487
    %1786 = vmatpush1.bf16.msra.mxu0 %v486
    %1787 = vmatprep.subr.bf16.mxu0 0
    %1788 = vmatpush1.bf16.msra.mxu0 0
    %1789 = vmatprep.subr.bf16.mxu0 0
    %1790 = vmatpush1.bf16.msra.mxu0 0
    %1791 = vmatprep.subr.bf16.mxu0 0
    %1792 = vmatpush1.bf16.msra.mxu0 0
    %1793 = vmatprep.subr.bf16.mxu0 0
    %1794 = vmatpush1.bf16.msra.mxu0 0
    %1795 = vmatprep.subr.bf16.mxu0 0
    %1796 = vmatpush1.bf16.msra.mxu0 0
    %1797 = vmatprep.subr.bf16.mxu0 0
    %1798 = vmatpush1.bf16.msra.mxu0 0
    %1799 = vmatprep.subr.bf16.mxu0 0
    %1800 = vmatpush1.bf16.msra.mxu0 0
    %1801 = vmatprep.subr.bf16.mxu0 0
    %1802 = vmatpush1.bf16.msra.mxu0 0
    %1803 = vmatprep.mubr.bf16.mxu0 0
    %1804 = vmatmul.mubr.bf16.gmra.mrb[0].mxu0 %v1728
    %v1805 = vpop.f32.mrb[0].mxu0
    %v1806 = vadd.f32 0.0, %v1805
    %v1807 = vpop.f32.mrb[0].mxu0
    %v1808 = vadd.f32 0.0, %v1807
    %v1809 = vpop.f32.mrb[0].mxu0
    %v1810 = vpop.f32.mrb[0].mxu0
    %1811 = vdwg.mxu0
    %v1816 = vrot.slane %v1765, 1
    %v1817 = vrot.slane %v1767, 1
    %v1818 = vrot.slane %v1806, 1
    %v1819 = vrot.slane %v1808, 1
    %v1820 = vrot.slane %v1765, 2
    %v1821 = vrot.slane %v1767, 2
    %v1822 = vrot.slane %v1806, 2
    %v1823 = vrot.slane %v1808, 2
    %v1832 = vadd.f32 %v277, %v1816
    %v1833 = vadd.f32 %v279, %v1817
    %v1834 = vadd.f32 %v320, %v1818
    %v1835 = vadd.f32 %v322, %v1819
    %v1836 = vadd.f32 %v281, %v1820
    %v1837 = vadd.f32 %v283, %v1821
    %v1838 = vadd.f32 %v324, %v1822
    %v1839 = vadd.f32 %v326, %v1823
    %v1840 = vxor.u32 %v1832, 2147483648
    %v1841 = vxor.u32 %v1836, 2147483648
    %v1842 = vmul.f32 %v1840, 1.442695
    %v1843 = vpow.pop %v1842
    %v1844 = vmul.f32 %v1841, 1.442695
    %v1845 = vpow.pop %v1844
    %v1846 = vadd.f32 %v1843, 1.0
    %v1847 = vadd.f32 %v1845, 1.0
    %v1848 = vrcp.pop %v1846
    %v1849 = vmul.f32 1.0, %v1848
    %v1850 = vrcp.pop %v1847
    %v1851 = vmul.f32 1.0, %v1850
    %v1852 = vxor.u32 %v1833, 2147483648
    %v1853 = vxor.u32 %v1837, 2147483648
    %v1854 = vmul.f32 %v1852, 1.442695
    %v1855 = vpow.pop %v1854
    %v1856 = vmul.f32 %v1853, 1.442695
    %v1857 = vpow.pop %v1856
    %v1858 = vadd.f32 %v1855, 1.0
    %v1859 = vadd.f32 %v1857, 1.0
    %v1860 = vrcp.pop %v1858
    %v1861 = vmul.f32 1.0, %v1860
    %v1862 = vrcp.pop %v1859
    %v1863 = vmul.f32 1.0, %v1862
    %v1864 = vtanh.pop %v1834
    %v1865 = vtanh.pop %v1838
    %v1866 = vxor.u32 %v1835, 2147483648
    %v1867 = vxor.u32 %v1839, 2147483648
    %v1868 = vmul.f32 %v1866, 1.442695
    %v1869 = vpow.pop %v1868
    %v1870 = vmul.f32 %v1867, 1.442695
    %v1871 = vpow.pop %v1870
    %v1872 = vadd.f32 %v1869, 1.0
    %v1873 = vadd.f32 %v1871, 1.0
    %v1874 = vrcp.pop %v1872
    %v1875 = vmul.f32 1.0, %v1874
    %v1876 = vrcp.pop %v1873
    %v1877 = vmul.f32 1.0, %v1876
    %v1880 = vrot.slane %v1713, 7
    %v1881 = vrot.slane %v1714, 7
    %v1884 = vmul.f32 %v1861, %v1880
    %v1885 = vmul.f32 %v1863, %v1881
    %v1886 = vmul.f32 %v1849, %v1864
    %v1887 = vmul.f32 %v1851, %v1865
    %v1888 = vadd.f32 %v1884, %v1886
    %v1889 = vadd.f32 %v1885, %v1887
    %v1890 = vtanh.pop %v1888
    %v1891 = vtanh.pop %v1889
    %v1892 = vmul.f32 %v1875, %v1890
    %v1893 = vmul.f32 %v1877, %v1891
    %s1894 = scalar_lea.vmem %s1, 256
    %v1895 = vld [vmem:[%s1894] sm:$0xff]
    %v1896 = vld [vmem:[%s1894 + $0x8] sm:$0xff]
    %v1897 = vld [vmem:[%s1894 + $0x10] sm:$0xff]
    %v1898 = vld [vmem:[%s1894 + $0x18] sm:$0xff]
    %v1899 = vld [vmem:[%s1894 + $0x20] sm:$0xff]
    %v1900 = vld [vmem:[%s1894 + $0x28] sm:$0xff]
    %v1901 = vld [vmem:[%s1894 + $0x30] sm:$0xff]
    %v1902 = vld [vmem:[%s1894 + $0x38] sm:$0xff]
    %v1903 = vld [vmem:[%s1894 + $0x40] sm:$0xff]
    %v1904 = vld [vmem:[%s1894 + $0x48] sm:$0xff]
    %v1905 = vld [vmem:[%s1894 + $0x50] sm:$0xff]
    %v1906 = vld [vmem:[%s1894 + $0x58] sm:$0xff]
    %v1907 = vld [vmem:[%s1894 + $0x60] sm:$0xff]
    %v1908 = vld [vmem:[%s1894 + $0x68] sm:$0xff]
    %v1909 = vld [vmem:[%s1894 + $0x70] sm:$0xff]
    %v1910 = vld [vmem:[%s1894 + $0x78] sm:$0xff]
    %v1911 = vld [vmem:[%s1894 + $0x80] sm:$0xff]
    %v1912 = vld [vmem:[%s1894 + $0x88] sm:$0xff]
    %v1913 = vld [vmem:[%s1894 + $0x90] sm:$0xff]
    %v1914 = vld [vmem:[%s1894 + $0x98] sm:$0xff]
    %v1915 = vld [vmem:[%s1894 + $0xa0] sm:$0xff]
    %v1916 = vld [vmem:[%s1894 + $0xa8] sm:$0xff]
    %v1917 = vld [vmem:[%s1894 + $0xb0] sm:$0xff]
    %v1918 = vld [vmem:[%s1894 + $0xb8] sm:$0xff]
    %v1919 = vld [vmem:[%s1894 + $0xc0] sm:$0xff]
    %v1920 = vld [vmem:[%s1894 + $0xc8] sm:$0xff]
    %v1921 = vld [vmem:[%s1894 + $0xd0] sm:$0xff]
    %v1922 = vld [vmem:[%s1894 + $0xd8] sm:$0xff]
    %v1923 = vld [vmem:[%s1894 + $0xe0] sm:$0xff]
    %v1924 = vld [vmem:[%s1894 + $0xe8] sm:$0xff]
    %v1925 = vld [vmem:[%s1894 + $0xf0] sm:$0xff]
    %v1926 = vld [vmem:[%s1894 + $0xf8] sm:$0xff]
    %s1927 = scalar_lea.vmem %s3, 4
    %v1928 = vld [vmem:[%s1927] sm:$0xf]
    %v1930 = vlaneseq
    %v1931 = vshrl.u32 %v1930, 7
    %v1932 = vsub.s32 0, %v1931
    %v1933 = vrot.slane %v1928, %v1932
    %v1934 = vlaneseq
    %v1935 = vshrl.u32 %v1934, 7
    %v1936 = vsub.s32 1, %v1935
    %v1937 = vrot.slane %v1928, %v1936
    %v1938 = vlaneseq
    %v1939 = vshrl.u32 %v1938, 7
    %v1940 = vsub.s32 2, %v1939
    %v1941 = vrot.slane %v1928, %v1940
    %v1942 = vlaneseq
    %v1943 = vshrl.u32 %v1942, 7
    %v1944 = vsub.s32 3, %v1943
    %v1945 = vrot.slane %v1928, %v1944
    %v1982 = vunpack.c.l.b16 %v1895
    %v1983 = vunpack.c.h.b16 %v1895
    %v1984 = vunpack.c.l.b16 %v1896
    %v1985 = vunpack.c.h.b16 %v1896
    %v1986 = vunpack.c.l.b16 %v1897
    %v1987 = vunpack.c.h.b16 %v1897
    %v1988 = vunpack.c.l.b16 %v1898
    %v1989 = vunpack.c.h.b16 %v1898
    %v1990 = vunpack.c.l.b16 %v1899
    %v1991 = vunpack.c.h.b16 %v1899
    %v1992 = vunpack.c.l.b16 %v1900
    %v1993 = vunpack.c.h.b16 %v1900
    %v1994 = vunpack.c.l.b16 %v1901
    %v1995 = vunpack.c.h.b16 %v1901
    %v1996 = vunpack.c.l.b16 %v1902
    %v1997 = vunpack.c.h.b16 %v1902
    %v1998 = vunpack.c.l.b16 %v1903
    %v1999 = vunpack.c.h.b16 %v1903
    %v2000 = vunpack.c.l.b16 %v1904
    %v2001 = vunpack.c.h.b16 %v1904
    %v2002 = vunpack.c.l.b16 %v1905
    %v2003 = vunpack.c.h.b16 %v1905
    %v2004 = vunpack.c.l.b16 %v1906
    %v2005 = vunpack.c.h.b16 %v1906
    %v2006 = vunpack.c.l.b16 %v1907
    %v2007 = vunpack.c.h.b16 %v1907
    %v2008 = vunpack.c.l.b16 %v1908
    %v2009 = vunpack.c.h.b16 %v1908
    %v2010 = vunpack.c.l.b16 %v1909
    %v2011 = vunpack.c.h.b16 %v1909
    %v2012 = vunpack.c.l.b16 %v1910
    %v2013 = vunpack.c.h.b16 %v1910
    %v2014 = vunpack.c.l.b16 %v1911
    %v2015 = vunpack.c.h.b16 %v1911
    %v2016 = vunpack.c.l.b16 %v1912
    %v2017 = vunpack.c.h.b16 %v1912
    %v2018 = vunpack.c.l.b16 %v1913
    %v2019 = vunpack.c.h.b16 %v1913
    %v2020 = vunpack.c.l.b16 %v1914
    %v2021 = vunpack.c.h.b16 %v1914
    %v2022 = vunpack.c.l.b16 %v1915
    %v2023 = vunpack.c.h.b16 %v1915
    %v2024 = vunpack.c.l.b16 %v1916
    %v2025 = vunpack.c.h.b16 %v1916
    %v2026 = vunpack.c.l.b16 %v1917
    %v2027 = vunpack.c.h.b16 %v1917
    %v2028 = vunpack.c.l.b16 %v1918
    %v2029 = vunpack.c.h.b16 %v1918
    %v2030 = vunpack.c.l.b16 %v1919
    %v2031 = vunpack.c.h.b16 %v1919
    %v2032 = vunpack.c.l.b16 %v1920
    %v2033 = vunpack.c.h.b16 %v1920
    %v2034 = vunpack.c.l.b16 %v1921
    %v2035 = vunpack.c.h.b16 %v1921
    %v2036 = vunpack.c.l.b16 %v1922
    %v2037 = vunpack.c.h.b16 %v1922
    %v2038 = vunpack.c.l.b16 %v1923
    %v2039 = vunpack.c.h.b16 %v1923
    %v2040 = vunpack.c.l.b16 %v1924
    %v2041 = vunpack.c.h.b16 %v1924
    %v2042 = vunpack.c.l.b16 %v1925
    %v2043 = vunpack.c.h.b16 %v1925
    %v2044 = vunpack.c.l.b16 %v1926
    %v2045 = vunpack.c.h.b16 %v1926
    %v2046 = vpack.c.b16 %v1986, %v1982
    %v2047 = vpack.c.b16 %v1987, %v1983
    %v2048 = vpack.c.b16 %v1988, %v1984
    %v2049 = vpack.c.b16 %v1989, %v1985
    %v2050 = vpack.c.b16 %v1994, %v1990
    %v2051 = vpack.c.b16 %v1995, %v1991
    %v2052 = vpack.c.b16 %v1996, %v1992
    %v2053 = vpack.c.b16 %v1997, %v1993
    %v2054 = vpack.c.b16 %v2002, %v1998
    %v2055 = vpack.c.b16 %v2003, %v1999
    %v2056 = vpack.c.b16 %v2004, %v2000
    %v2057 = vpack.c.b16 %v2005, %v2001
    %v2058 = vpack.c.b16 %v2010, %v2006
    %v2059 = vpack.c.b16 %v2011, %v2007
    %v2060 = vpack.c.b16 %v2012, %v2008
    %v2061 = vpack.c.b16 %v2013, %v2009
    %v2062 = vpack.c.b16 %v2018, %v2014
    %v2063 = vpack.c.b16 %v2019, %v2015
    %v2064 = vpack.c.b16 %v2020, %v2016
    %v2065 = vpack.c.b16 %v2021, %v2017
    %v2066 = vpack.c.b16 %v2026, %v2022
    %v2067 = vpack.c.b16 %v2027, %v2023
    %v2068 = vpack.c.b16 %v2028, %v2024
    %v2069 = vpack.c.b16 %v2029, %v2025
    %v2070 = vpack.c.b16 %v2034, %v2030
    %v2071 = vpack.c.b16 %v2035, %v2031
    %v2072 = vpack.c.b16 %v2036, %v2032
    %v2073 = vpack.c.b16 %v2037, %v2033
    %v2074 = vpack.c.b16 %v2042, %v2038
    %v2075 = vpack.c.b16 %v2043, %v2039
    %v2076 = vpack.c.b16 %v2044, %v2040
    %v2077 = vpack.c.b16 %v2045, %v2041
    %2110 = vmatprep.subr.bf16.mxu0 %v2047
    %2111 = vmatpush1.bf16.msra.mxu0 %v2046
    %2112 = vmatprep.subr.bf16.mxu0 %v2051
    %2113 = vmatpush1.bf16.msra.mxu0 %v2050
    %2114 = vmatprep.subr.bf16.mxu0 %v2055
    %2115 = vmatpush1.bf16.msra.mxu0 %v2054
    %2116 = vmatprep.subr.bf16.mxu0 %v2059
    %2117 = vmatpush1.bf16.msra.mxu0 %v2058
    %2118 = vmatprep.subr.bf16.mxu0 %v2063
    %2119 = vmatpush1.bf16.msra.mxu0 %v2062
    %2120 = vmatprep.subr.bf16.mxu0 %v2067
    %2121 = vmatpush1.bf16.msra.mxu0 %v2066
    %2122 = vmatprep.subr.bf16.mxu0 %v2071
    %2123 = vmatpush1.bf16.msra.mxu0 %v2070
    %2124 = vmatprep.subr.bf16.mxu0 %v2075
    %2125 = vmatpush1.bf16.msra.mxu0 %v2074
    %2126 = vmatprep.subr.bf16.mxu0 0
    %2127 = vmatpush1.bf16.msra.mxu0 0
    %2128 = vmatprep.subr.bf16.mxu0 0
    %2129 = vmatpush1.bf16.msra.mxu0 0
    %2130 = vmatprep.subr.bf16.mxu0 0
    %2131 = vmatpush1.bf16.msra.mxu0 0
    %2132 = vmatprep.subr.bf16.mxu0 0
    %2133 = vmatpush1.bf16.msra.mxu0 0
    %2134 = vmatprep.subr.bf16.mxu0 0
    %2135 = vmatpush1.bf16.msra.mxu0 0
    %2136 = vmatprep.subr.bf16.mxu0 0
    %2137 = vmatpush1.bf16.msra.mxu0 0
    %2138 = vmatprep.subr.bf16.mxu0 0
    %2139 = vmatpush1.bf16.msra.mxu0 0
    %2140 = vmatprep.subr.bf16.mxu0 0
    %2141 = vmatpush1.bf16.msra.mxu0 0
    %2142 = vmatprep.mubr.bf16.mxu0 0
    %2143 = vmatmul.mubr.bf16.gmra.mrb[0].mxu0 %v27
    %v2144 = vpop.f32.mrb[0].mxu0
    %v2145 = vadd.f32 %v1933, %v2144
    %v2146 = vpop.f32.mrb[0].mxu0
    %v2147 = vadd.f32 %v1937, %v2146
    %v2148 = vpop.f32.mrb[0].mxu0
    %v2149 = vadd.f32 %v1933, %v2148
    %v2150 = vpop.f32.mrb[0].mxu0
    %v2151 = vadd.f32 %v1937, %v2150
    %2152 = vdwg.mxu0
    %2153 = vmatprep.subr.bf16.mxu0 %v2049
    %2154 = vmatpush1.bf16.msra.mxu0 %v2048
    %2155 = vmatprep.subr.bf16.mxu0 %v2053
    %2156 = vmatpush1.bf16.msra.mxu0 %v2052
    %2157 = vmatprep.subr.bf16.mxu0 %v2057
    %2158 = vmatpush1.bf16.msra.mxu0 %v2056
    %2159 = vmatprep.subr.bf16.mxu0 %v2061
    %2160 = vmatpush1.bf16.msra.mxu0 %v2060
    %2161 = vmatprep.subr.bf16.mxu0 %v2065
    %2162 = vmatpush1.bf16.msra.mxu0 %v2064
    %2163 = vmatprep.subr.bf16.mxu0 %v2069
    %2164 = vmatpush1.bf16.msra.mxu0 %v2068
    %2165 = vmatprep.subr.bf16.mxu0 %v2073
    %2166 = vmatpush1.bf16.msra.mxu0 %v2072
    %2167 = vmatprep.subr.bf16.mxu0 %v2077
    %2168 = vmatpush1.bf16.msra.mxu0 %v2076
    %2169 = vmatprep.subr.bf16.mxu0 0
    %2170 = vmatpush1.bf16.msra.mxu0 0
    %2171 = vmatprep.subr.bf16.mxu0 0
    %2172 = vmatpush1.bf16.msra.mxu0 0
    %2173 = vmatprep.subr.bf16.mxu0 0
    %2174 = vmatpush1.bf16.msra.mxu0 0
    %2175 = vmatprep.subr.bf16.mxu0 0
    %2176 = vmatpush1.bf16.msra.mxu0 0
    %2177 = vmatprep.subr.bf16.mxu0 0
    %2178 = vmatpush1.bf16.msra.mxu0 0
    %2179 = vmatprep.subr.bf16.mxu0 0
    %2180 = vmatpush1.bf16.msra.mxu0 0
    %2181 = vmatprep.subr.bf16.mxu0 0
    %2182 = vmatpush1.bf16.msra.mxu0 0
    %2183 = vmatprep.subr.bf16.mxu0 0
    %2184 = vmatpush1.bf16.msra.mxu0 0
    %2185 = vmatprep.mubr.bf16.mxu0 0
    %2186 = vmatmul.mubr.bf16.gmra.mrb[0].mxu0 %v27
    %v2187 = vpop.f32.mrb[0].mxu0
    %v2188 = vadd.f32 %v1941, %v2187
    %v2189 = vpop.f32.mrb[0].mxu0
    %v2190 = vadd.f32 %v1945, %v2189
    %v2191 = vpop.f32.mrb[0].mxu0
    %v2192 = vadd.f32 %v1941, %v2191
    %v2193 = vpop.f32.mrb[0].mxu0
    %v2194 = vadd.f32 %v1945, %v2193
    %2195 = vdwg.mxu0
    %s2196 = scalar_lea.vmem %s2, 256
    %v2197 = vld [vmem:[%s2196] sm:$0xff]
    %v2198 = vld [vmem:[%s2196 + $0x8] sm:$0xff]
    %v2199 = vld [vmem:[%s2196 + $0x10] sm:$0xff]
    %v2200 = vld [vmem:[%s2196 + $0x18] sm:$0xff]
    %v2201 = vld [vmem:[%s2196 + $0x20] sm:$0xff]
    %v2202 = vld [vmem:[%s2196 + $0x28] sm:$0xff]
    %v2203 = vld [vmem:[%s2196 + $0x30] sm:$0xff]
    %v2204 = vld [vmem:[%s2196 + $0x38] sm:$0xff]
    %v2205 = vld [vmem:[%s2196 + $0x40] sm:$0xff]
    %v2206 = vld [vmem:[%s2196 + $0x48] sm:$0xff]
    %v2207 = vld [vmem:[%s2196 + $0x50] sm:$0xff]
    %v2208 = vld [vmem:[%s2196 + $0x58] sm:$0xff]
    %v2209 = vld [vmem:[%s2196 + $0x60] sm:$0xff]
    %v2210 = vld [vmem:[%s2196 + $0x68] sm:$0xff]
    %v2211 = vld [vmem:[%s2196 + $0x70] sm:$0xff]
    %v2212 = vld [vmem:[%s2196 + $0x78] sm:$0xff]
    %v2213 = vld [vmem:[%s2196 + $0x80] sm:$0xff]
    %v2214 = vld [vmem:[%s2196 + $0x88] sm:$0xff]
    %v2215 = vld [vmem:[%s2196 + $0x90] sm:$0xff]
    %v2216 = vld [vmem:[%s2196 + $0x98] sm:$0xff]
    %v2217 = vld [vmem:[%s2196 + $0xa0] sm:$0xff]
    %v2218 = vld [vmem:[%s2196 + $0xa8] sm:$0xff]
    %v2219 = vld [vmem:[%s2196 + $0xb0] sm:$0xff]
    %v2220 = vld [vmem:[%s2196 + $0xb8] sm:$0xff]
    %v2221 = vld [vmem:[%s2196 + $0xc0] sm:$0xff]
    %v2222 = vld [vmem:[%s2196 + $0xc8] sm:$0xff]
    %v2223 = vld [vmem:[%s2196 + $0xd0] sm:$0xff]
    %v2224 = vld [vmem:[%s2196 + $0xd8] sm:$0xff]
    %v2225 = vld [vmem:[%s2196 + $0xe0] sm:$0xff]
    %v2226 = vld [vmem:[%s2196 + $0xe8] sm:$0xff]
    %v2227 = vld [vmem:[%s2196 + $0xf0] sm:$0xff]
    %v2228 = vld [vmem:[%s2196 + $0xf8] sm:$0xff]
    %v2261 = vunpack.c.l.b16 %v2197
    %v2262 = vunpack.c.h.b16 %v2197
    %v2263 = vunpack.c.l.b16 %v2198
    %v2264 = vunpack.c.h.b16 %v2198
    %v2265 = vunpack.c.l.b16 %v2199
    %v2266 = vunpack.c.h.b16 %v2199
    %v2267 = vunpack.c.l.b16 %v2200
    %v2268 = vunpack.c.h.b16 %v2200
    %v2269 = vunpack.c.l.b16 %v2201
    %v2270 = vunpack.c.h.b16 %v2201
    %v2271 = vunpack.c.l.b16 %v2202
    %v2272 = vunpack.c.h.b16 %v2202
    %v2273 = vunpack.c.l.b16 %v2203
    %v2274 = vunpack.c.h.b16 %v2203
    %v2275 = vunpack.c.l.b16 %v2204
    %v2276 = vunpack.c.h.b16 %v2204
    %v2277 = vunpack.c.l.b16 %v2205
    %v2278 = vunpack.c.h.b16 %v2205
    %v2279 = vunpack.c.l.b16 %v2206
    %v2280 = vunpack.c.h.b16 %v2206
    %v2281 = vunpack.c.l.b16 %v2207
    %v2282 = vunpack.c.h.b16 %v2207
    %v2283 = vunpack.c.l.b16 %v2208
    %v2284 = vunpack.c.h.b16 %v2208
    %v2285 = vunpack.c.l.b16 %v2209
    %v2286 = vunpack.c.h.b16 %v2209
    %v2287 = vunpack.c.l.b16 %v2210
    %v2288 = vunpack.c.h.b16 %v2210
    %v2289 = vunpack.c.l.b16 %v2211
    %v2290 = vunpack.c.h.b16 %v2211
    %v2291 = vunpack.c.l.b16 %v2212
    %v2292 = vunpack.c.h.b16 %v2212
    %v2293 = vunpack.c.l.b16 %v2213
    %v2294 = vunpack.c.h.b16 %v2213
    %v2295 = vunpack.c.l.b16 %v2214
    %v2296 = vunpack.c.h.b16 %v2214
    %v2297 = vunpack.c.l.b16 %v2215
    %v2298 = vunpack.c.h.b16 %v2215
    %v2299 = vunpack.c.l.b16 %v2216
    %v2300 = vunpack.c.h.b16 %v2216
    %v2301 = vunpack.c.l.b16 %v2217
    %v2302 = vunpack.c.h.b16 %v2217
    %v2303 = vunpack.c.l.b16 %v2218
    %v2304 = vunpack.c.h.b16 %v2218
    %v2305 = vunpack.c.l.b16 %v2219
    %v2306 = vunpack.c.h.b16 %v2219
    %v2307 = vunpack.c.l.b16 %v2220
    %v2308 = vunpack.c.h.b16 %v2220
    %v2309 = vunpack.c.l.b16 %v2221
    %v2310 = vunpack.c.h.b16 %v2221
    %v2311 = vunpack.c.l.b16 %v2222
    %v2312 = vunpack.c.h.b16 %v2222
    %v2313 = vunpack.c.l.b16 %v2223
    %v2314 = vunpack.c.h.b16 %v2223
    %v2315 = vunpack.c.l.b16 %v2224
    %v2316 = vunpack.c.h.b16 %v2224
    %v2317 = vunpack.c.l.b16 %v2225
    %v2318 = vunpack.c.h.b16 %v2225
    %v2319 = vunpack.c.l.b16 %v2226
    %v2320 = vunpack.c.h.b16 %v2226
    %v2321 = vunpack.c.l.b16 %v2227
    %v2322 = vunpack.c.h.b16 %v2227
    %v2323 = vunpack.c.l.b16 %v2228
    %v2324 = vunpack.c.h.b16 %v2228
    %v2325 = vpack.c.b16 %v2265, %v2261
    %v2326 = vpack.c.b16 %v2266, %v2262
    %v2327 = vpack.c.b16 %v2267, %v2263
    %v2328 = vpack.c.b16 %v2268, %v2264
    %v2329 = vpack.c.b16 %v2273, %v2269
    %v2330 = vpack.c.b16 %v2274, %v2270
    %v2331 = vpack.c.b16 %v2275, %v2271
    %v2332 = vpack.c.b16 %v2276, %v2272
    %v2333 = vpack.c.b16 %v2281, %v2277
    %v2334 = vpack.c.b16 %v2282, %v2278
    %v2335 = vpack.c.b16 %v2283, %v2279
    %v2336 = vpack.c.b16 %v2284, %v2280
    %v2337 = vpack.c.b16 %v2289, %v2285
    %v2338 = vpack.c.b16 %v2290, %v2286
    %v2339 = vpack.c.b16 %v2291, %v2287
    %v2340 = vpack.c.b16 %v2292, %v2288
    %v2341 = vpack.c.b16 %v2297, %v2293
    %v2342 = vpack.c.b16 %v2298, %v2294
    %v2343 = vpack.c.b16 %v2299, %v2295
    %v2344 = vpack.c.b16 %v2300, %v2296
    %v2345 = vpack.c.b16 %v2305, %v2301
    %v2346 = vpack.c.b16 %v2306, %v2302
    %v2347 = vpack.c.b16 %v2307, %v2303
    %v2348 = vpack.c.b16 %v2308, %v2304
    %v2349 = vpack.c.b16 %v2313, %v2309
    %v2350 = vpack.c.b16 %v2314, %v2310
    %v2351 = vpack.c.b16 %v2315, %v2311
    %v2352 = vpack.c.b16 %v2316, %v2312
    %v2353 = vpack.c.b16 %v2321, %v2317
    %v2354 = vpack.c.b16 %v2322, %v2318
    %v2355 = vpack.c.b16 %v2323, %v2319
    %v2356 = vpack.c.b16 %v2324, %v2320
    %2389 = vmatprep.subr.bf16.mxu0 %v2326
    %2390 = vmatpush1.bf16.msra.mxu0 %v2325
    %2391 = vmatprep.subr.bf16.mxu0 %v2330
    %2392 = vmatpush1.bf16.msra.mxu0 %v2329
    %2393 = vmatprep.subr.bf16.mxu0 %v2334
    %2394 = vmatpush1.bf16.msra.mxu0 %v2333
    %2395 = vmatprep.subr.bf16.mxu0 %v2338
    %2396 = vmatpush1.bf16.msra.mxu0 %v2337
    %2397 = vmatprep.subr.bf16.mxu0 %v2342
    %2398 = vmatpush1.bf16.msra.mxu0 %v2341
    %2399 = vmatprep.subr.bf16.mxu0 %v2346
    %2400 = vmatpush1.bf16.msra.mxu0 %v2345
    %2401 = vmatprep.subr.bf16.mxu0 %v2350
    %2402 = vmatpush1.bf16.msra.mxu0 %v2349
    %2403 = vmatprep.subr.bf16.mxu0 %v2354
    %2404 = vmatpush1.bf16.msra.mxu0 %v2353
    %2405 = vmatprep.subr.bf16.mxu0 0
    %2406 = vmatpush1.bf16.msra.mxu0 0
    %2407 = vmatprep.subr.bf16.mxu0 0
    %2408 = vmatpush1.bf16.msra.mxu0 0
    %2409 = vmatprep.subr.bf16.mxu0 0
    %2410 = vmatpush1.bf16.msra.mxu0 0
    %2411 = vmatprep.subr.bf16.mxu0 0
    %2412 = vmatpush1.bf16.msra.mxu0 0
    %2413 = vmatprep.subr.bf16.mxu0 0
    %2414 = vmatpush1.bf16.msra.mxu0 0
    %2415 = vmatprep.subr.bf16.mxu0 0
    %2416 = vmatpush1.bf16.msra.mxu0 0
    %2417 = vmatprep.subr.bf16.mxu0 0
    %2418 = vmatpush1.bf16.msra.mxu0 0
    %2419 = vmatprep.subr.bf16.mxu0 0
    %2420 = vmatpush1.bf16.msra.mxu0 0
    %2421 = vmatprep.mubr.bf16.mxu0 0
    %2422 = vmatmul.mubr.bf16.gmra.mrb[0].mxu0 0
    %v2423 = vpop.f32.mrb[0].mxu0
    %v2424 = vadd.f32 0.0, %v2423
    %v2425 = vpop.f32.mrb[0].mxu0
    %v2426 = vadd.f32 0.0, %v2425
    %v2427 = vpop.f32.mrb[0].mxu0
    %v2428 = vpop.f32.mrb[0].mxu0
    %2429 = vdwg.mxu0
    %2430 = vmatprep.subr.bf16.mxu0 %v2328
    %2431 = vmatpush1.bf16.msra.mxu0 %v2327
    %2432 = vmatprep.subr.bf16.mxu0 %v2332
    %2433 = vmatpush1.bf16.msra.mxu0 %v2331
    %2434 = vmatprep.subr.bf16.mxu0 %v2336
    %2435 = vmatpush1.bf16.msra.mxu0 %v2335
    %2436 = vmatprep.subr.bf16.mxu0 %v2340
    %2437 = vmatpush1.bf16.msra.mxu0 %v2339
    %2438 = vmatprep.subr.bf16.mxu0 %v2344
    %2439 = vmatpush1.bf16.msra.mxu0 %v2343
    %2440 = vmatprep.subr.bf16.mxu0 %v2348
    %2441 = vmatpush1.bf16.msra.mxu0 %v2347
    %2442 = vmatprep.subr.bf16.mxu0 %v2352
    %2443 = vmatpush1.bf16.msra.mxu0 %v2351
    %2444 = vmatprep.subr.bf16.mxu0 %v2356
    %2445 = vmatpush1.bf16.msra.mxu0 %v2355
    %2446 = vmatprep.subr.bf16.mxu0 0
    %2447 = vmatpush1.bf16.msra.mxu0 0
    %2448 = vmatprep.subr.bf16.mxu0 0
    %2449 = vmatpush1.bf16.msra.mxu0 0
    %2450 = vmatprep.subr.bf16.mxu0 0
    %2451 = vmatpush1.bf16.msra.mxu0 0
    %2452 = vmatprep.subr.bf16.mxu0 0
    %2453 = vmatpush1.bf16.msra.mxu0 0
    %2454 = vmatprep.subr.bf16.mxu0 0
    %2455 = vmatpush1.bf16.msra.mxu0 0
    %2456 = vmatprep.subr.bf16.mxu0 0
    %2457 = vmatpush1.bf16.msra.mxu0 0
    %2458 = vmatprep.subr.bf16.mxu0 0
    %2459 = vmatpush1.bf16.msra.mxu0 0
    %2460 = vmatprep.subr.bf16.mxu0 0
    %2461 = vmatpush1.bf16.msra.mxu0 0
    %2462 = vmatprep.mubr.bf16.mxu0 0
    %2463 = vmatmul.mubr.bf16.gmra.mrb[0].mxu0 0
    %v2464 = vpop.f32.mrb[0].mxu0
    %v2465 = vadd.f32 0.0, %v2464
    %v2466 = vpop.f32.mrb[0].mxu0
    %v2467 = vadd.f32 0.0, %v2466
    %v2468 = vpop.f32.mrb[0].mxu0
    %v2469 = vpop.f32.mrb[0].mxu0
    %2470 = vdwg.mxu0
    %v2475 = vrot.slane %v2424, 1
    %v2476 = vrot.slane %v2426, 1
    %v2477 = vrot.slane %v2465, 1
    %v2478 = vrot.slane %v2467, 1
    %v2479 = vrot.slane %v2424, 2
    %v2480 = vrot.slane %v2426, 2
    %v2481 = vrot.slane %v2465, 2
    %v2482 = vrot.slane %v2467, 2
    %v2491 = vadd.f32 %v2145, %v2475
    %v2492 = vadd.f32 %v2147, %v2476
    %v2493 = vadd.f32 %v2188, %v2477
    %v2494 = vadd.f32 %v2190, %v2478
    %v2495 = vadd.f32 %v2149, %v2479
    %v2496 = vadd.f32 %v2151, %v2480
    %v2497 = vadd.f32 %v2192, %v2481
    %v2498 = vadd.f32 %v2194, %v2482
    %v2499 = vxor.u32 %v2491, 2147483648
    %v2500 = vxor.u32 %v2495, 2147483648
    %v2501 = vmul.f32 %v2499, 1.442695
    %v2502 = vpow.pop %v2501
    %v2503 = vmul.f32 %v2500, 1.442695
    %v2504 = vpow.pop %v2503
    %v2505 = vadd.f32 %v2502, 1.0
    %v2506 = vadd.f32 %v2504, 1.0
    %v2507 = vrcp.pop %v2505
    %v2508 = vmul.f32 1.0, %v2507
    %v2509 = vrcp.pop %v2506
    %v2510 = vmul.f32 1.0, %v2509
    %v2511 = vxor.u32 %v2492, 2147483648
    %v2512 = vxor.u32 %v2496, 2147483648
    %v2513 = vmul.f32 %v2511, 1.442695
    %v2514 = vpow.pop %v2513
    %v2515 = vmul.f32 %v2512, 1.442695
    %v2516 = vpow.pop %v2515
    %v2517 = vadd.f32 %v2514, 1.0
    %v2518 = vadd.f32 %v2516, 1.0
    %v2519 = vrcp.pop %v2517
    %v2520 = vmul.f32 1.0, %v2519
    %v2521 = vrcp.pop %v2518
    %v2522 = vmul.f32 1.0, %v2521
    %v2523 = vtanh.pop %v2493
    %v2524 = vtanh.pop %v2497
    %v2525 = vxor.u32 %v2494, 2147483648
    %v2526 = vxor.u32 %v2498, 2147483648
    %v2527 = vmul.f32 %v2525, 1.442695
    %v2528 = vpow.pop %v2527
    %v2529 = vmul.f32 %v2526, 1.442695
    %v2530 = vpow.pop %v2529
    %v2531 = vadd.f32 %v2528, 1.0
    %v2532 = vadd.f32 %v2530, 1.0
    %v2533 = vrcp.pop %v2531
    %v2534 = vmul.f32 1.0, %v2533
    %v2535 = vrcp.pop %v2532
    %v2536 = vmul.f32 1.0, %v2535
    %v2537 = vmul.f32 %v2520, 0.0
    %v2538 = vmul.f32 %v2522, 0.0
    %v2539 = vmul.f32 %v2508, %v2523
    %v2540 = vmul.f32 %v2510, %v2524
    %v2541 = vadd.f32 %v2537, %v2539
    %v2542 = vadd.f32 %v2538, %v2540
    %v2543 = vtanh.pop %v2541
    %v2544 = vtanh.pop %v2542
    %v2545 = vmul.f32 %v2534, %v2543
    %v2546 = vmul.f32 %v2536, %v2544
    %v2547 = vpack.c.bf16 %v2545, %v2545
    %v2548 = vpack.c.bf16 %v2546, %v2546
    %v2551 = vunpack.c.l.b16 %v2547
    %v2552 = vunpack.c.l.b16 %v2548
    %v2553 = vrot.slane %v2551, 7
    %v2554 = vrot.slane %v2552, 6
    %v2555 = vsel %vm681, %v2554, %v2553
    %v2556 = vpack.c.b16 %v2555, %v2555
    %2558 = vmatprep.subr.bf16.mxu0 %v2326
    %2559 = vmatpush1.bf16.msra.mxu0 %v2325
    %2560 = vmatprep.subr.bf16.mxu0 %v2330
    %2561 = vmatpush1.bf16.msra.mxu0 %v2329
    %2562 = vmatprep.subr.bf16.mxu0 %v2334
    %2563 = vmatpush1.bf16.msra.mxu0 %v2333
    %2564 = vmatprep.subr.bf16.mxu0 %v2338
    %2565 = vmatpush1.bf16.msra.mxu0 %v2337
    %2566 = vmatprep.subr.bf16.mxu0 %v2342
    %2567 = vmatpush1.bf16.msra.mxu0 %v2341
    %2568 = vmatprep.subr.bf16.mxu0 %v2346
    %2569 = vmatpush1.bf16.msra.mxu0 %v2345
    %2570 = vmatprep.subr.bf16.mxu0 %v2350
    %2571 = vmatpush1.bf16.msra.mxu0 %v2349
    %2572 = vmatprep.subr.bf16.mxu0 %v2354
    %2573 = vmatpush1.bf16.msra.mxu0 %v2353
    %2574 = vmatprep.subr.bf16.mxu0 0
    %2575 = vmatpush1.bf16.msra.mxu0 0
    %2576 = vmatprep.subr.bf16.mxu0 0
    %2577 = vmatpush1.bf16.msra.mxu0 0
    %2578 = vmatprep.subr.bf16.mxu0 0
    %2579 = vmatpush1.bf16.msra.mxu0 0
    %2580 = vmatprep.subr.bf16.mxu0 0
    %2581 = vmatpush1.bf16.msra.mxu0 0
    %2582 = vmatprep.subr.bf16.mxu0 0
    %2583 = vmatpush1.bf16.msra.mxu0 0
    %2584 = vmatprep.subr.bf16.mxu0 0
    %2585 = vmatpush1.bf16.msra.mxu0 0
    %2586 = vmatprep.subr.bf16.mxu0 0
    %2587 = vmatpush1.bf16.msra.mxu0 0
    %2588 = vmatprep.subr.bf16.mxu0 0
    %2589 = vmatpush1.bf16.msra.mxu0 0
    %2590 = vmatprep.mubr.bf16.mxu0 0
    %2591 = vmatmul.mubr.bf16.gmra.mrb[0].mxu0 %v2556
    %v2592 = vpop.f32.mrb[0].mxu0
    %v2593 = vadd.f32 0.0, %v2592
    %v2594 = vpop.f32.mrb[0].mxu0
    %v2595 = vadd.f32 0.0, %v2594
    %v2596 = vpop.f32.mrb[0].mxu0
    %v2597 = vpop.f32.mrb[0].mxu0
    %2598 = vdwg.mxu0
    %2599 = vmatprep.subr.bf16.mxu0 %v2328
    %2600 = vmatpush1.bf16.msra.mxu0 %v2327
    %2601 = vmatprep.subr.bf16.mxu0 %v2332
    %2602 = vmatpush1.bf16.msra.mxu0 %v2331
    %2603 = vmatprep.subr.bf16.mxu0 %v2336
    %2604 = vmatpush1.bf16.msra.mxu0 %v2335
    %2605 = vmatprep.subr.bf16.mxu0 %v2340
    %2606 = vmatpush1.bf16.msra.mxu0 %v2339
    %2607 = vmatprep.subr.bf16.mxu0 %v2344
    %2608 = vmatpush1.bf16.msra.mxu0 %v2343
    %2609 = vmatprep.subr.bf16.mxu0 %v2348
    %2610 = vmatpush1.bf16.msra.mxu0 %v2347
    %2611 = vmatprep.subr.bf16.mxu0 %v2352
    %2612 = vmatpush1.bf16.msra.mxu0 %v2351
    %2613 = vmatprep.subr.bf16.mxu0 %v2356
    %2614 = vmatpush1.bf16.msra.mxu0 %v2355
    %2615 = vmatprep.subr.bf16.mxu0 0
    %2616 = vmatpush1.bf16.msra.mxu0 0
    %2617 = vmatprep.subr.bf16.mxu0 0
    %2618 = vmatpush1.bf16.msra.mxu0 0
    %2619 = vmatprep.subr.bf16.mxu0 0
    %2620 = vmatpush1.bf16.msra.mxu0 0
    %2621 = vmatprep.subr.bf16.mxu0 0
    %2622 = vmatpush1.bf16.msra.mxu0 0
    %2623 = vmatprep.subr.bf16.mxu0 0
    %2624 = vmatpush1.bf16.msra.mxu0 0
    %2625 = vmatprep.subr.bf16.mxu0 0
    %2626 = vmatpush1.bf16.msra.mxu0 0
    %2627 = vmatprep.subr.bf16.mxu0 0
    %2628 = vmatpush1.bf16.msra.mxu0 0
    %2629 = vmatprep.subr.bf16.mxu0 0
    %2630 = vmatpush1.bf16.msra.mxu0 0
    %2631 = vmatprep.mubr.bf16.mxu0 0
    %2632 = vmatmul.mubr.bf16.gmra.mrb[0].mxu0 %v2556
    %v2633 = vpop.f32.mrb[0].mxu0
    %v2634 = vadd.f32 0.0, %v2633
    %v2635 = vpop.f32.mrb[0].mxu0
    %v2636 = vadd.f32 0.0, %v2635
    %v2637 = vpop.f32.mrb[0].mxu0
    %v2638 = vpop.f32.mrb[0].mxu0
    %2639 = vdwg.mxu0
    %v2644 = vrot.slane %v2593, 2
    %v2645 = vrot.slane %v2595, 2
    %v2646 = vrot.slane %v2634, 2
    %v2647 = vrot.slane %v2636, 2
    %v2648 = vrot.slane %v2593, 3
    %v2649 = vrot.slane %v2595, 3
    %v2650 = vrot.slane %v2634, 3
    %v2651 = vrot.slane %v2636, 3
    %v2660 = vadd.f32 %v2145, %v2644
    %v2661 = vadd.f32 %v2147, %v2645
    %v2662 = vadd.f32 %v2188, %v2646
    %v2663 = vadd.f32 %v2190, %v2647
    %v2664 = vadd.f32 %v2149, %v2648
    %v2665 = vadd.f32 %v2151, %v2649
    %v2666 = vadd.f32 %v2192, %v2650
    %v2667 = vadd.f32 %v2194, %v2651
    %v2668 = vxor.u32 %v2660, 2147483648
    %v2669 = vxor.u32 %v2664, 2147483648
    %v2670 = vmul.f32 %v2668, 1.442695
    %v2671 = vpow.pop %v2670
    %v2672 = vmul.f32 %v2669, 1.442695
    %v2673 = vpow.pop %v2672
    %v2674 = vadd.f32 %v2671, 1.0
    %v2675 = vadd.f32 %v2673, 1.0
    %v2676 = vrcp.pop %v2674
    %v2677 = vmul.f32 1.0, %v2676
    %v2678 = vrcp.pop %v2675
    %v2679 = vmul.f32 1.0, %v2678
    %v2680 = vxor.u32 %v2661, 2147483648
    %v2681 = vxor.u32 %v2665, 2147483648
    %v2682 = vmul.f32 %v2680, 1.442695
    %v2683 = vpow.pop %v2682
    %v2684 = vmul.f32 %v2681, 1.442695
    %v2685 = vpow.pop %v2684
    %v2686 = vadd.f32 %v2683, 1.0
    %v2687 = vadd.f32 %v2685, 1.0
    %v2688 = vrcp.pop %v2686
    %v2689 = vmul.f32 1.0, %v2688
    %v2690 = vrcp.pop %v2687
    %v2691 = vmul.f32 1.0, %v2690
    %v2692 = vtanh.pop %v2662
    %v2693 = vtanh.pop %v2666
    %v2694 = vxor.u32 %v2663, 2147483648
    %v2695 = vxor.u32 %v2667, 2147483648
    %v2696 = vmul.f32 %v2694, 1.442695
    %v2697 = vpow.pop %v2696
    %v2698 = vmul.f32 %v2695, 1.442695
    %v2699 = vpow.pop %v2698
    %v2700 = vadd.f32 %v2697, 1.0
    %v2701 = vadd.f32 %v2699, 1.0
    %v2702 = vrcp.pop %v2700
    %v2703 = vmul.f32 1.0, %v2702
    %v2704 = vrcp.pop %v2701
    %v2705 = vmul.f32 1.0, %v2704
    %v2708 = vrot.slane %v2541, 1
    %v2709 = vrot.slane %v2542, 1
    %v2712 = vmul.f32 %v2689, %v2708
    %v2713 = vmul.f32 %v2691, %v2709
    %v2714 = vmul.f32 %v2677, %v2692
    %v2715 = vmul.f32 %v2679, %v2693
    %v2716 = vadd.f32 %v2712, %v2714
    %v2717 = vadd.f32 %v2713, %v2715
    %v2718 = vtanh.pop %v2716
    %v2719 = vtanh.pop %v2717
    %v2720 = vmul.f32 %v2703, %v2718
    %v2721 = vmul.f32 %v2705, %v2719
    %v2722 = vpack.c.bf16 %v2720, %v2720
    %v2723 = vpack.c.bf16 %v2721, %v2721
    %v2726 = vunpack.c.l.b16 %v2722
    %v2727 = vunpack.c.l.b16 %v2723
    %v2728 = vrot.slane %v2726, 6
    %v2729 = vrot.slane %v2727, 5
    %v2730 = vsel %vm681, %v2729, %v2728
    %v2731 = vpack.c.b16 %v2730, %v2730
    %2733 = vmatprep.subr.bf16.mxu0 %v2326
    %2734 = vmatpush1.bf16.msra.mxu0 %v2325
    %2735 = vmatprep.subr.bf16.mxu0 %v2330
    %2736 = vmatpush1.bf16.msra.mxu0 %v2329
    %2737 = vmatprep.subr.bf16.mxu0 %v2334
    %2738 = vmatpush1.bf16.msra.mxu0 %v2333
    %2739 = vmatprep.subr.bf16.mxu0 %v2338
    %2740 = vmatpush1.bf16.msra.mxu0 %v2337
    %2741 = vmatprep.subr.bf16.mxu0 %v2342
    %2742 = vmatpush1.bf16.msra.mxu0 %v2341
    %2743 = vmatprep.subr.bf16.mxu0 %v2346
    %2744 = vmatpush1.bf16.msra.mxu0 %v2345
    %2745 = vmatprep.subr.bf16.mxu0 %v2350
    %2746 = vmatpush1.bf16.msra.mxu0 %v2349
    %2747 = vmatprep.subr.bf16.mxu0 %v2354
    %2748 = vmatpush1.bf16.msra.mxu0 %v2353
    %2749 = vmatprep.subr.bf16.mxu0 0
    %2750 = vmatpush1.bf16.msra.mxu0 0
    %2751 = vmatprep.subr.bf16.mxu0 0
    %2752 = vmatpush1.bf16.msra.mxu0 0
    %2753 = vmatprep.subr.bf16.mxu0 0
    %2754 = vmatpush1.bf16.msra.mxu0 0
    %2755 = vmatprep.subr.bf16.mxu0 0
    %2756 = vmatpush1.bf16.msra.mxu0 0
    %2757 = vmatprep.subr.bf16.mxu0 0
    %2758 = vmatpush1.bf16.msra.mxu0 0
    %2759 = vmatprep.subr.bf16.mxu0 0
    %2760 = vmatpush1.bf16.msra.mxu0 0
    %2761 = vmatprep.subr.bf16.mxu0 0
    %2762 = vmatpush1.bf16.msra.mxu0 0
    %2763 = vmatprep.subr.bf16.mxu0 0
    %2764 = vmatpush1.bf16.msra.mxu0 0
    %2765 = vmatprep.mubr.bf16.mxu0 0
    %2766 = vmatmul.mubr.bf16.gmra.mrb[0].mxu0 %v2731
    %v2767 = vpop.f32.mrb[0].mxu0
    %v2768 = vadd.f32 0.0, %v2767
    %v2769 = vpop.f32.mrb[0].mxu0
    %v2770 = vadd.f32 0.0, %v2769
    %v2771 = vpop.f32.mrb[0].mxu0
    %v2772 = vpop.f32.mrb[0].mxu0
    %2773 = vdwg.mxu0
    %2774 = vmatprep.subr.bf16.mxu0 %v2328
    %2775 = vmatpush1.bf16.msra.mxu0 %v2327
    %2776 = vmatprep.subr.bf16.mxu0 %v2332
    %2777 = vmatpush1.bf16.msra.mxu0 %v2331
    %2778 = vmatprep.subr.bf16.mxu0 %v2336
    %2779 = vmatpush1.bf16.msra.mxu0 %v2335
    %2780 = vmatprep.subr.bf16.mxu0 %v2340
    %2781 = vmatpush1.bf16.msra.mxu0 %v2339
    %2782 = vmatprep.subr.bf16.mxu0 %v2344
    %2783 = vmatpush1.bf16.msra.mxu0 %v2343
    %2784 = vmatprep.subr.bf16.mxu0 %v2348
    %2785 = vmatpush1.bf16.msra.mxu0 %v2347
    %2786 = vmatprep.subr.bf16.mxu0 %v2352
    %2787 = vmatpush1.bf16.msra.mxu0 %v2351
    %2788 = vmatprep.subr.bf16.mxu0 %v2356
    %2789 = vmatpush1.bf16.msra.mxu0 %v2355
    %2790 = vmatprep.subr.bf16.mxu0 0
    %2791 = vmatpush1.bf16.msra.mxu0 0
    %2792 = vmatprep.subr.bf16.mxu0 0
    %2793 = vmatpush1.bf16.msra.mxu0 0
    %2794 = vmatprep.subr.bf16.mxu0 0
    %2795 = vmatpush1.bf16.msra.mxu0 0
    %2796 = vmatprep.subr.bf16.mxu0 0
    %2797 = vmatpush1.bf16.msra.mxu0 0
    %2798 = vmatprep.subr.bf16.mxu0 0
    %2799 = vmatpush1.bf16.msra.mxu0 0
    %2800 = vmatprep.subr.bf16.mxu0 0
    %2801 = vmatpush1.bf16.msra.mxu0 0
    %2802 = vmatprep.subr.bf16.mxu0 0
    %2803 = vmatpush1.bf16.msra.mxu0 0
    %2804 = vmatprep.subr.bf16.mxu0 0
    %2805 = vmatpush1.bf16.msra.mxu0 0
    %2806 = vmatprep.mubr.bf16.mxu0 0
    %2807 = vmatmul.mubr.bf16.gmra.mrb[0].mxu0 %v2731
    %v2808 = vpop.f32.mrb[0].mxu0
    %v2809 = vadd.f32 0.0, %v2808
    %v2810 = vpop.f32.mrb[0].mxu0
    %v2811 = vadd.f32 0.0, %v2810
    %v2812 = vpop.f32.mrb[0].mxu0
    %v2813 = vpop.f32.mrb[0].mxu0
    %2814 = vdwg.mxu0
    %v2819 = vrot.slane %v2768, 3
    %v2820 = vrot.slane %v2770, 3
    %v2821 = vrot.slane %v2809, 3
    %v2822 = vrot.slane %v2811, 3
    %v2823 = vrot.slane %v2768, 4
    %v2824 = vrot.slane %v2770, 4
    %v2825 = vrot.slane %v2809, 4
    %v2826 = vrot.slane %v2811, 4
    %v2835 = vadd.f32 %v2145, %v2819
    %v2836 = vadd.f32 %v2147, %v2820
    %v2837 = vadd.f32 %v2188, %v2821
    %v2838 = vadd.f32 %v2190, %v2822
    %v2839 = vadd.f32 %v2149, %v2823
    %v2840 = vadd.f32 %v2151, %v2824
    %v2841 = vadd.f32 %v2192, %v2825
    %v2842 = vadd.f32 %v2194, %v2826
    %v2843 = vxor.u32 %v2835, 2147483648
    %v2844 = vxor.u32 %v2839, 2147483648
    %v2845 = vmul.f32 %v2843, 1.442695
    %v2846 = vpow.pop %v2845
    %v2847 = vmul.f32 %v2844, 1.442695
    %v2848 = vpow.pop %v2847
    %v2849 = vadd.f32 %v2846, 1.0
    %v2850 = vadd.f32 %v2848, 1.0
    %v2851 = vrcp.pop %v2849
    %v2852 = vmul.f32 1.0, %v2851
    %v2853 = vrcp.pop %v2850
    %v2854 = vmul.f32 1.0, %v2853
    %v2855 = vxor.u32 %v2836, 2147483648
    %v2856 = vxor.u32 %v2840, 2147483648
    %v2857 = vmul.f32 %v2855, 1.442695
    %v2858 = vpow.pop %v2857
    %v2859 = vmul.f32 %v2856, 1.442695
    %v2860 = vpow.pop %v2859
    %v2861 = vadd.f32 %v2858, 1.0
    %v2862 = vadd.f32 %v2860, 1.0
    %v2863 = vrcp.pop %v2861
    %v2864 = vmul.f32 1.0, %v2863
    %v2865 = vrcp.pop %v2862
    %v2866 = vmul.f32 1.0, %v2865
    %v2867 = vtanh.pop %v2837
    %v2868 = vtanh.pop %v2841
    %v2869 = vxor.u32 %v2838, 2147483648
    %v2870 = vxor.u32 %v2842, 2147483648
    %v2871 = vmul.f32 %v2869, 1.442695
    %v2872 = vpow.pop %v2871
    %v2873 = vmul.f32 %v2870, 1.442695
    %v2874 = vpow.pop %v2873
    %v2875 = vadd.f32 %v2872, 1.0
    %v2876 = vadd.f32 %v2874, 1.0
    %v2877 = vrcp.pop %v2875
    %v2878 = vmul.f32 1.0, %v2877
    %v2879 = vrcp.pop %v2876
    %v2880 = vmul.f32 1.0, %v2879
    %v2883 = vrot.slane %v2716, 1
    %v2884 = vrot.slane %v2717, 1
    %v2887 = vmul.f32 %v2864, %v2883
    %v2888 = vmul.f32 %v2866, %v2884
    %v2889 = vmul.f32 %v2852, %v2867
    %v2890 = vmul.f32 %v2854, %v2868
    %v2891 = vadd.f32 %v2887, %v2889
    %v2892 = vadd.f32 %v2888, %v2890
    %v2893 = vtanh.pop %v2891
    %v2894 = vtanh.pop %v2892
    %v2895 = vmul.f32 %v2878, %v2893
    %v2896 = vmul.f32 %v2880, %v2894
    %v2897 = vpack.c.bf16 %v2895, %v2895
    %v2898 = vpack.c.bf16 %v2896, %v2896
    %v2901 = vunpack.c.l.b16 %v2897
    %v2902 = vunpack.c.l.b16 %v2898
    %v2903 = vrot.slane %v2901, 5
    %v2904 = vrot.slane %v2902, 4
    %v2905 = vsel %vm681, %v2904, %v2903
    %v2906 = vpack.c.b16 %v2905, %v2905
    %2908 = vmatprep.subr.bf16.mxu0 %v2326
    %2909 = vmatpush1.bf16.msra.mxu0 %v2325
    %2910 = vmatprep.subr.bf16.mxu0 %v2330
    %2911 = vmatpush1.bf16.msra.mxu0 %v2329
    %2912 = vmatprep.subr.bf16.mxu0 %v2334
    %2913 = vmatpush1.bf16.msra.mxu0 %v2333
    %2914 = vmatprep.subr.bf16.mxu0 %v2338
    %2915 = vmatpush1.bf16.msra.mxu0 %v2337
    %2916 = vmatprep.subr.bf16.mxu0 %v2342
    %2917 = vmatpush1.bf16.msra.mxu0 %v2341
    %2918 = vmatprep.subr.bf16.mxu0 %v2346
    %2919 = vmatpush1.bf16.msra.mxu0 %v2345
    %2920 = vmatprep.subr.bf16.mxu0 %v2350
    %2921 = vmatpush1.bf16.msra.mxu0 %v2349
    %2922 = vmatprep.subr.bf16.mxu0 %v2354
    %2923 = vmatpush1.bf16.msra.mxu0 %v2353
    %2924 = vmatprep.subr.bf16.mxu0 0
    %2925 = vmatpush1.bf16.msra.mxu0 0
    %2926 = vmatprep.subr.bf16.mxu0 0
    %2927 = vmatpush1.bf16.msra.mxu0 0
    %2928 = vmatprep.subr.bf16.mxu0 0
    %2929 = vmatpush1.bf16.msra.mxu0 0
    %2930 = vmatprep.subr.bf16.mxu0 0
    %2931 = vmatpush1.bf16.msra.mxu0 0
    %2932 = vmatprep.subr.bf16.mxu0 0
    %2933 = vmatpush1.bf16.msra.mxu0 0
    %2934 = vmatprep.subr.bf16.mxu0 0
    %2935 = vmatpush1.bf16.msra.mxu0 0
    %2936 = vmatprep.subr.bf16.mxu0 0
    %2937 = vmatpush1.bf16.msra.mxu0 0
    %2938 = vmatprep.subr.bf16.mxu0 0
    %2939 = vmatpush1.bf16.msra.mxu0 0
    %2940 = vmatprep.mubr.bf16.mxu0 0
    %2941 = vmatmul.mubr.bf16.gmra.mrb[0].mxu0 %v2906
    %v2942 = vpop.f32.mrb[0].mxu0
    %v2943 = vadd.f32 0.0, %v2942
    %v2944 = vpop.f32.mrb[0].mxu0
    %v2945 = vadd.f32 0.0, %v2944
    %v2946 = vpop.f32.mrb[0].mxu0
    %v2947 = vpop.f32.mrb[0].mxu0
    %2948 = vdwg.mxu0
    %2949 = vmatprep.subr.bf16.mxu0 %v2328
    %2950 = vmatpush1.bf16.msra.mxu0 %v2327
    %2951 = vmatprep.subr.bf16.mxu0 %v2332
    %2952 = vmatpush1.bf16.msra.mxu0 %v2331
    %2953 = vmatprep.subr.bf16.mxu0 %v2336
    %2954 = vmatpush1.bf16.msra.mxu0 %v2335
    %2955 = vmatprep.subr.bf16.mxu0 %v2340
    %2956 = vmatpush1.bf16.msra.mxu0 %v2339
    %2957 = vmatprep.subr.bf16.mxu0 %v2344
    %2958 = vmatpush1.bf16.msra.mxu0 %v2343
    %2959 = vmatprep.subr.bf16.mxu0 %v2348
    %2960 = vmatpush1.bf16.msra.mxu0 %v2347
    %2961 = vmatprep.subr.bf16.mxu0 %v2352
    %2962 = vmatpush1.bf16.msra.mxu0 %v2351
    %2963 = vmatprep.subr.bf16.mxu0 %v2356
    %2964 = vmatpush1.bf16.msra.mxu0 %v2355
    %2965 = vmatprep.subr.bf16.mxu0 0
    %2966 = vmatpush1.bf16.msra.mxu0 0
    %2967 = vmatprep.subr.bf16.mxu0 0
    %2968 = vmatpush1.bf16.msra.mxu0 0
    %2969 = vmatprep.subr.bf16.mxu0 0
    %2970 = vmatpush1.bf16.msra.mxu0 0
    %2971 = vmatprep.subr.bf16.mxu0 0
    %2972 = vmatpush1.bf16.msra.mxu0 0
    %2973 = vmatprep.subr.bf16.mxu0 0
    %2974 = vmatpush1.bf16.msra.mxu0 0
    %2975 = vmatprep.subr.bf16.mxu0 0
    %2976 = vmatpush1.bf16.msra.mxu0 0
    %2977 = vmatprep.subr.bf16.mxu0 0
    %2978 = vmatpush1.bf16.msra.mxu0 0
    %2979 = vmatprep.subr.bf16.mxu0 0
    %2980 = vmatpush1.bf16.msra.mxu0 0
    %2981 = vmatprep.mubr.bf16.mxu0 0
    %2982 = vmatmul.mubr.bf16.gmra.mrb[0].mxu0 %v2906
    %v2983 = vpop.f32.mrb[0].mxu0
    %v2984 = vadd.f32 0.0, %v2983
    %v2985 = vpop.f32.mrb[0].mxu0
    %v2986 = vadd.f32 0.0, %v2985
    %v2987 = vpop.f32.mrb[0].mxu0
    %v2988 = vpop.f32.mrb[0].mxu0
    %2989 = vdwg.mxu0
    %v2994 = vrot.slane %v2943, 4
    %v2995 = vrot.slane %v2945, 4
    %v2996 = vrot.slane %v2984, 4
    %v2997 = vrot.slane %v2986, 4
    %v2998 = vrot.slane %v2943, 5
    %v2999 = vrot.slane %v2945, 5
    %v3000 = vrot.slane %v2984, 5
    %v3001 = vrot.slane %v2986, 5
    %v3010 = vadd.f32 %v2145, %v2994
    %v3011 = vadd.f32 %v2147, %v2995
    %v3012 = vadd.f32 %v2188, %v2996
    %v3013 = vadd.f32 %v2190, %v2997
    %v3014 = vadd.f32 %v2149, %v2998
    %v3015 = vadd.f32 %v2151, %v2999
    %v3016 = vadd.f32 %v2192, %v3000
    %v3017 = vadd.f32 %v2194, %v3001
    %v3018 = vxor.u32 %v3010, 2147483648
    %v3019 = vxor.u32 %v3014, 2147483648
    %v3020 = vmul.f32 %v3018, 1.442695
    %v3021 = vpow.pop %v3020
    %v3022 = vmul.f32 %v3019, 1.442695
    %v3023 = vpow.pop %v3022
    %v3024 = vadd.f32 %v3021, 1.0
    %v3025 = vadd.f32 %v3023, 1.0
    %v3026 = vrcp.pop %v3024
    %v3027 = vmul.f32 1.0, %v3026
    %v3028 = vrcp.pop %v3025
    %v3029 = vmul.f32 1.0, %v3028
    %v3030 = vxor.u32 %v3011, 2147483648
    %v3031 = vxor.u32 %v3015, 2147483648
    %v3032 = vmul.f32 %v3030, 1.442695
    %v3033 = vpow.pop %v3032
    %v3034 = vmul.f32 %v3031, 1.442695
    %v3035 = vpow.pop %v3034
    %v3036 = vadd.f32 %v3033, 1.0
    %v3037 = vadd.f32 %v3035, 1.0
    %v3038 = vrcp.pop %v3036
    %v3039 = vmul.f32 1.0, %v3038
    %v3040 = vrcp.pop %v3037
    %v3041 = vmul.f32 1.0, %v3040
    %v3042 = vtanh.pop %v3012
    %v3043 = vtanh.pop %v3016
    %v3044 = vxor.u32 %v3013, 2147483648
    %v3045 = vxor.u32 %v3017, 2147483648
    %v3046 = vmul.f32 %v3044, 1.442695
    %v3047 = vpow.pop %v3046
    %v3048 = vmul.f32 %v3045, 1.442695
    %v3049 = vpow.pop %v3048
    %v3050 = vadd.f32 %v3047, 1.0
    %v3051 = vadd.f32 %v3049, 1.0
    %v3052 = vrcp.pop %v3050
    %v3053 = vmul.f32 1.0, %v3052
    %v3054 = vrcp.pop %v3051
    %v3055 = vmul.f32 1.0, %v3054
    %v3058 = vrot.slane %v2891, 1
    %v3059 = vrot.slane %v2892, 1
    %v3062 = vmul.f32 %v3039, %v3058
    %v3063 = vmul.f32 %v3041, %v3059
    %v3064 = vmul.f32 %v3027, %v3042
    %v3065 = vmul.f32 %v3029, %v3043
    %v3066 = vadd.f32 %v3062, %v3064
    %v3067 = vadd.f32 %v3063, %v3065
    %v3068 = vtanh.pop %v3066
    %v3069 = vtanh.pop %v3067
    %v3070 = vmul.f32 %v3053, %v3068
    %v3071 = vmul.f32 %v3055, %v3069
    %v3072 = vpack.c.bf16 %v3070, %v3070
    %v3073 = vpack.c.bf16 %v3071, %v3071
    %v3076 = vunpack.c.l.b16 %v3072
    %v3077 = vunpack.c.l.b16 %v3073
    %v3078 = vrot.slane %v3076, 4
    %v3079 = vrot.slane %v3077, 3
    %v3080 = vsel %vm681, %v3079, %v3078
    %v3081 = vpack.c.b16 %v3080, %v3080
    %3083 = vmatprep.subr.bf16.mxu0 %v2326
    %3084 = vmatpush1.bf16.msra.mxu0 %v2325
    %3085 = vmatprep.subr.bf16.mxu0 %v2330
    %3086 = vmatpush1.bf16.msra.mxu0 %v2329
    %3087 = vmatprep.subr.bf16.mxu0 %v2334
    %3088 = vmatpush1.bf16.msra.mxu0 %v2333
    %3089 = vmatprep.subr.bf16.mxu0 %v2338
    %3090 = vmatpush1.bf16.msra.mxu0 %v2337
    %3091 = vmatprep.subr.bf16.mxu0 %v2342
    %3092 = vmatpush1.bf16.msra.mxu0 %v2341
    %3093 = vmatprep.subr.bf16.mxu0 %v2346
    %3094 = vmatpush1.bf16.msra.mxu0 %v2345
    %3095 = vmatprep.subr.bf16.mxu0 %v2350
    %3096 = vmatpush1.bf16.msra.mxu0 %v2349
    %3097 = vmatprep.subr.bf16.mxu0 %v2354
    %3098 = vmatpush1.bf16.msra.mxu0 %v2353
    %3099 = vmatprep.subr.bf16.mxu0 0
    %3100 = vmatpush1.bf16.msra.mxu0 0
    %3101 = vmatprep.subr.bf16.mxu0 0
    %3102 = vmatpush1.bf16.msra.mxu0 0
    %3103 = vmatprep.subr.bf16.mxu0 0
    %3104 = vmatpush1.bf16.msra.mxu0 0
    %3105 = vmatprep.subr.bf16.mxu0 0
    %3106 = vmatpush1.bf16.msra.mxu0 0
    %3107 = vmatprep.subr.bf16.mxu0 0
    %3108 = vmatpush1.bf16.msra.mxu0 0
    %3109 = vmatprep.subr.bf16.mxu0 0
    %3110 = vmatpush1.bf16.msra.mxu0 0
    %3111 = vmatprep.subr.bf16.mxu0 0
    %3112 = vmatpush1.bf16.msra.mxu0 0
    %3113 = vmatprep.subr.bf16.mxu0 0
    %3114 = vmatpush1.bf16.msra.mxu0 0
    %3115 = vmatprep.mubr.bf16.mxu0 0
    %3116 = vmatmul.mubr.bf16.gmra.mrb[0].mxu0 %v3081
    %v3117 = vpop.f32.mrb[0].mxu0
    %v3118 = vadd.f32 0.0, %v3117
    %v3119 = vpop.f32.mrb[0].mxu0
    %v3120 = vadd.f32 0.0, %v3119
    %v3121 = vpop.f32.mrb[0].mxu0
    %v3122 = vpop.f32.mrb[0].mxu0
    %3123 = vdwg.mxu0
    %3124 = vmatprep.subr.bf16.mxu0 %v2328
    %3125 = vmatpush1.bf16.msra.mxu0 %v2327
    %3126 = vmatprep.subr.bf16.mxu0 %v2332
    %3127 = vmatpush1.bf16.msra.mxu0 %v2331
    %3128 = vmatprep.subr.bf16.mxu0 %v2336
    %3129 = vmatpush1.bf16.msra.mxu0 %v2335
    %3130 = vmatprep.subr.bf16.mxu0 %v2340
    %3131 = vmatpush1.bf16.msra.mxu0 %v2339
    %3132 = vmatprep.subr.bf16.mxu0 %v2344
    %3133 = vmatpush1.bf16.msra.mxu0 %v2343
    %3134 = vmatprep.subr.bf16.mxu0 %v2348
    %3135 = vmatpush1.bf16.msra.mxu0 %v2347
    %3136 = vmatprep.subr.bf16.mxu0 %v2352
    %3137 = vmatpush1.bf16.msra.mxu0 %v2351
    %3138 = vmatprep.subr.bf16.mxu0 %v2356
    %3139 = vmatpush1.bf16.msra.mxu0 %v2355
    %3140 = vmatprep.subr.bf16.mxu0 0
    %3141 = vmatpush1.bf16.msra.mxu0 0
    %3142 = vmatprep.subr.bf16.mxu0 0
    %3143 = vmatpush1.bf16.msra.mxu0 0
    %3144 = vmatprep.subr.bf16.mxu0 0
    %3145 = vmatpush1.bf16.msra.mxu0 0
    %3146 = vmatprep.subr.bf16.mxu0 0
    %3147 = vmatpush1.bf16.msra.mxu0 0
    %3148 = vmatprep.subr.bf16.mxu0 0
    %3149 = vmatpush1.bf16.msra.mxu0 0
    %3150 = vmatprep.subr.bf16.mxu0 0
    %3151 = vmatpush1.bf16.msra.mxu0 0
    %3152 = vmatprep.subr.bf16.mxu0 0
    %3153 = vmatpush1.bf16.msra.mxu0 0
    %3154 = vmatprep.subr.bf16.mxu0 0
    %3155 = vmatpush1.bf16.msra.mxu0 0
    %3156 = vmatprep.mubr.bf16.mxu0 0
    %3157 = vmatmul.mubr.bf16.gmra.mrb[0].mxu0 %v3081
    %v3158 = vpop.f32.mrb[0].mxu0
    %v3159 = vadd.f32 0.0, %v3158
    %v3160 = vpop.f32.mrb[0].mxu0
    %v3161 = vadd.f32 0.0, %v3160
    %v3162 = vpop.f32.mrb[0].mxu0
    %v3163 = vpop.f32.mrb[0].mxu0
    %3164 = vdwg.mxu0
    %v3169 = vrot.slane %v3118, 5
    %v3170 = vrot.slane %v3120, 5
    %v3171 = vrot.slane %v3159, 5
    %v3172 = vrot.slane %v3161, 5
    %v3173 = vrot.slane %v3118, 6
    %v3174 = vrot.slane %v3120, 6
    %v3175 = vrot.slane %v3159, 6
    %v3176 = vrot.slane %v3161, 6
    %v3185 = vadd.f32 %v2145, %v3169
    %v3186 = vadd.f32 %v2147, %v3170
    %v3187 = vadd.f32 %v2188, %v3171
    %v3188 = vadd.f32 %v2190, %v3172
    %v3189 = vadd.f32 %v2149, %v3173
    %v3190 = vadd.f32 %v2151, %v3174
    %v3191 = vadd.f32 %v2192, %v3175
    %v3192 = vadd.f32 %v2194, %v3176
    %v3193 = vxor.u32 %v3185, 2147483648
    %v3194 = vxor.u32 %v3189, 2147483648
    %v3195 = vmul.f32 %v3193, 1.442695
    %v3196 = vpow.pop %v3195
    %v3197 = vmul.f32 %v3194, 1.442695
    %v3198 = vpow.pop %v3197
    %v3199 = vadd.f32 %v3196, 1.0
    %v3200 = vadd.f32 %v3198, 1.0
    %v3201 = vrcp.pop %v3199
    %v3202 = vmul.f32 1.0, %v3201
    %v3203 = vrcp.pop %v3200
    %v3204 = vmul.f32 1.0, %v3203
    %v3205 = vxor.u32 %v3186, 2147483648
    %v3206 = vxor.u32 %v3190, 2147483648
    %v3207 = vmul.f32 %v3205, 1.442695
    %v3208 = vpow.pop %v3207
    %v3209 = vmul.f32 %v3206, 1.442695
    %v3210 = vpow.pop %v3209
    %v3211 = vadd.f32 %v3208, 1.0
    %v3212 = vadd.f32 %v3210, 1.0
    %v3213 = vrcp.pop %v3211
    %v3214 = vmul.f32 1.0, %v3213
    %v3215 = vrcp.pop %v3212
    %v3216 = vmul.f32 1.0, %v3215
    %v3217 = vtanh.pop %v3187
    %v3218 = vtanh.pop %v3191
    %v3219 = vxor.u32 %v3188, 2147483648
    %v3220 = vxor.u32 %v3192, 2147483648
    %v3221 = vmul.f32 %v3219, 1.442695
    %v3222 = vpow.pop %v3221
    %v3223 = vmul.f32 %v3220, 1.442695
    %v3224 = vpow.pop %v3223
    %v3225 = vadd.f32 %v3222, 1.0
    %v3226 = vadd.f32 %v3224, 1.0
    %v3227 = vrcp.pop %v3225
    %v3228 = vmul.f32 1.0, %v3227
    %v3229 = vrcp.pop %v3226
    %v3230 = vmul.f32 1.0, %v3229
    %v3233 = vrot.slane %v3066, 1
    %v3234 = vrot.slane %v3067, 1
    %v3237 = vmul.f32 %v3214, %v3233
    %v3238 = vmul.f32 %v3216, %v3234
    %v3239 = vmul.f32 %v3202, %v3217
    %v3240 = vmul.f32 %v3204, %v3218
    %v3241 = vadd.f32 %v3237, %v3239
    %v3242 = vadd.f32 %v3238, %v3240
    %v3243 = vtanh.pop %v3241
    %v3244 = vtanh.pop %v3242
    %v3245 = vmul.f32 %v3228, %v3243
    %v3246 = vmul.f32 %v3230, %v3244
    %v3247 = vpack.c.bf16 %v3245, %v3245
    %v3248 = vpack.c.bf16 %v3246, %v3246
    %v3251 = vunpack.c.l.b16 %v3247
    %v3252 = vunpack.c.l.b16 %v3248
    %v3253 = vrot.slane %v3251, 3
    %v3254 = vrot.slane %v3252, 2
    %v3255 = vsel %vm681, %v3254, %v3253
    %v3256 = vpack.c.b16 %v3255, %v3255
    %3258 = vmatprep.subr.bf16.mxu0 %v2326
    %3259 = vmatpush1.bf16.msra.mxu0 %v2325
    %3260 = vmatprep.subr.bf16.mxu0 %v2330
    %3261 = vmatpush1.bf16.msra.mxu0 %v2329
    %3262 = vmatprep.subr.bf16.mxu0 %v2334
    %3263 = vmatpush1.bf16.msra.mxu0 %v2333
    %3264 = vmatprep.subr.bf16.mxu0 %v2338
    %3265 = vmatpush1.bf16.msra.mxu0 %v2337
    %3266 = vmatprep.subr.bf16.mxu0 %v2342
    %3267 = vmatpush1.bf16.msra.mxu0 %v2341
    %3268 = vmatprep.subr.bf16.mxu0 %v2346
    %3269 = vmatpush1.bf16.msra.mxu0 %v2345
    %3270 = vmatprep.subr.bf16.mxu0 %v2350
    %3271 = vmatpush1.bf16.msra.mxu0 %v2349
    %3272 = vmatprep.subr.bf16.mxu0 %v2354
    %3273 = vmatpush1.bf16.msra.mxu0 %v2353
    %3274 = vmatprep.subr.bf16.mxu0 0
    %3275 = vmatpush1.bf16.msra.mxu0 0
    %3276 = vmatprep.subr.bf16.mxu0 0
    %3277 = vmatpush1.bf16.msra.mxu0 0
    %3278 = vmatprep.subr.bf16.mxu0 0
    %3279 = vmatpush1.bf16.msra.mxu0 0
    %3280 = vmatprep.subr.bf16.mxu0 0
    %3281 = vmatpush1.bf16.msra.mxu0 0
    %3282 = vmatprep.subr.bf16.mxu0 0
    %3283 = vmatpush1.bf16.msra.mxu0 0
    %3284 = vmatprep.subr.bf16.mxu0 0
    %3285 = vmatpush1.bf16.msra.mxu0 0
    %3286 = vmatprep.subr.bf16.mxu0 0
    %3287 = vmatpush1.bf16.msra.mxu0 0
    %3288 = vmatprep.subr.bf16.mxu0 0
    %3289 = vmatpush1.bf16.msra.mxu0 0
    %3290 = vmatprep.mubr.bf16.mxu0 0
    %3291 = vmatmul.mubr.bf16.gmra.mrb[0].mxu0 %v3256
    %v3292 = vpop.f32.mrb[0].mxu0
    %v3293 = vadd.f32 0.0, %v3292
    %v3294 = vpop.f32.mrb[0].mxu0
    %v3295 = vadd.f32 0.0, %v3294
    %v3296 = vpop.f32.mrb[0].mxu0
    %v3297 = vpop.f32.mrb[0].mxu0
    %3298 = vdwg.mxu0
    %3299 = vmatprep.subr.bf16.mxu0 %v2328
    %3300 = vmatpush1.bf16.msra.mxu0 %v2327
    %3301 = vmatprep.subr.bf16.mxu0 %v2332
    %3302 = vmatpush1.bf16.msra.mxu0 %v2331
    %3303 = vmatprep.subr.bf16.mxu0 %v2336
    %3304 = vmatpush1.bf16.msra.mxu0 %v2335
    %3305 = vmatprep.subr.bf16.mxu0 %v2340
    %3306 = vmatpush1.bf16.msra.mxu0 %v2339
    %3307 = vmatprep.subr.bf16.mxu0 %v2344
    %3308 = vmatpush1.bf16.msra.mxu0 %v2343
    %3309 = vmatprep.subr.bf16.mxu0 %v2348
    %3310 = vmatpush1.bf16.msra.mxu0 %v2347
    %3311 = vmatprep.subr.bf16.mxu0 %v2352
    %3312 = vmatpush1.bf16.msra.mxu0 %v2351
    %3313 = vmatprep.subr.bf16.mxu0 %v2356
    %3314 = vmatpush1.bf16.msra.mxu0 %v2355
    %3315 = vmatprep.subr.bf16.mxu0 0
    %3316 = vmatpush1.bf16.msra.mxu0 0
    %3317 = vmatprep.subr.bf16.mxu0 0
    %3318 = vmatpush1.bf16.msra.mxu0 0
    %3319 = vmatprep.subr.bf16.mxu0 0
    %3320 = vmatpush1.bf16.msra.mxu0 0
    %3321 = vmatprep.subr.bf16.mxu0 0
    %3322 = vmatpush1.bf16.msra.mxu0 0
    %3323 = vmatprep.subr.bf16.mxu0 0
    %3324 = vmatpush1.bf16.msra.mxu0 0
    %3325 = vmatprep.subr.bf16.mxu0 0
    %3326 = vmatpush1.bf16.msra.mxu0 0
    %3327 = vmatprep.subr.bf16.mxu0 0
    %3328 = vmatpush1.bf16.msra.mxu0 0
    %3329 = vmatprep.subr.bf16.mxu0 0
    %3330 = vmatpush1.bf16.msra.mxu0 0
    %3331 = vmatprep.mubr.bf16.mxu0 0
    %3332 = vmatmul.mubr.bf16.gmra.mrb[0].mxu0 %v3256
    %v3333 = vpop.f32.mrb[0].mxu0
    %v3334 = vadd.f32 0.0, %v3333
    %v3335 = vpop.f32.mrb[0].mxu0
    %v3336 = vadd.f32 0.0, %v3335
    %v3337 = vpop.f32.mrb[0].mxu0
    %v3338 = vpop.f32.mrb[0].mxu0
    %3339 = vdwg.mxu0
    %v3344 = vrot.slane %v3293, 6
    %v3345 = vrot.slane %v3295, 6
    %v3346 = vrot.slane %v3334, 6
    %v3347 = vrot.slane %v3336, 6
    %v3348 = vrot.slane %v3293, 7
    %v3349 = vrot.slane %v3295, 7
    %v3350 = vrot.slane %v3334, 7
    %v3351 = vrot.slane %v3336, 7
    %v3360 = vadd.f32 %v2145, %v3344
    %v3361 = vadd.f32 %v2147, %v3345
    %v3362 = vadd.f32 %v2188, %v3346
    %v3363 = vadd.f32 %v2190, %v3347
    %v3364 = vadd.f32 %v2149, %v3348
    %v3365 = vadd.f32 %v2151, %v3349
    %v3366 = vadd.f32 %v2192, %v3350
    %v3367 = vadd.f32 %v2194, %v3351
    %v3368 = vxor.u32 %v3360, 2147483648
    %v3369 = vxor.u32 %v3364, 2147483648
    %v3370 = vmul.f32 %v3368, 1.442695
    %v3371 = vpow.pop %v3370
    %v3372 = vmul.f32 %v3369, 1.442695
    %v3373 = vpow.pop %v3372
    %v3374 = vadd.f32 %v3371, 1.0
    %v3375 = vadd.f32 %v3373, 1.0
    %v3376 = vrcp.pop %v3374
    %v3377 = vmul.f32 1.0, %v3376
    %v3378 = vrcp.pop %v3375
    %v3379 = vmul.f32 1.0, %v3378
    %v3380 = vxor.u32 %v3361, 2147483648
    %v3381 = vxor.u32 %v3365, 2147483648
    %v3382 = vmul.f32 %v3380, 1.442695
    %v3383 = vpow.pop %v3382
    %v3384 = vmul.f32 %v3381, 1.442695
    %v3385 = vpow.pop %v3384
    %v3386 = vadd.f32 %v3383, 1.0
    %v3387 = vadd.f32 %v3385, 1.0
    %v3388 = vrcp.pop %v3386
    %v3389 = vmul.f32 1.0, %v3388
    %v3390 = vrcp.pop %v3387
    %v3391 = vmul.f32 1.0, %v3390
    %v3392 = vtanh.pop %v3362
    %v3393 = vtanh.pop %v3366
    %v3394 = vxor.u32 %v3363, 2147483648
    %v3395 = vxor.u32 %v3367, 2147483648
    %v3396 = vmul.f32 %v3394, 1.442695
    %v3397 = vpow.pop %v3396
    %v3398 = vmul.f32 %v3395, 1.442695
    %v3399 = vpow.pop %v3398
    %v3400 = vadd.f32 %v3397, 1.0
    %v3401 = vadd.f32 %v3399, 1.0
    %v3402 = vrcp.pop %v3400
    %v3403 = vmul.f32 1.0, %v3402
    %v3404 = vrcp.pop %v3401
    %v3405 = vmul.f32 1.0, %v3404
    %v3408 = vrot.slane %v3241, 1
    %v3409 = vrot.slane %v3242, 1
    %v3412 = vmul.f32 %v3389, %v3408
    %v3413 = vmul.f32 %v3391, %v3409
    %v3414 = vmul.f32 %v3377, %v3392
    %v3415 = vmul.f32 %v3379, %v3393
    %v3416 = vadd.f32 %v3412, %v3414
    %v3417 = vadd.f32 %v3413, %v3415
    %v3418 = vtanh.pop %v3416
    %v3419 = vtanh.pop %v3417
    %v3420 = vmul.f32 %v3403, %v3418
    %v3421 = vmul.f32 %v3405, %v3419
    %v3422 = vpack.c.bf16 %v3420, %v3420
    %v3423 = vpack.c.bf16 %v3421, %v3421
    %v3426 = vunpack.c.l.b16 %v3422
    %v3427 = vunpack.c.l.b16 %v3423
    %v3428 = vrot.slane %v3426, 2
    %v3429 = vrot.slane %v3427, 1
    %v3430 = vsel %vm681, %v3429, %v3428
    %v3431 = vpack.c.b16 %v3430, %v3430
    %3433 = vmatprep.subr.bf16.mxu0 %v2326
    %3434 = vmatpush1.bf16.msra.mxu0 %v2325
    %3435 = vmatprep.subr.bf16.mxu0 %v2330
    %3436 = vmatpush1.bf16.msra.mxu0 %v2329
    %3437 = vmatprep.subr.bf16.mxu0 %v2334
    %3438 = vmatpush1.bf16.msra.mxu0 %v2333
    %3439 = vmatprep.subr.bf16.mxu0 %v2338
    %3440 = vmatpush1.bf16.msra.mxu0 %v2337
    %3441 = vmatprep.subr.bf16.mxu0 %v2342
    %3442 = vmatpush1.bf16.msra.mxu0 %v2341
    %3443 = vmatprep.subr.bf16.mxu0 %v2346
    %3444 = vmatpush1.bf16.msra.mxu0 %v2345
    %3445 = vmatprep.subr.bf16.mxu0 %v2350
    %3446 = vmatpush1.bf16.msra.mxu0 %v2349
    %3447 = vmatprep.subr.bf16.mxu0 %v2354
    %3448 = vmatpush1.bf16.msra.mxu0 %v2353
    %3449 = vmatprep.subr.bf16.mxu0 0
    %3450 = vmatpush1.bf16.msra.mxu0 0
    %3451 = vmatprep.subr.bf16.mxu0 0
    %3452 = vmatpush1.bf16.msra.mxu0 0
    %3453 = vmatprep.subr.bf16.mxu0 0
    %3454 = vmatpush1.bf16.msra.mxu0 0
    %3455 = vmatprep.subr.bf16.mxu0 0
    %3456 = vmatpush1.bf16.msra.mxu0 0
    %3457 = vmatprep.subr.bf16.mxu0 0
    %3458 = vmatpush1.bf16.msra.mxu0 0
    %3459 = vmatprep.subr.bf16.mxu0 0
    %3460 = vmatpush1.bf16.msra.mxu0 0
    %3461 = vmatprep.subr.bf16.mxu0 0
    %3462 = vmatpush1.bf16.msra.mxu0 0
    %3463 = vmatprep.subr.bf16.mxu0 0
    %3464 = vmatpush1.bf16.msra.mxu0 0
    %3465 = vmatprep.mubr.bf16.mxu0 0
    %3466 = vmatmul.mubr.bf16.gmra.mrb[0].mxu0 %v3431
    %v3467 = vpop.f32.mrb[0].mxu0
    %v3468 = vadd.f32 0.0, %v3467
    %v3469 = vpop.f32.mrb[0].mxu0
    %v3470 = vadd.f32 0.0, %v3469
    %v3471 = vpop.f32.mrb[0].mxu0
    %v3472 = vpop.f32.mrb[0].mxu0
    %3473 = vdwg.mxu0
    %3474 = vmatprep.subr.bf16.mxu0 %v2328
    %3475 = vmatpush1.bf16.msra.mxu0 %v2327
    %3476 = vmatprep.subr.bf16.mxu0 %v2332
    %3477 = vmatpush1.bf16.msra.mxu0 %v2331
    %3478 = vmatprep.subr.bf16.mxu0 %v2336
    %3479 = vmatpush1.bf16.msra.mxu0 %v2335
    %3480 = vmatprep.subr.bf16.mxu0 %v2340
    %3481 = vmatpush1.bf16.msra.mxu0 %v2339
    %3482 = vmatprep.subr.bf16.mxu0 %v2344
    %3483 = vmatpush1.bf16.msra.mxu0 %v2343
    %3484 = vmatprep.subr.bf16.mxu0 %v2348
    %3485 = vmatpush1.bf16.msra.mxu0 %v2347
    %3486 = vmatprep.subr.bf16.mxu0 %v2352
    %3487 = vmatpush1.bf16.msra.mxu0 %v2351
    %3488 = vmatprep.subr.bf16.mxu0 %v2356
    %3489 = vmatpush1.bf16.msra.mxu0 %v2355
    %3490 = vmatprep.subr.bf16.mxu0 0
    %3491 = vmatpush1.bf16.msra.mxu0 0
    %3492 = vmatprep.subr.bf16.mxu0 0
    %3493 = vmatpush1.bf16.msra.mxu0 0
    %3494 = vmatprep.subr.bf16.mxu0 0
    %3495 = vmatpush1.bf16.msra.mxu0 0
    %3496 = vmatprep.subr.bf16.mxu0 0
    %3497 = vmatpush1.bf16.msra.mxu0 0
    %3498 = vmatprep.subr.bf16.mxu0 0
    %3499 = vmatpush1.bf16.msra.mxu0 0
    %3500 = vmatprep.subr.bf16.mxu0 0
    %3501 = vmatpush1.bf16.msra.mxu0 0
    %3502 = vmatprep.subr.bf16.mxu0 0
    %3503 = vmatpush1.bf16.msra.mxu0 0
    %3504 = vmatprep.subr.bf16.mxu0 0
    %3505 = vmatpush1.bf16.msra.mxu0 0
    %3506 = vmatprep.mubr.bf16.mxu0 0
    %3507 = vmatmul.mubr.bf16.gmra.mrb[0].mxu0 %v3431
    %v3508 = vpop.f32.mrb[0].mxu0
    %v3509 = vadd.f32 0.0, %v3508
    %v3510 = vpop.f32.mrb[0].mxu0
    %v3511 = vadd.f32 0.0, %v3510
    %v3512 = vpop.f32.mrb[0].mxu0
    %v3513 = vpop.f32.mrb[0].mxu0
    %3514 = vdwg.mxu0
    %v3519 = vrot.slane %v3468, 7
    %v3520 = vrot.slane %v3470, 7
    %v3521 = vrot.slane %v3509, 7
    %v3522 = vrot.slane %v3511, 7
    %v3531 = vadd.f32 %v2145, %v3519
    %v3532 = vadd.f32 %v2147, %v3520
    %v3533 = vadd.f32 %v2188, %v3521
    %v3534 = vadd.f32 %v2190, %v3522
    %v3535 = vadd.f32 %v2149, %v3468
    %v3536 = vadd.f32 %v2151, %v3470
    %v3537 = vadd.f32 %v2192, %v3509
    %v3538 = vadd.f32 %v2194, %v3511
    %v3539 = vxor.u32 %v3531, 2147483648
    %v3540 = vxor.u32 %v3535, 2147483648
    %v3541 = vmul.f32 %v3539, 1.442695
    %v3542 = vpow.pop %v3541
    %v3543 = vmul.f32 %v3540, 1.442695
    %v3544 = vpow.pop %v3543
    %v3545 = vadd.f32 %v3542, 1.0
    %v3546 = vadd.f32 %v3544, 1.0
    %v3547 = vrcp.pop %v3545
    %v3548 = vmul.f32 1.0, %v3547
    %v3549 = vrcp.pop %v3546
    %v3550 = vmul.f32 1.0, %v3549
    %v3551 = vxor.u32 %v3532, 2147483648
    %v3552 = vxor.u32 %v3536, 2147483648
    %v3553 = vmul.f32 %v3551, 1.442695
    %v3554 = vpow.pop %v3553
    %v3555 = vmul.f32 %v3552, 1.442695
    %v3556 = vpow.pop %v3555
    %v3557 = vadd.f32 %v3554, 1.0
    %v3558 = vadd.f32 %v3556, 1.0
    %v3559 = vrcp.pop %v3557
    %v3560 = vmul.f32 1.0, %v3559
    %v3561 = vrcp.pop %v3558
    %v3562 = vmul.f32 1.0, %v3561
    %v3563 = vtanh.pop %v3533
    %v3564 = vtanh.pop %v3537
    %v3565 = vxor.u32 %v3534, 2147483648
    %v3566 = vxor.u32 %v3538, 2147483648
    %v3567 = vmul.f32 %v3565, 1.442695
    %v3568 = vpow.pop %v3567
    %v3569 = vmul.f32 %v3566, 1.442695
    %v3570 = vpow.pop %v3569
    %v3571 = vadd.f32 %v3568, 1.0
    %v3572 = vadd.f32 %v3570, 1.0
    %v3573 = vrcp.pop %v3571
    %v3574 = vmul.f32 1.0, %v3573
    %v3575 = vrcp.pop %v3572
    %v3576 = vmul.f32 1.0, %v3575
    %v3579 = vrot.slane %v3416, 1
    %v3580 = vrot.slane %v3417, 1
    %v3583 = vmul.f32 %v3560, %v3579
    %v3584 = vmul.f32 %v3562, %v3580
    %v3585 = vmul.f32 %v3548, %v3563
    %v3586 = vmul.f32 %v3550, %v3564
    %v3587 = vadd.f32 %v3583, %v3585
    %v3588 = vadd.f32 %v3584, %v3586
    %v3589 = vtanh.pop %v3587
    %v3590 = vtanh.pop %v3588
    %v3591 = vmul.f32 %v3574, %v3589
    %v3592 = vmul.f32 %v3576, %v3590
    %v3593 = vpack.c.bf16 %v3591, %v3591
    %v3594 = vpack.c.bf16 %v3592, %v3592
    %v3597 = vunpack.c.l.b16 %v3593
    %v3598 = vunpack.c.l.b16 %v3594
    %v3599 = vrot.slane %v3597, 1
    %v3600 = vsel %vm681, %v3598, %v3599
    %v3601 = vpack.c.b16 %v3600, %v3600
    %3603 = vmatprep.subr.bf16.mxu0 %v2326
    %3604 = vmatpush1.bf16.msra.mxu0 %v2325
    %3605 = vmatprep.subr.bf16.mxu0 %v2330
    %3606 = vmatpush1.bf16.msra.mxu0 %v2329
    %3607 = vmatprep.subr.bf16.mxu0 %v2334
    %3608 = vmatpush1.bf16.msra.mxu0 %v2333
    %3609 = vmatprep.subr.bf16.mxu0 %v2338
    %3610 = vmatpush1.bf16.msra.mxu0 %v2337
    %3611 = vmatprep.subr.bf16.mxu0 %v2342
    %3612 = vmatpush1.bf16.msra.mxu0 %v2341
    %3613 = vmatprep.subr.bf16.mxu0 %v2346
    %3614 = vmatpush1.bf16.msra.mxu0 %v2345
    %3615 = vmatprep.subr.bf16.mxu0 %v2350
    %3616 = vmatpush1.bf16.msra.mxu0 %v2349
    %3617 = vmatprep.subr.bf16.mxu0 %v2354
    %3618 = vmatpush1.bf16.msra.mxu0 %v2353
    %3619 = vmatprep.subr.bf16.mxu0 0
    %3620 = vmatpush1.bf16.msra.mxu0 0
    %3621 = vmatprep.subr.bf16.mxu0 0
    %3622 = vmatpush1.bf16.msra.mxu0 0
    %3623 = vmatprep.subr.bf16.mxu0 0
    %3624 = vmatpush1.bf16.msra.mxu0 0
    %3625 = vmatprep.subr.bf16.mxu0 0
    %3626 = vmatpush1.bf16.msra.mxu0 0
    %3627 = vmatprep.subr.bf16.mxu0 0
    %3628 = vmatpush1.bf16.msra.mxu0 0
    %3629 = vmatprep.subr.bf16.mxu0 0
    %3630 = vmatpush1.bf16.msra.mxu0 0
    %3631 = vmatprep.subr.bf16.mxu0 0
    %3632 = vmatpush1.bf16.msra.mxu0 0
    %3633 = vmatprep.subr.bf16.mxu0 0
    %3634 = vmatpush1.bf16.msra.mxu0 0
    %3635 = vmatprep.mubr.bf16.mxu0 0
    %3636 = vmatmul.mubr.bf16.gmra.mrb[0].mxu0 %v3601
    %v3637 = vpop.f32.mrb[0].mxu0
    %v3638 = vadd.f32 0.0, %v3637
    %v3639 = vpop.f32.mrb[0].mxu0
    %v3640 = vadd.f32 0.0, %v3639
    %v3641 = vpop.f32.mrb[0].mxu0
    %v3642 = vpop.f32.mrb[0].mxu0
    %3643 = vdwg.mxu0
    %3644 = vmatprep.subr.bf16.mxu0 %v2328
    %3645 = vmatpush1.bf16.msra.mxu0 %v2327
    %3646 = vmatprep.subr.bf16.mxu0 %v2332
    %3647 = vmatpush1.bf16.msra.mxu0 %v2331
    %3648 = vmatprep.subr.bf16.mxu0 %v2336
    %3649 = vmatpush1.bf16.msra.mxu0 %v2335
    %3650 = vmatprep.subr.bf16.mxu0 %v2340
    %3651 = vmatpush1.bf16.msra.mxu0 %v2339
    %3652 = vmatprep.subr.bf16.mxu0 %v2344
    %3653 = vmatpush1.bf16.msra.mxu0 %v2343
    %3654 = vmatprep.subr.bf16.mxu0 %v2348
    %3655 = vmatpush1.bf16.msra.mxu0 %v2347
    %3656 = vmatprep.subr.bf16.mxu0 %v2352
    %3657 = vmatpush1.bf16.msra.mxu0 %v2351
    %3658 = vmatprep.subr.bf16.mxu0 %v2356
    %3659 = vmatpush1.bf16.msra.mxu0 %v2355
    %3660 = vmatprep.subr.bf16.mxu0 0
    %3661 = vmatpush1.bf16.msra.mxu0 0
    %3662 = vmatprep.subr.bf16.mxu0 0
    %3663 = vmatpush1.bf16.msra.mxu0 0
    %3664 = vmatprep.subr.bf16.mxu0 0
    %3665 = vmatpush1.bf16.msra.mxu0 0
    %3666 = vmatprep.subr.bf16.mxu0 0
    %3667 = vmatpush1.bf16.msra.mxu0 0
    %3668 = vmatprep.subr.bf16.mxu0 0
    %3669 = vmatpush1.bf16.msra.mxu0 0
    %3670 = vmatprep.subr.bf16.mxu0 0
    %3671 = vmatpush1.bf16.msra.mxu0 0
    %3672 = vmatprep.subr.bf16.mxu0 0
    %3673 = vmatpush1.bf16.msra.mxu0 0
    %3674 = vmatprep.subr.bf16.mxu0 0
    %3675 = vmatpush1.bf16.msra.mxu0 0
    %3676 = vmatprep.mubr.bf16.mxu0 0
    %3677 = vmatmul.mubr.bf16.gmra.mrb[0].mxu0 %v3601
    %v3678 = vpop.f32.mrb[0].mxu0
    %v3679 = vadd.f32 0.0, %v3678
    %v3680 = vpop.f32.mrb[0].mxu0
    %v3681 = vadd.f32 0.0, %v3680
    %v3682 = vpop.f32.mrb[0].mxu0
    %v3683 = vpop.f32.mrb[0].mxu0
    %3684 = vdwg.mxu0
    %v3689 = vrot.slane %v3638, 1
    %v3690 = vrot.slane %v3640, 1
    %v3691 = vrot.slane %v3679, 1
    %v3692 = vrot.slane %v3681, 1
    %v3701 = vadd.f32 %v2145, %v3638
    %v3702 = vadd.f32 %v2147, %v3640
    %v3703 = vadd.f32 %v2188, %v3679
    %v3704 = vadd.f32 %v2190, %v3681
    %v3705 = vadd.f32 %v2149, %v3689
    %v3706 = vadd.f32 %v2151, %v3690
    %v3707 = vadd.f32 %v2192, %v3691
    %v3708 = vadd.f32 %v2194, %v3692
    %v3709 = vxor.u32 %v3701, 2147483648
    %v3710 = vxor.u32 %v3705, 2147483648
    %v3711 = vmul.f32 %v3709, 1.442695
    %v3712 = vpow.pop %v3711
    %v3713 = vmul.f32 %v3710, 1.442695
    %v3714 = vpow.pop %v3713
    %v3715 = vadd.f32 %v3712, 1.0
    %v3716 = vadd.f32 %v3714, 1.0
    %v3717 = vrcp.pop %v3715
    %v3718 = vmul.f32 1.0, %v3717
    %v3719 = vrcp.pop %v3716
    %v3720 = vmul.f32 1.0, %v3719
    %v3721 = vxor.u32 %v3702, 2147483648
    %v3722 = vxor.u32 %v3706, 2147483648
    %v3723 = vmul.f32 %v3721, 1.442695
    %v3724 = vpow.pop %v3723
    %v3725 = vmul.f32 %v3722, 1.442695
    %v3726 = vpow.pop %v3725
    %v3727 = vadd.f32 %v3724, 1.0
    %v3728 = vadd.f32 %v3726, 1.0
    %v3729 = vrcp.pop %v3727
    %v3730 = vmul.f32 1.0, %v3729
    %v3731 = vrcp.pop %v3728
    %v3732 = vmul.f32 1.0, %v3731
    %v3733 = vtanh.pop %v3703
    %v3734 = vtanh.pop %v3707
    %v3735 = vxor.u32 %v3704, 2147483648
    %v3736 = vxor.u32 %v3708, 2147483648
    %v3737 = vmul.f32 %v3735, 1.442695
    %v3738 = vpow.pop %v3737
    %v3739 = vmul.f32 %v3736, 1.442695
    %v3740 = vpow.pop %v3739
    %v3741 = vadd.f32 %v3738, 1.0
    %v3742 = vadd.f32 %v3740, 1.0
    %v3743 = vrcp.pop %v3741
    %v3744 = vmul.f32 1.0, %v3743
    %v3745 = vrcp.pop %v3742
    %v3746 = vmul.f32 1.0, %v3745
    %v3749 = vrot.slane %v3587, 1
    %v3750 = vrot.slane %v3588, 1
    %v3753 = vmul.f32 %v3730, %v3749
    %v3754 = vmul.f32 %v3732, %v3750
    %v3755 = vmul.f32 %v3718, %v3733
    %v3756 = vmul.f32 %v3720, %v3734
    %v3757 = vadd.f32 %v3753, %v3755
    %v3758 = vadd.f32 %v3754, %v3756
    %v3759 = vtanh.pop %v3757
    %v3760 = vtanh.pop %v3758
    %v3761 = vmul.f32 %v3744, %v3759
    %v3762 = vmul.f32 %v3746, %v3760
    %v3765 = vrot.slane %v1893, 7
    %v3770 = vrot.slane %v3761, 1
    %v3773 = vpack.c.bf16 %v3765, %v1892
    %v3774 = vpack.c.bf16 %v3762, %v3770
    %v3775 = vld [vmem:[%s4] sm:$0xf]
    %v3776 = vld [vmem:[%s4 + $0x4] sm:$0xf]
    %v3777 = vld [vmem:[%s4 + $0x8] sm:$0xf]
    %v3778 = vld [vmem:[%s4 + $0xc] sm:$0xf]
    %v3779 = vld [vmem:[%s4 + $0x10] sm:$0xf]
    %v3780 = vld [vmem:[%s4 + $0x14] sm:$0xf]
    %v3781 = vld [vmem:[%s4 + $0x18] sm:$0xf]
    %v3782 = vld [vmem:[%s4 + $0x1c] sm:$0xf]
    %v3783 = vld [vmem:[%s4 + $0x20] sm:$0xf]
    %v3784 = vld [vmem:[%s4 + $0x24] sm:$0xf]
    %v3785 = vld [vmem:[%s4 + $0x28] sm:$0xf]
    %v3786 = vld [vmem:[%s4 + $0x2c] sm:$0xf]
    %v3787 = vld [vmem:[%s4 + $0x30] sm:$0xf]
    %v3788 = vld [vmem:[%s4 + $0x34] sm:$0xf]
    %v3789 = vld [vmem:[%s4 + $0x38] sm:$0xf]
    %v3790 = vld [vmem:[%s4 + $0x3c] sm:$0xf]
    %v3791 = vld [vmem:[%s4 + $0x40] sm:$0xf]
    %v3792 = vld [vmem:[%s4 + $0x44] sm:$0xf]
    %v3793 = vld [vmem:[%s4 + $0x48] sm:$0xf]
    %v3794 = vld [vmem:[%s4 + $0x4c] sm:$0xf]
    %v3795 = vld [vmem:[%s4 + $0x50] sm:$0xf]
    %v3796 = vld [vmem:[%s4 + $0x54] sm:$0xf]
    %v3797 = vld [vmem:[%s4 + $0x58] sm:$0xf]
    %v3798 = vld [vmem:[%s4 + $0x5c] sm:$0xf]
    %v3799 = vld [vmem:[%s4 + $0x60] sm:$0xf]
    %v3800 = vld [vmem:[%s4 + $0x64] sm:$0xf]
    %v3801 = vld [vmem:[%s4 + $0x68] sm:$0xf]
    %v3802 = vld [vmem:[%s4 + $0x6c] sm:$0xf]
    %v3803 = vld [vmem:[%s4 + $0x70] sm:$0xf]
    %v3804 = vld [vmem:[%s4 + $0x74] sm:$0xf]
    %v3805 = vld [vmem:[%s4 + $0x78] sm:$0xf]
    %v3806 = vld [vmem:[%s4 + $0x7c] sm:$0xf]
    %v3807 = vld [vmem:[%s5] sm:$0x1]
    %v3809 = vlaneseq
    %v3810 = vshrl.u32 %v3809, 7
    %v3811 = vsub.s32 0, %v3810
    %v3812 = vrot.slane %v3807, %v3811
    %v3815 = vshrl.u32 %v3773, 16
    %v3817 = vrot.slane %v3815, 3
    %v3818 = vshll.u32 %v3773, 16
    %v3820 = vrot.slane %v3818, 4
    %v3821 = vor.u32 %v3817, %v3820
    %v3823 = vshrl.u32 %v3774, 16
    %v3825 = vrot.slane %v3823, 3
    %v3826 = vshll.u32 %v3774, 16
    %v3828 = vrot.slane %v3826, 4
    %v3829 = vor.u32 %v3825, %v3828
    %v3864 = vunpack.c.l.b16 %v3775
    %v3865 = vunpack.c.l.b16 %v3776
    %v3866 = vunpack.c.l.b16 %v3777
    %v3867 = vunpack.c.l.b16 %v3778
    %v3868 = vunpack.c.l.b16 %v3779
    %v3869 = vunpack.c.l.b16 %v3780
    %v3870 = vunpack.c.l.b16 %v3781
    %v3871 = vunpack.c.l.b16 %v3782
    %v3872 = vunpack.c.l.b16 %v3783
    %v3873 = vunpack.c.l.b16 %v3784
    %v3874 = vunpack.c.l.b16 %v3785
    %v3875 = vunpack.c.l.b16 %v3786
    %v3876 = vunpack.c.l.b16 %v3787
    %v3877 = vunpack.c.l.b16 %v3788
    %v3878 = vunpack.c.l.b16 %v3789
    %v3879 = vunpack.c.l.b16 %v3790
    %v3880 = vunpack.c.l.b16 %v3791
    %v3881 = vunpack.c.l.b16 %v3792
    %v3882 = vunpack.c.l.b16 %v3793
    %v3883 = vunpack.c.l.b16 %v3794
    %v3884 = vunpack.c.l.b16 %v3795
    %v3885 = vunpack.c.l.b16 %v3796
    %v3886 = vunpack.c.l.b16 %v3797
    %v3887 = vunpack.c.l.b16 %v3798
    %v3888 = vunpack.c.l.b16 %v3799
    %v3889 = vunpack.c.l.b16 %v3800
    %v3890 = vunpack.c.l.b16 %v3801
    %v3891 = vunpack.c.l.b16 %v3802
    %v3892 = vunpack.c.l.b16 %v3803
    %v3893 = vunpack.c.l.b16 %v3804
    %v3894 = vunpack.c.l.b16 %v3805
    %v3895 = vunpack.c.l.b16 %v3806
    %v3896 = vpack.c.b16 %v3865, %v3864
    %v3897 = vpack.c.b16 %v3867, %v3866
    %v3898 = vpack.c.b16 %v3869, %v3868
    %v3899 = vpack.c.b16 %v3871, %v3870
    %v3900 = vpack.c.b16 %v3873, %v3872
    %v3901 = vpack.c.b16 %v3875, %v3874
    %v3902 = vpack.c.b16 %v3877, %v3876
    %v3903 = vpack.c.b16 %v3879, %v3878
    %v3904 = vpack.c.b16 %v3881, %v3880
    %v3905 = vpack.c.b16 %v3883, %v3882
    %v3906 = vpack.c.b16 %v3885, %v3884
    %v3907 = vpack.c.b16 %v3887, %v3886
    %v3908 = vpack.c.b16 %v3889, %v3888
    %v3909 = vpack.c.b16 %v3891, %v3890
    %v3910 = vpack.c.b16 %v3893, %v3892
    %v3911 = vpack.c.b16 %v3895, %v3894
    %3928 = vmatprep.subr.bf16.mxu0 0
    %3929 = vmatpush1.bf16.msra.mxu0 %v3896
    %3930 = vmatprep.subr.bf16.mxu0 0
    %3931 = vmatpush1.bf16.msra.mxu0 %v3897
    %3932 = vmatprep.subr.bf16.mxu0 0
    %3933 = vmatpush1.bf16.msra.mxu0 %v3898
    %3934 = vmatprep.subr.bf16.mxu0 0
    %3935 = vmatpush1.bf16.msra.mxu0 %v3899
    %3936 = vmatprep.subr.bf16.mxu0 0
    %3937 = vmatpush1.bf16.msra.mxu0 %v3900
    %3938 = vmatprep.subr.bf16.mxu0 0
    %3939 = vmatpush1.bf16.msra.mxu0 %v3901
    %3940 = vmatprep.subr.bf16.mxu0 0
    %3941 = vmatpush1.bf16.msra.mxu0 %v3902
    %3942 = vmatprep.subr.bf16.mxu0 0
    %3943 = vmatpush1.bf16.msra.mxu0 %v3903
    %3944 = vmatprep.subr.bf16.mxu0 0
    %3945 = vmatpush1.bf16.msra.mxu0 %v3904
    %3946 = vmatprep.subr.bf16.mxu0 0
    %3947 = vmatpush1.bf16.msra.mxu0 %v3905
    %3948 = vmatprep.subr.bf16.mxu0 0
    %3949 = vmatpush1.bf16.msra.mxu0 %v3906
    %3950 = vmatprep.subr.bf16.mxu0 0
    %3951 = vmatpush1.bf16.msra.mxu0 %v3907
    %3952 = vmatprep.subr.bf16.mxu0 0
    %3953 = vmatpush1.bf16.msra.mxu0 %v3908
    %3954 = vmatprep.subr.bf16.mxu0 0
    %3955 = vmatpush1.bf16.msra.mxu0 %v3909
    %3956 = vmatprep.subr.bf16.mxu0 0
    %3957 = vmatpush1.bf16.msra.mxu0 %v3910
    %3958 = vmatprep.subr.bf16.mxu0 0
    %3959 = vmatpush1.bf16.msra.mxu0 %v3911
    %3960 = vmatprep.mubr.bf16.mxu0 %v3829
    %3961 = vmatmul.mubr.bf16.gmra.mrb[0].mxu0 %v3821
    %v3962 = vpop.f32.mrb[0].mxu0
    %v3963 = vadd.f32 %v3812, %v3962
    %v3964 = vpop.f32.mrb[0].mxu0
    %v3965 = vpop.f32.mrb[0].mxu0
    %v3966 = vpop.f32.mrb[0].mxu0
    %3967 = vdwg.mxu0
    %3968 = vst [vmem:[#allocation2] sm:$0x3] %v3963
    // Predicated region
    $region26: #{wrapper_classifier_forward.3} parent=1 // pred_check
      _
    $region27: #{wrapper_classifier_forward.3} parent=1 // pred_check_branch
      %3970 = sbr.rel (0) target = $region29
    $region28: #{wrapper_classifier_forward.3} parent=1 // pred_region
      %s3972 = ssub.s32 32, 32
      %3973 = vsyncadd [#allocation3], %s3972
      %s3975 = sshll.u32 [#allocation2], 4
      %s3976 = int_to_ptr.vmem [resolvable:$true] %s3975
      %3978 = dma.vmem_to_hbm [thread:$0]  %s3976, 32, %s6, [#allocation3]
    $region29: #{wrapper_classifier_forward.3} parent=1 // pred_fallthru
      _
    // Predicated region
    $region30: #{wrapper_classifier_forward.3} parent=1 // pred_check
      _
    $region31: #{wrapper_classifier_forward.3} parent=1 // pred_check_branch
      %3980 = sbr.rel (0) target = $region33
    $region32: #{wrapper_classifier_forward.3} parent=1 // pred_region
      %3981 = dma.done [#allocation3], 32
    $region33: #{wrapper_classifier_forward.3} parent=1 // pred_fallthru
      _
    %3982 = vsyncpa [#allocation3], 1

</llo_original>
